<compile_context>
chip_gen: v7x
topology: tpu7x:2x2x1
jax: 0.10.0
libtpu: 0.0.40
codegen_flags: <defaults>
</compile_context>

<pallas_src>
import functools
import math

import jax
import jax.numpy as jnp
from jax.experimental import pallas as pl
from jax.experimental.pallas import tpu as pltpu

# Hyperparameters: TransformerClassifier(nhead=2, nhid=32, nenclayers=2, ndeclayers=2)
NHEAD = 2
NHID = 32
N_ENC_LAYERS = 2
N_DEC_LAYERS = 2
NINPUT = 4      # d_model
NTOKEN = 2
HEAD_DIM = NINPUT // NHEAD
ATTN_SCALE = 1.0 / math.sqrt(HEAD_DIM)
LN_EPS = 1e-5
MASK_NEG = -1e9
LANES = 128


def _round8(n):
    return ((n + 7) // 8) * 8


# ---------------------------------------------------------------------------
# Static packing layout: every parameter lives at a fixed, 8-row-aligned,
# lane-0-aligned block of a single (rows, 128) f32 slab.
# ---------------------------------------------------------------------------
def _build_layout():
    E, H, T = NINPUT, NHID, NTOKEN
    entries = []

    def add(name, rows, cols):
        entries.append((name, rows, cols))

    def add_attn(prefix):
        add(prefix + "wq", E, E); add(prefix + "bq", 1, E)
        add(prefix + "wk", E, E); add(prefix + "bk", 1, E)
        add(prefix + "wv", E, E); add(prefix + "bv", 1, E)
        add(prefix + "wo", E, E); add(prefix + "bo", 1, E)

    for l in range(N_ENC_LAYERS):
        add_attn(f"e{l}_")
        add(f"e{l}_l1_w", E, H); add(f"e{l}_l1_b", 1, H)
        add(f"e{l}_l2_w", H, E); add(f"e{l}_l2_b", 1, E)
        add(f"e{l}_n1_w", 1, E); add(f"e{l}_n1_b", 1, E)
        add(f"e{l}_n2_w", 1, E); add(f"e{l}_n2_b", 1, E)
    for l in range(N_DEC_LAYERS):
        add_attn(f"d{l}_sa_")
        add_attn(f"d{l}_ca_")
        add(f"d{l}_l1_w", E, H); add(f"d{l}_l1_b", 1, H)
        add(f"d{l}_l2_w", H, E); add(f"d{l}_l2_b", 1, E)
        add(f"d{l}_n1_w", 1, E); add(f"d{l}_n1_b", 1, E)
        add(f"d{l}_n2_w", 1, E); add(f"d{l}_n2_b", 1, E)
        add(f"d{l}_n3_w", 1, E); add(f"d{l}_n3_b", 1, E)
    add("enc_nw", 1, E); add("enc_nb", 1, E)
    add("dec_nw", 1, E); add("dec_nb", 1, E)
    add("pred_w", E, T); add("pred_b", 1, T)
    add("head_mask", NHEAD, E)   # one-hot head lane masks

    layout, off = {}, 0
    for name, rows, cols in entries:
        layout[name] = (off, rows, cols)
        off += _round8(rows)
    return layout, off


LAYOUT, PARAM_ROWS = _build_layout()


# ---------------------------------------------------------------------------
# Pallas kernel: whole forward pass, fully VMEM-resident, one packed-slab DMA.
# Activations are 2D (M, E) with M = batch*seq, seq-major folded.
# ---------------------------------------------------------------------------
def transformer_kernel(x_ref, slab_ref, out_ref, *, batch):
    E = NINPUT
    M = x_ref.shape[0]                      # batch * seq

    def get(name):
        r0, r, c = LAYOUT[name]
        return slab_ref[r0:r0 + r, 0:c]

    pe_off = PARAM_ROWS
    self_off = pe_off + _round8(M)
    cross_off = self_off + _round8(2 * M)
    pe = slab_ref[pe_off:pe_off + M, 0:E]                     # (M, E), pre-folded
    self_mask = slab_ref[self_off:self_off + 2 * M, 0:M]      # (2M, M), 0 / -1e9
    cross_mask = slab_ref[cross_off:cross_off + 2 * M, 0:M]   # (2M, M), 0 / -1e9

    hm = get("head_mask")                   # (NHEAD, E)
    hm0 = hm[0:1, :]
    hm1 = hm[1:2, :]

    def linear(h, wname, bname):
        return (jnp.dot(h, get(wname), preferred_element_type=jnp.float32)
                + get(bname))

    def layer_norm(h, wname, bname):
        mu = jnp.mean(h, axis=-1, keepdims=True)
        var = jnp.mean(jnp.square(h - mu), axis=-1, keepdims=True)
        return (h - mu) * jax.lax.rsqrt(var + LN_EPS) * get(wname) + get(bname)

    def attention(xq, xkv, p, mask):
        """Multi-head attention, heads row-stacked: one scores dot + one
        context dot cover both heads; no per-head loop, no lane-offset slices,
        no batched einsums (batch structure comes from the additive mask)."""
        q = linear(xq, p + "wq", p + "bq")                      # (M, E)
        k = linear(xkv, p + "wk", p + "bk")                     # (M, E)
        v = linear(xkv, p + "wv", p + "bv")                     # (M, E)
        q_stack = jnp.concatenate([q * hm0, q * hm1], axis=0)   # (2M, E)
        s = jax.lax.dot_general(q_stack, k, (((1,), (1,)), ((), ())),
                                preferred_element_type=jnp.float32)
        s = s * ATTN_SCALE + mask                                # (2M, M)
        s = s - jnp.max(s, axis=-1, keepdims=True)
        prob = jnp.exp(s)
        prob = prob * pl.reciprocal(jnp.sum(prob, axis=-1, keepdims=True),
                                    approx=True)
        ctx_stack = jnp.dot(prob, v, preferred_element_type=jnp.float32)  # (2M, E)
        # Lane-masking commutes with the row-contraction: (P_h @ V)*hm_h == P_h @ (V*hm_h)
        ctx = ctx_stack[0:M, :] * hm0 + ctx_stack[M:2 * M, :] * hm1
        return linear(ctx, p + "wo", p + "bo")

    def ffn(h, p):
        h2 = jnp.maximum(linear(h, p + "l1_w", p + "l1_b"), 0.0)
        return linear(h2, p + "l2_w", p + "l2_b")

    # PositionEncoding (dropout p=0 -> identity); pe is pre-folded seq-major.
    src = x_ref[...] + pe

    # ----- encoder stack (post-norm, relu; dropout = eval-mode identity) -----
    mem = src
    for l in range(N_ENC_LAYERS):
        mem = layer_norm(mem + attention(mem, mem, f"e{l}_", self_mask),
                         f"e{l}_n1_w", f"e{l}_n1_b")
        mem = layer_norm(mem + ffn(mem, f"e{l}_"),
                         f"e{l}_n2_w", f"e{l}_n2_b")
    mem = layer_norm(mem, "enc_nw", "enc_nb")          # encoder final norm

    # ----- decoder stack (tgt = positionally-encoded src, memory_mask=None) -----
    tgt = src
    for l in range(N_DEC_LAYERS):
        tgt = layer_norm(tgt + attention(tgt, tgt, f"d{l}_sa_", self_mask),
                         f"d{l}_n1_w", f"d{l}_n1_b")
        tgt = layer_norm(tgt + attention(tgt, mem, f"d{l}_ca_", cross_mask),
                         f"d{l}_n2_w", f"d{l}_n2_b")
        tgt = layer_norm(tgt + ffn(tgt, f"d{l}_"),
                         f"d{l}_n3_w", f"d{l}_n3_b")

    # PyTorch `output[-1]`: with seq-major folding the last sequence position
    # is the last `batch` rows.  Final norm / predictor / batch-axis
    # log_softmax are per-position independent -> slice first.
    last = tgt[M - batch:M, :]                          # (batch, E)
    last = layer_norm(last, "dec_nw", "dec_nb")         # decoder final norm
    logits = linear(last, "pred_w", "pred_b")           # (batch, NTOKEN)

    # log_softmax over the batch axis (PyTorch dim=1 of (S, N, T))
    m = jnp.max(logits, axis=0, keepdims=True)
    lse = m + jnp.log(jnp.sum(jnp.exp(logits - m), axis=0, keepdims=True))
    out_ref[...] = (logits - lse).astype(out_ref.dtype)


# ---------------------------------------------------------------------------
# Host-side parameter init / packing, positional encoding, masks, wrapper
# ---------------------------------------------------------------------------
def init_params(key):
    """Parameters in PyTorch-convention shapes ((Dout, Din) weights)."""
    E, H, T = NINPUT, NHID, NTOKEN
    Le, Ld = N_ENC_LAYERS, N_DEC_LAYERS
    cnt = [0]

    def p(shape, scale=0.2):
        cnt[0] += 1
        return scale * jax.random.normal(jax.random.fold_in(key, cnt[0]),
                                         shape, dtype=jnp.float32)

    ones = lambda shape: jnp.ones(shape, jnp.float32)
    zeros = lambda shape: jnp.zeros(shape, jnp.float32)

    return dict(
        e_in_w=p((Le, 3 * E, E)), e_in_b=p((Le, 3 * E)),
        e_out_w=p((Le, E, E)), e_out_b=p((Le, E)),
        e_l1_w=p((Le, H, E)), e_l1_b=p((Le, H)),
        e_l2_w=p((Le, E, H)), e_l2_b=p((Le, E)),
        e_n1_w=ones((Le, E)), e_n1_b=zeros((Le, E)),
        e_n2_w=ones((Le, E)), e_n2_b=zeros((Le, E)),
        d_sa_in_w=p((Ld, 3 * E, E)), d_sa_in_b=p((Ld, 3 * E)),
        d_sa_out_w=p((Ld, E, E)), d_sa_out_b=p((Ld, E)),
        d_ca_in_w=p((Ld, 3 * E, E)), d_ca_in_b=p((Ld, 3 * E)),
        d_ca_out_w=p((Ld, E, E)), d_ca_out_b=p((Ld, E)),
        d_l1_w=p((Ld, H, E)), d_l1_b=p((Ld, H)),
        d_l2_w=p((Ld, E, H)), d_l2_b=p((Ld, E)),
        d_n1_w=ones((Ld, E)), d_n1_b=zeros((Ld, E)),
        d_n2_w=ones((Ld, E)), d_n2_b=zeros((Ld, E)),
        d_n3_w=ones((Ld, E)), d_n3_b=zeros((Ld, E)),
        enc_nw=ones((E,)), enc_nb=zeros((E,)),
        dec_nw=ones((E,)), dec_nb=zeros((E,)),
        pred_w=p((T, E)), pred_b=p((T,)),
    )


def sinusoidal_pe(seq_len, d_model):
    pos = jnp.arange(seq_len, dtype=jnp.float32)[:, None]
    div = jnp.exp(jnp.arange(0, d_model, 2, dtype=jnp.float32)
                  * (-math.log(10000.0) / d_model))
    pe = jnp.zeros((seq_len, d_model), jnp.float32)
    pe = pe.at[:, 0::2].set(jnp.sin(pos * div))
    pe = pe.at[:, 1::2].set(jnp.cos(pos * div))
    return pe


def folded_masks(batch, seq):
    """Additive masks for the seq-major batch-folded (M, M) score matrices.
    Self-attention: block-diagonal (same batch) AND causal (key pos <= query pos).
    Cross-attention: block-diagonal (same batch) only.  0 allowed / -1e9 masked."""
    idx = jnp.arange(batch * seq)
    s_idx = idx // batch
    n_idx = idx % batch
    same = n_idx[:, None] == n_idx[None, :]
    causal = s_idx[None, :] <= s_idx[:, None]
    self_m = jnp.where(same & causal, 0.0, MASK_NEG).astype(jnp.float32)
    cross_m = jnp.where(same, 0.0, MASK_NEG).astype(jnp.float32)
    return self_m, cross_m


def pack_params(params, batch, seq):
    """One-time host-side packing of all weights (split per q/k/v, pre-transposed
    to (Din, Dout), lane-0 aligned), biases, LN params, head-lane masks, folded
    positional encoding and pre-tiled block-diagonal masks into one slab."""
    E = NINPUT
    M = batch * seq
    total_rows = PARAM_ROWS + _round8(M) + 2 * _round8(2 * M)
    slab = jnp.zeros((total_rows, LANES), jnp.float32)

    def put(s, name, mat):
        r0, r, c = LAYOUT[name]
        mat = jnp.asarray(mat, jnp.float32).reshape(r, c)
        return s.at[r0:r0 + r, 0:c].set(mat)

    def put_attn(s, prefix, in_w, in_b, out_w, out_b):
        s = put(s, prefix + "wq", in_w[0:E, :].T)
        s = put(s, prefix + "bq", in_b[0:E])
        s = put(s, prefix + "wk", in_w[E:2 * E, :].T)
        s = put(s, prefix + "bk", in_b[E:2 * E])
        s = put(s, prefix + "wv", in_w[2 * E:3 * E, :].T)
        s = put(s, prefix + "bv", in_b[2 * E:3 * E])
        s = put(s, prefix + "wo", out_w.T)
        s = put(s, prefix + "bo", out_b)
        return s

    for l in range(N_ENC_LAYERS):
        slab = put_attn(slab, f"e{l}_", params["e_in_w"][l], params["e_in_b"][l],
                        params["e_out_w"][l], params["e_out_b"][l])
        slab = put(slab, f"e{l}_l1_w", params["e_l1_w"][l].T)
        slab = put(slab, f"e{l}_l1_b", params["e_l1_b"][l])
        slab = put(slab, f"e{l}_l2_w", params["e_l2_w"][l].T)
        slab = put(slab, f"e{l}_l2_b", params["e_l2_b"][l])
        slab = put(slab, f"e{l}_n1_w", params["e_n1_w"][l])
        slab = put(slab, f"e{l}_n1_b", params["e_n1_b"][l])
        slab = put(slab, f"e{l}_n2_w", params["e_n2_w"][l])
        slab = put(slab, f"e{l}_n2_b", params["e_n2_b"][l])
    for l in range(N_DEC_LAYERS):
        slab = put_attn(slab, f"d{l}_sa_", params["d_sa_in_w"][l],
                        params["d_sa_in_b"][l], params["d_sa_out_w"][l],
                        params["d_sa_out_b"][l])
        slab = put_attn(slab, f"d{l}_ca_", params["d_ca_in_w"][l],
                        params["d_ca_in_b"][l], params["d_ca_out_w"][l],
                        params["d_ca_out_b"][l])
        slab = put(slab, f"d{l}_l1_w", params["d_l1_w"][l].T)
        slab = put(slab, f"d{l}_l1_b", params["d_l1_b"][l])
        slab = put(slab, f"d{l}_l2_w", params["d_l2_w"][l].T)
        slab = put(slab, f"d{l}_l2_b", params["d_l2_b"][l])
        slab = put(slab, f"d{l}_n1_w", params["d_n1_w"][l])
        slab = put(slab, f"d{l}_n1_b", params["d_n1_b"][l])
        slab = put(slab, f"d{l}_n2_w", params["d_n2_w"][l])
        slab = put(slab, f"d{l}_n2_b", params["d_n2_b"][l])
        slab = put(slab, f"d{l}_n3_w", params["d_n3_w"][l])
        slab = put(slab, f"d{l}_n3_b", params["d_n3_b"][l])
    slab = put(slab, "enc_nw", params["enc_nw"])
    slab = put(slab, "enc_nb", params["enc_nb"])
    slab = put(slab, "dec_nw", params["dec_nw"])
    slab = put(slab, "dec_nb", params["dec_nb"])
    slab = put(slab, "pred_w", params["pred_w"].T)
    slab = put(slab, "pred_b", params["pred_b"])

    # one-hot head lane masks
    hm = jnp.zeros((NHEAD, E), jnp.float32)
    for h in range(NHEAD):
        hm = hm.at[h, h * HEAD_DIM:(h + 1) * HEAD_DIM].set(1.0)
    slab = put(slab, "head_mask", hm)

    # positional encoding, folded seq-major (row = s*batch + n)
    pe = sinusoidal_pe(seq, E)
    pe_fold = jnp.repeat(pe, batch, axis=0)            # (M, E)
    slab = slab.at[PARAM_ROWS:PARAM_ROWS + M, 0:E].set(pe_fold)

    # block-diagonal masks, pre-tiled x2 vertically for the two head row-blocks
    self_m, cross_m = folded_masks(batch, seq)
    self2 = jnp.concatenate([self_m, self_m], axis=0)   # (2M, M)
    cross2 = jnp.concatenate([cross_m, cross_m], axis=0)
    off = PARAM_ROWS + _round8(M)
    slab = slab.at[off:off + 2 * M, 0:M].set(self2)
    off2 = off + _round8(2 * M)
    slab = slab.at[off2:off2 + 2 * M, 0:M].set(cross2)
    return slab


@jax.jit
def transformer_classifier(x, slab):
    """x: (batch, seq, d_model) f32, slab: packed params -> (batch, ntoken)."""
    n, s, e = x.shape
    # Fold batch into rows, seq-major (PyTorch's internal (S, N, E) flattened);
    # the kernel then runs fully 2D with no batched einsums or reshapes.
    x2d = jnp.swapaxes(x, 0, 1).reshape(n * s, e)
    kernel = functools.partial(transformer_kernel, batch=n)
    return pl.pallas_call(
        kernel,
        out_shape=jax.ShapeDtypeStruct((n, NTOKEN), jnp.float32),
        in_specs=[pl.BlockSpec(memory_space=pltpu.MemorySpace.VMEM)] * 2,
        out_specs=pl.BlockSpec(memory_space=pltpu.MemorySpace.VMEM),
    )(x2d, slab)


if __name__ == "__main__":
    key = jax.random.PRNGKey(0)
    batch, seq = 2, 8
    x = jax.random.normal(key, (batch, seq, NINPUT), dtype=jnp.float32)
    params = init_params(jax.random.PRNGKey(42))
    slab = pack_params(params, batch, seq)   # one-time packing -> single DMA input

    y = transformer_classifier(x, slab)
    y = jax.block_until_ready(y)

    assert y.shape == (batch, NTOKEN), y.shape
    assert bool(jnp.all(jnp.isfinite(y)))
    # log_softmax is over the batch axis: exp(y) must sum to 1 along axis 0.
    assert bool(jnp.allclose(jnp.sum(jnp.exp(y), axis=0), 1.0, atol=1e-3))
    print("KERNEL_OK")
</pallas_src>

<mosaic_0001>
module attributes {stable_mosaic.version = 11 : i64} {
  func.func @transformer_kernel(%arg0: memref<16x4xf32, #tpu.memory_space<vmem>>, %arg1: memref<904x128xf32, #tpu.memory_space<vmem>>, %arg2: memref<2x2xf32, #tpu.memory_space<vmem>>) attributes {dimension_semantics = [], scalar_prefetch = 0 : i64, scratch_operands = 0 : i64, tpu.core_type = #tpu.core_type<tc>} {
    %c824 = arith.constant 824 : index
    %c0 = arith.constant 0 : index
    %0 = vector.load %arg1[%c824, %c0] : memref<904x128xf32, #tpu.memory_space<vmem>>, vector<16x4xf32>
    %c840 = arith.constant 840 : index
    %c0_0 = arith.constant 0 : index
    %1 = vector.load %arg1[%c840, %c0_0] : memref<904x128xf32, #tpu.memory_space<vmem>>, vector<32x16xf32>
    %c872 = arith.constant 872 : index
    %c0_1 = arith.constant 0 : index
    %2 = vector.load %arg1[%c872, %c0_1] : memref<904x128xf32, #tpu.memory_space<vmem>>, vector<32x16xf32>
    %c816 = arith.constant 816 : index
    %c0_2 = arith.constant 0 : index
    %3 = vector.load %arg1[%c816, %c0_2] : memref<904x128xf32, #tpu.memory_space<vmem>>, vector<2x4xf32>
    %4 = vector.extract_strided_slice %3 {offsets = [0, 0], sizes = [1, 4], strides = [1, 1]} : vector<2x4xf32> to vector<1x4xf32>
    %5 = vector.extract_strided_slice %3 {offsets = [1, 0], sizes = [1, 4], strides = [1, 1]} : vector<2x4xf32> to vector<1x4xf32>
    %c0_3 = arith.constant 0 : index
    %c0_4 = arith.constant 0 : index
    %6 = vector.load %arg0[%c0_3, %c0_4] : memref<16x4xf32, #tpu.memory_space<vmem>>, vector<16x4xf32>
    %7 = arith.addf %6, %0 : vector<16x4xf32>
    %c0_5 = arith.constant 0 : index
    %c0_6 = arith.constant 0 : index
    %8 = vector.load %arg1[%c0_5, %c0_6] : memref<904x128xf32, #tpu.memory_space<vmem>>, vector<4x4xf32>
    %cst = arith.constant dense<0.000000e+00> : vector<16x4xf32>
    %9 = tpu.matmul %7, %8, %cst {dimension_numbers = #tpu.dot_dimension_numbers<[1], [0], [0], [1], [0, 0, 1, 1], [], []>} : vector<16x4xf32>, vector<4x4xf32>, vector<16x4xf32> -> vector<16x4xf32>
    %c8 = arith.constant 8 : index
    %c0_7 = arith.constant 0 : index
    %10 = vector.load %arg1[%c8, %c0_7] : memref<904x128xf32, #tpu.memory_space<vmem>>, vector<1x4xf32>
    %11 = vector.broadcast %10 : vector<1x4xf32> to vector<16x4xf32>
    %12 = arith.addf %9, %11 : vector<16x4xf32>
    %c16 = arith.constant 16 : index
    %c0_8 = arith.constant 0 : index
    %13 = vector.load %arg1[%c16, %c0_8] : memref<904x128xf32, #tpu.memory_space<vmem>>, vector<4x4xf32>
    %cst_9 = arith.constant dense<0.000000e+00> : vector<16x4xf32>
    %14 = tpu.matmul %7, %13, %cst_9 {dimension_numbers = #tpu.dot_dimension_numbers<[1], [0], [0], [1], [0, 0, 1, 1], [], []>} : vector<16x4xf32>, vector<4x4xf32>, vector<16x4xf32> -> vector<16x4xf32>
    %c24 = arith.constant 24 : index
    %c0_10 = arith.constant 0 : index
    %15 = vector.load %arg1[%c24, %c0_10] : memref<904x128xf32, #tpu.memory_space<vmem>>, vector<1x4xf32>
    %16 = vector.broadcast %15 : vector<1x4xf32> to vector<16x4xf32>
    %17 = arith.addf %14, %16 : vector<16x4xf32>
    %c32 = arith.constant 32 : index
    %c0_11 = arith.constant 0 : index
    %18 = vector.load %arg1[%c32, %c0_11] : memref<904x128xf32, #tpu.memory_space<vmem>>, vector<4x4xf32>
    %cst_12 = arith.constant dense<0.000000e+00> : vector<16x4xf32>
    %19 = tpu.matmul %7, %18, %cst_12 {dimension_numbers = #tpu.dot_dimension_numbers<[1], [0], [0], [1], [0, 0, 1, 1], [], []>} : vector<16x4xf32>, vector<4x4xf32>, vector<16x4xf32> -> vector<16x4xf32>
    %c40 = arith.constant 40 : index
    %c0_13 = arith.constant 0 : index
    %20 = vector.load %arg1[%c40, %c0_13] : memref<904x128xf32, #tpu.memory_space<vmem>>, vector<1x4xf32>
    %21 = vector.broadcast %20 : vector<1x4xf32> to vector<16x4xf32>
    %22 = arith.addf %19, %21 : vector<16x4xf32>
    %23 = vector.broadcast %4 : vector<1x4xf32> to vector<16x4xf32>
    %24 = arith.mulf %12, %23 : vector<16x4xf32>
    %25 = vector.broadcast %5 : vector<1x4xf32> to vector<16x4xf32>
    %26 = arith.mulf %12, %25 : vector<16x4xf32>
    %27 = tpu.concatenate %24, %26 in 0 : vector<16x4xf32>, vector<16x4xf32> -> vector<32x4xf32>
    %cst_14 = arith.constant dense<0.000000e+00> : vector<32x16xf32>
    %28 = tpu.matmul %27, %17, %cst_14 {dimension_numbers = #tpu.dot_dimension_numbers<[1], [1], [0], [0], [0, 0, 1, 0], [], []>} : vector<32x4xf32>, vector<16x4xf32>, vector<32x16xf32> -> vector<32x16xf32>
    %cst_15 = arith.constant 0.707106769 : f32
    %29 = vector.broadcast %cst_15 : f32 to vector<32x16xf32>
    %30 = arith.mulf %28, %29 : vector<32x16xf32>
    %31 = arith.addf %30, %1 : vector<32x16xf32>
    %cst_16 = arith.constant dense<0xFF800000> : vector<32xf32>
    %32 = vector.multi_reduction <maximumf>, %31, %cst_16 [1] : vector<32x16xf32> to vector<32xf32>
    %33 = vector.shape_cast %32 : vector<32xf32> to vector<32x1xf32>
    %34 = vector.broadcast %33 : vector<32x1xf32> to vector<32x16xf32>
    %35 = arith.subf %31, %34 : vector<32x16xf32>
    %36 = math.exp %35 : vector<32x16xf32>
    %cst_17 = arith.constant dense<0.000000e+00> : vector<32xf32>
    %37 = vector.multi_reduction <add>, %36, %cst_17 [1] : vector<32x16xf32> to vector<32xf32>
    %38 = vector.shape_cast %37 : vector<32xf32> to vector<32x1xf32>
    %39 = tpu.reciprocal %38 {approx = true} : vector<32x1xf32> -> vector<32x1xf32>
    %40 = vector.broadcast %39 : vector<32x1xf32> to vector<32x16xf32>
    %41 = arith.mulf %36, %40 : vector<32x16xf32>
    %cst_18 = arith.constant dense<0.000000e+00> : vector<32x4xf32>
    %42 = tpu.matmul %41, %22, %cst_18 {dimension_numbers = #tpu.dot_dimension_numbers<[1], [0], [0], [1], [0, 0, 1, 1], [], []>} : vector<32x16xf32>, vector<16x4xf32>, vector<32x4xf32> -> vector<32x4xf32>
    %43 = vector.extract_strided_slice %42 {offsets = [0, 0], sizes = [16, 4], strides = [1, 1]} : vector<32x4xf32> to vector<16x4xf32>
    %44 = vector.broadcast %4 : vector<1x4xf32> to vector<16x4xf32>
    %45 = arith.mulf %43, %44 : vector<16x4xf32>
    %46 = vector.extract_strided_slice %42 {offsets = [16, 0], sizes = [16, 4], strides = [1, 1]} : vector<32x4xf32> to vector<16x4xf32>
    %47 = vector.broadcast %5 : vector<1x4xf32> to vector<16x4xf32>
    %48 = arith.mulf %46, %47 : vector<16x4xf32>
    %49 = arith.addf %45, %48 : vector<16x4xf32>
    %c48 = arith.constant 48 : index
    %c0_19 = arith.constant 0 : index
    %50 = vector.load %arg1[%c48, %c0_19] : memref<904x128xf32, #tpu.memory_space<vmem>>, vector<4x4xf32>
    %cst_20 = arith.constant dense<0.000000e+00> : vector<16x4xf32>
    %51 = tpu.matmul %49, %50, %cst_20 {dimension_numbers = #tpu.dot_dimension_numbers<[1], [0], [0], [1], [0, 0, 1, 1], [], []>} : vector<16x4xf32>, vector<4x4xf32>, vector<16x4xf32> -> vector<16x4xf32>
    %c56 = arith.constant 56 : index
    %c0_21 = arith.constant 0 : index
    %52 = vector.load %arg1[%c56, %c0_21] : memref<904x128xf32, #tpu.memory_space<vmem>>, vector<1x4xf32>
    %53 = vector.broadcast %52 : vector<1x4xf32> to vector<16x4xf32>
    %54 = arith.addf %51, %53 : vector<16x4xf32>
    %55 = arith.addf %7, %54 : vector<16x4xf32>
    %cst_22 = arith.constant dense<0.000000e+00> : vector<16xf32>
    %56 = vector.multi_reduction <add>, %55, %cst_22 [1] : vector<16x4xf32> to vector<16xf32>
    %57 = vector.shape_cast %56 : vector<16xf32> to vector<16x1xf32>
    %cst_23 = arith.constant 4.000000e+00 : f32
    %58 = vector.broadcast %cst_23 : f32 to vector<16x1xf32>
    %59 = arith.divf %57, %58 : vector<16x1xf32>
    %60 = vector.broadcast %59 : vector<16x1xf32> to vector<16x4xf32>
    %61 = arith.subf %55, %60 : vector<16x4xf32>
    %62 = arith.mulf %61, %61 : vector<16x4xf32>
    %cst_24 = arith.constant dense<0.000000e+00> : vector<16xf32>
    %63 = vector.multi_reduction <add>, %62, %cst_24 [1] : vector<16x4xf32> to vector<16xf32>
    %64 = vector.shape_cast %63 : vector<16xf32> to vector<16x1xf32>
    %cst_25 = arith.constant 4.000000e+00 : f32
    %65 = vector.broadcast %cst_25 : f32 to vector<16x1xf32>
    %66 = arith.divf %64, %65 : vector<16x1xf32>
    %67 = vector.broadcast %59 : vector<16x1xf32> to vector<16x4xf32>
    %68 = arith.subf %55, %67 : vector<16x4xf32>
    %cst_26 = arith.constant 9.99999974E-6 : f32
    %69 = vector.broadcast %cst_26 : f32 to vector<16x1xf32>
    %70 = arith.addf %66, %69 : vector<16x1xf32>
    %71 = math.rsqrt %70 : vector<16x1xf32>
    %72 = vector.broadcast %71 : vector<16x1xf32> to vector<16x4xf32>
    %73 = arith.mulf %68, %72 : vector<16x4xf32>
    %c120 = arith.constant 120 : index
    %c0_27 = arith.constant 0 : index
    %74 = vector.load %arg1[%c120, %c0_27] : memref<904x128xf32, #tpu.memory_space<vmem>>, vector<1x4xf32>
    %75 = vector.broadcast %74 : vector<1x4xf32> to vector<16x4xf32>
    %76 = arith.mulf %73, %75 : vector<16x4xf32>
    %c128 = arith.constant 128 : index
    %c0_28 = arith.constant 0 : index
    %77 = vector.load %arg1[%c128, %c0_28] : memref<904x128xf32, #tpu.memory_space<vmem>>, vector<1x4xf32>
    %78 = vector.broadcast %77 : vector<1x4xf32> to vector<16x4xf32>
    %79 = arith.addf %76, %78 : vector<16x4xf32>
    %c64 = arith.constant 64 : index
    %c0_29 = arith.constant 0 : index
    %80 = vector.load %arg1[%c64, %c0_29] : memref<904x128xf32, #tpu.memory_space<vmem>>, vector<4x32xf32>
    %cst_30 = arith.constant dense<0.000000e+00> : vector<16x32xf32>
    %81 = tpu.matmul %79, %80, %cst_30 {dimension_numbers = #tpu.dot_dimension_numbers<[1], [0], [0], [1], [0, 0, 1, 1], [], []>} : vector<16x4xf32>, vector<4x32xf32>, vector<16x32xf32> -> vector<16x32xf32>
    %c72 = arith.constant 72 : index
    %c0_31 = arith.constant 0 : index
    %82 = vector.load %arg1[%c72, %c0_31] : memref<904x128xf32, #tpu.memory_space<vmem>>, vector<1x32xf32>
    %83 = vector.broadcast %82 : vector<1x32xf32> to vector<16x32xf32>
    %84 = arith.addf %81, %83 : vector<16x32xf32>
    %cst_32 = arith.constant 0.000000e+00 : f32
    %85 = vector.broadcast %cst_32 : f32 to vector<16x32xf32>
    %86 = arith.maximumf %84, %85 : vector<16x32xf32>
    %c80 = arith.constant 80 : index
    %c0_33 = arith.constant 0 : index
    %87 = vector.load %arg1[%c80, %c0_33] : memref<904x128xf32, #tpu.memory_space<vmem>>, vector<32x4xf32>
    %cst_34 = arith.constant dense<0.000000e+00> : vector<16x4xf32>
    %88 = tpu.matmul %86, %87, %cst_34 {dimension_numbers = #tpu.dot_dimension_numbers<[1], [0], [0], [1], [0, 0, 1, 1], [], []>} : vector<16x32xf32>, vector<32x4xf32>, vector<16x4xf32> -> vector<16x4xf32>
    %c112 = arith.constant 112 : index
    %c0_35 = arith.constant 0 : index
    %89 = vector.load %arg1[%c112, %c0_35] : memref<904x128xf32, #tpu.memory_space<vmem>>, vector<1x4xf32>
    %90 = vector.broadcast %89 : vector<1x4xf32> to vector<16x4xf32>
    %91 = arith.addf %88, %90 : vector<16x4xf32>
    %92 = arith.addf %79, %91 : vector<16x4xf32>
    %cst_36 = arith.constant dense<0.000000e+00> : vector<16xf32>
    %93 = vector.multi_reduction <add>, %92, %cst_36 [1] : vector<16x4xf32> to vector<16xf32>
    %94 = vector.shape_cast %93 : vector<16xf32> to vector<16x1xf32>
    %cst_37 = arith.constant 4.000000e+00 : f32
    %95 = vector.broadcast %cst_37 : f32 to vector<16x1xf32>
    %96 = arith.divf %94, %95 : vector<16x1xf32>
    %97 = vector.broadcast %96 : vector<16x1xf32> to vector<16x4xf32>
    %98 = arith.subf %92, %97 : vector<16x4xf32>
    %99 = arith.mulf %98, %98 : vector<16x4xf32>
    %cst_38 = arith.constant dense<0.000000e+00> : vector<16xf32>
    %100 = vector.multi_reduction <add>, %99, %cst_38 [1] : vector<16x4xf32> to vector<16xf32>
    %101 = vector.shape_cast %100 : vector<16xf32> to vector<16x1xf32>
    %cst_39 = arith.constant 4.000000e+00 : f32
    %102 = vector.broadcast %cst_39 : f32 to vector<16x1xf32>
    %103 = arith.divf %101, %102 : vector<16x1xf32>
    %104 = vector.broadcast %96 : vector<16x1xf32> to vector<16x4xf32>
    %105 = arith.subf %92, %104 : vector<16x4xf32>
    %cst_40 = arith.constant 9.99999974E-6 : f32
    %106 = vector.broadcast %cst_40 : f32 to vector<16x1xf32>
    %107 = arith.addf %103, %106 : vector<16x1xf32>
    %108 = math.rsqrt %107 : vector<16x1xf32>
    %109 = vector.broadcast %108 : vector<16x1xf32> to vector<16x4xf32>
    %110 = arith.mulf %105, %109 : vector<16x4xf32>
    %c136 = arith.constant 136 : index
    %c0_41 = arith.constant 0 : index
    %111 = vector.load %arg1[%c136, %c0_41] : memref<904x128xf32, #tpu.memory_space<vmem>>, vector<1x4xf32>
    %112 = vector.broadcast %111 : vector<1x4xf32> to vector<16x4xf32>
    %113 = arith.mulf %110, %112 : vector<16x4xf32>
    %c144 = arith.constant 144 : index
    %c0_42 = arith.constant 0 : index
    %114 = vector.load %arg1[%c144, %c0_42] : memref<904x128xf32, #tpu.memory_space<vmem>>, vector<1x4xf32>
    %115 = vector.broadcast %114 : vector<1x4xf32> to vector<16x4xf32>
    %116 = arith.addf %113, %115 : vector<16x4xf32>
    %c152 = arith.constant 152 : index
    %c0_43 = arith.constant 0 : index
    %117 = vector.load %arg1[%c152, %c0_43] : memref<904x128xf32, #tpu.memory_space<vmem>>, vector<4x4xf32>
    %cst_44 = arith.constant dense<0.000000e+00> : vector<16x4xf32>
    %118 = tpu.matmul %116, %117, %cst_44 {dimension_numbers = #tpu.dot_dimension_numbers<[1], [0], [0], [1], [0, 0, 1, 1], [], []>} : vector<16x4xf32>, vector<4x4xf32>, vector<16x4xf32> -> vector<16x4xf32>
    %c160 = arith.constant 160 : index
    %c0_45 = arith.constant 0 : index
    %119 = vector.load %arg1[%c160, %c0_45] : memref<904x128xf32, #tpu.memory_space<vmem>>, vector<1x4xf32>
    %120 = vector.broadcast %119 : vector<1x4xf32> to vector<16x4xf32>
    %121 = arith.addf %118, %120 : vector<16x4xf32>
    %c168 = arith.constant 168 : index
    %c0_46 = arith.constant 0 : index
    %122 = vector.load %arg1[%c168, %c0_46] : memref<904x128xf32, #tpu.memory_space<vmem>>, vector<4x4xf32>
    %cst_47 = arith.constant dense<0.000000e+00> : vector<16x4xf32>
    %123 = tpu.matmul %116, %122, %cst_47 {dimension_numbers = #tpu.dot_dimension_numbers<[1], [0], [0], [1], [0, 0, 1, 1], [], []>} : vector<16x4xf32>, vector<4x4xf32>, vector<16x4xf32> -> vector<16x4xf32>
    %c176 = arith.constant 176 : index
    %c0_48 = arith.constant 0 : index
    %124 = vector.load %arg1[%c176, %c0_48] : memref<904x128xf32, #tpu.memory_space<vmem>>, vector<1x4xf32>
    %125 = vector.broadcast %124 : vector<1x4xf32> to vector<16x4xf32>
    %126 = arith.addf %123, %125 : vector<16x4xf32>
    %c184 = arith.constant 184 : index
    %c0_49 = arith.constant 0 : index
    %127 = vector.load %arg1[%c184, %c0_49] : memref<904x128xf32, #tpu.memory_space<vmem>>, vector<4x4xf32>
    %cst_50 = arith.constant dense<0.000000e+00> : vector<16x4xf32>
    %128 = tpu.matmul %116, %127, %cst_50 {dimension_numbers = #tpu.dot_dimension_numbers<[1], [0], [0], [1], [0, 0, 1, 1], [], []>} : vector<16x4xf32>, vector<4x4xf32>, vector<16x4xf32> -> vector<16x4xf32>
    %c192 = arith.constant 192 : index
    %c0_51 = arith.constant 0 : index
    %129 = vector.load %arg1[%c192, %c0_51] : memref<904x128xf32, #tpu.memory_space<vmem>>, vector<1x4xf32>
    %130 = vector.broadcast %129 : vector<1x4xf32> to vector<16x4xf32>
    %131 = arith.addf %128, %130 : vector<16x4xf32>
    %132 = vector.broadcast %4 : vector<1x4xf32> to vector<16x4xf32>
    %133 = arith.mulf %121, %132 : vector<16x4xf32>
    %134 = vector.broadcast %5 : vector<1x4xf32> to vector<16x4xf32>
    %135 = arith.mulf %121, %134 : vector<16x4xf32>
    %136 = tpu.concatenate %133, %135 in 0 : vector<16x4xf32>, vector<16x4xf32> -> vector<32x4xf32>
    %cst_52 = arith.constant dense<0.000000e+00> : vector<32x16xf32>
    %137 = tpu.matmul %136, %126, %cst_52 {dimension_numbers = #tpu.dot_dimension_numbers<[1], [1], [0], [0], [0, 0, 1, 0], [], []>} : vector<32x4xf32>, vector<16x4xf32>, vector<32x16xf32> -> vector<32x16xf32>
    %cst_53 = arith.constant 0.707106769 : f32
    %138 = vector.broadcast %cst_53 : f32 to vector<32x16xf32>
    %139 = arith.mulf %137, %138 : vector<32x16xf32>
    %140 = arith.addf %139, %1 : vector<32x16xf32>
    %cst_54 = arith.constant dense<0xFF800000> : vector<32xf32>
    %141 = vector.multi_reduction <maximumf>, %140, %cst_54 [1] : vector<32x16xf32> to vector<32xf32>
    %142 = vector.shape_cast %141 : vector<32xf32> to vector<32x1xf32>
    %143 = vector.broadcast %142 : vector<32x1xf32> to vector<32x16xf32>
    %144 = arith.subf %140, %143 : vector<32x16xf32>
    %145 = math.exp %144 : vector<32x16xf32>
    %cst_55 = arith.constant dense<0.000000e+00> : vector<32xf32>
    %146 = vector.multi_reduction <add>, %145, %cst_55 [1] : vector<32x16xf32> to vector<32xf32>
    %147 = vector.shape_cast %146 : vector<32xf32> to vector<32x1xf32>
    %148 = tpu.reciprocal %147 {approx = true} : vector<32x1xf32> -> vector<32x1xf32>
    %149 = vector.broadcast %148 : vector<32x1xf32> to vector<32x16xf32>
    %150 = arith.mulf %145, %149 : vector<32x16xf32>
    %cst_56 = arith.constant dense<0.000000e+00> : vector<32x4xf32>
    %151 = tpu.matmul %150, %131, %cst_56 {dimension_numbers = #tpu.dot_dimension_numbers<[1], [0], [0], [1], [0, 0, 1, 1], [], []>} : vector<32x16xf32>, vector<16x4xf32>, vector<32x4xf32> -> vector<32x4xf32>
    %152 = vector.extract_strided_slice %151 {offsets = [0, 0], sizes = [16, 4], strides = [1, 1]} : vector<32x4xf32> to vector<16x4xf32>
    %153 = vector.broadcast %4 : vector<1x4xf32> to vector<16x4xf32>
    %154 = arith.mulf %152, %153 : vector<16x4xf32>
    %155 = vector.extract_strided_slice %151 {offsets = [16, 0], sizes = [16, 4], strides = [1, 1]} : vector<32x4xf32> to vector<16x4xf32>
    %156 = vector.broadcast %5 : vector<1x4xf32> to vector<16x4xf32>
    %157 = arith.mulf %155, %156 : vector<16x4xf32>
    %158 = arith.addf %154, %157 : vector<16x4xf32>
    %c200 = arith.constant 200 : index
    %c0_57 = arith.constant 0 : index
    %159 = vector.load %arg1[%c200, %c0_57] : memref<904x128xf32, #tpu.memory_space<vmem>>, vector<4x4xf32>
    %cst_58 = arith.constant dense<0.000000e+00> : vector<16x4xf32>
    %160 = tpu.matmul %158, %159, %cst_58 {dimension_numbers = #tpu.dot_dimension_numbers<[1], [0], [0], [1], [0, 0, 1, 1], [], []>} : vector<16x4xf32>, vector<4x4xf32>, vector<16x4xf32> -> vector<16x4xf32>
    %c208 = arith.constant 208 : index
    %c0_59 = arith.constant 0 : index
    %161 = vector.load %arg1[%c208, %c0_59] : memref<904x128xf32, #tpu.memory_space<vmem>>, vector<1x4xf32>
    %162 = vector.broadcast %161 : vector<1x4xf32> to vector<16x4xf32>
    %163 = arith.addf %160, %162 : vector<16x4xf32>
    %164 = arith.addf %116, %163 : vector<16x4xf32>
    %cst_60 = arith.constant dense<0.000000e+00> : vector<16xf32>
    %165 = vector.multi_reduction <add>, %164, %cst_60 [1] : vector<16x4xf32> to vector<16xf32>
    %166 = vector.shape_cast %165 : vector<16xf32> to vector<16x1xf32>
    %cst_61 = arith.constant 4.000000e+00 : f32
    %167 = vector.broadcast %cst_61 : f32 to vector<16x1xf32>
    %168 = arith.divf %166, %167 : vector<16x1xf32>
    %169 = vector.broadcast %168 : vector<16x1xf32> to vector<16x4xf32>
    %170 = arith.subf %164, %169 : vector<16x4xf32>
    %171 = arith.mulf %170, %170 : vector<16x4xf32>
    %cst_62 = arith.constant dense<0.000000e+00> : vector<16xf32>
    %172 = vector.multi_reduction <add>, %171, %cst_62 [1] : vector<16x4xf32> to vector<16xf32>
    %173 = vector.shape_cast %172 : vector<16xf32> to vector<16x1xf32>
    %cst_63 = arith.constant 4.000000e+00 : f32
    %174 = vector.broadcast %cst_63 : f32 to vector<16x1xf32>
    %175 = arith.divf %173, %174 : vector<16x1xf32>
    %176 = vector.broadcast %168 : vector<16x1xf32> to vector<16x4xf32>
    %177 = arith.subf %164, %176 : vector<16x4xf32>
    %cst_64 = arith.constant 9.99999974E-6 : f32
    %178 = vector.broadcast %cst_64 : f32 to vector<16x1xf32>
    %179 = arith.addf %175, %178 : vector<16x1xf32>
    %180 = math.rsqrt %179 : vector<16x1xf32>
    %181 = vector.broadcast %180 : vector<16x1xf32> to vector<16x4xf32>
    %182 = arith.mulf %177, %181 : vector<16x4xf32>
    %c272 = arith.constant 272 : index
    %c0_65 = arith.constant 0 : index
    %183 = vector.load %arg1[%c272, %c0_65] : memref<904x128xf32, #tpu.memory_space<vmem>>, vector<1x4xf32>
    %184 = vector.broadcast %183 : vector<1x4xf32> to vector<16x4xf32>
    %185 = arith.mulf %182, %184 : vector<16x4xf32>
    %c280 = arith.constant 280 : index
    %c0_66 = arith.constant 0 : index
    %186 = vector.load %arg1[%c280, %c0_66] : memref<904x128xf32, #tpu.memory_space<vmem>>, vector<1x4xf32>
    %187 = vector.broadcast %186 : vector<1x4xf32> to vector<16x4xf32>
    %188 = arith.addf %185, %187 : vector<16x4xf32>
    %c216 = arith.constant 216 : index
    %c0_67 = arith.constant 0 : index
    %189 = vector.load %arg1[%c216, %c0_67] : memref<904x128xf32, #tpu.memory_space<vmem>>, vector<4x32xf32>
    %cst_68 = arith.constant dense<0.000000e+00> : vector<16x32xf32>
    %190 = tpu.matmul %188, %189, %cst_68 {dimension_numbers = #tpu.dot_dimension_numbers<[1], [0], [0], [1], [0, 0, 1, 1], [], []>} : vector<16x4xf32>, vector<4x32xf32>, vector<16x32xf32> -> vector<16x32xf32>
    %c224 = arith.constant 224 : index
    %c0_69 = arith.constant 0 : index
    %191 = vector.load %arg1[%c224, %c0_69] : memref<904x128xf32, #tpu.memory_space<vmem>>, vector<1x32xf32>
    %192 = vector.broadcast %191 : vector<1x32xf32> to vector<16x32xf32>
    %193 = arith.addf %190, %192 : vector<16x32xf32>
    %cst_70 = arith.constant 0.000000e+00 : f32
    %194 = vector.broadcast %cst_70 : f32 to vector<16x32xf32>
    %195 = arith.maximumf %193, %194 : vector<16x32xf32>
    %c232 = arith.constant 232 : index
    %c0_71 = arith.constant 0 : index
    %196 = vector.load %arg1[%c232, %c0_71] : memref<904x128xf32, #tpu.memory_space<vmem>>, vector<32x4xf32>
    %cst_72 = arith.constant dense<0.000000e+00> : vector<16x4xf32>
    %197 = tpu.matmul %195, %196, %cst_72 {dimension_numbers = #tpu.dot_dimension_numbers<[1], [0], [0], [1], [0, 0, 1, 1], [], []>} : vector<16x32xf32>, vector<32x4xf32>, vector<16x4xf32> -> vector<16x4xf32>
    %c264 = arith.constant 264 : index
    %c0_73 = arith.constant 0 : index
    %198 = vector.load %arg1[%c264, %c0_73] : memref<904x128xf32, #tpu.memory_space<vmem>>, vector<1x4xf32>
    %199 = vector.broadcast %198 : vector<1x4xf32> to vector<16x4xf32>
    %200 = arith.addf %197, %199 : vector<16x4xf32>
    %201 = arith.addf %188, %200 : vector<16x4xf32>
    %cst_74 = arith.constant dense<0.000000e+00> : vector<16xf32>
    %202 = vector.multi_reduction <add>, %201, %cst_74 [1] : vector<16x4xf32> to vector<16xf32>
    %203 = vector.shape_cast %202 : vector<16xf32> to vector<16x1xf32>
    %cst_75 = arith.constant 4.000000e+00 : f32
    %204 = vector.broadcast %cst_75 : f32 to vector<16x1xf32>
    %205 = arith.divf %203, %204 : vector<16x1xf32>
    %206 = vector.broadcast %205 : vector<16x1xf32> to vector<16x4xf32>
    %207 = arith.subf %201, %206 : vector<16x4xf32>
    %208 = arith.mulf %207, %207 : vector<16x4xf32>
    %cst_76 = arith.constant dense<0.000000e+00> : vector<16xf32>
    %209 = vector.multi_reduction <add>, %208, %cst_76 [1] : vector<16x4xf32> to vector<16xf32>
    %210 = vector.shape_cast %209 : vector<16xf32> to vector<16x1xf32>
    %cst_77 = arith.constant 4.000000e+00 : f32
    %211 = vector.broadcast %cst_77 : f32 to vector<16x1xf32>
    %212 = arith.divf %210, %211 : vector<16x1xf32>
    %213 = vector.broadcast %205 : vector<16x1xf32> to vector<16x4xf32>
    %214 = arith.subf %201, %213 : vector<16x4xf32>
    %cst_78 = arith.constant 9.99999974E-6 : f32
    %215 = vector.broadcast %cst_78 : f32 to vector<16x1xf32>
    %216 = arith.addf %212, %215 : vector<16x1xf32>
    %217 = math.rsqrt %216 : vector<16x1xf32>
    %218 = vector.broadcast %217 : vector<16x1xf32> to vector<16x4xf32>
    %219 = arith.mulf %214, %218 : vector<16x4xf32>
    %c288 = arith.constant 288 : index
    %c0_79 = arith.constant 0 : index
    %220 = vector.load %arg1[%c288, %c0_79] : memref<904x128xf32, #tpu.memory_space<vmem>>, vector<1x4xf32>
    %221 = vector.broadcast %220 : vector<1x4xf32> to vector<16x4xf32>
    %222 = arith.mulf %219, %221 : vector<16x4xf32>
    %c296 = arith.constant 296 : index
    %c0_80 = arith.constant 0 : index
    %223 = vector.load %arg1[%c296, %c0_80] : memref<904x128xf32, #tpu.memory_space<vmem>>, vector<1x4xf32>
    %224 = vector.broadcast %223 : vector<1x4xf32> to vector<16x4xf32>
    %225 = arith.addf %222, %224 : vector<16x4xf32>
    %cst_81 = arith.constant dense<0.000000e+00> : vector<16xf32>
    %226 = vector.multi_reduction <add>, %225, %cst_81 [1] : vector<16x4xf32> to vector<16xf32>
    %227 = vector.shape_cast %226 : vector<16xf32> to vector<16x1xf32>
    %cst_82 = arith.constant 4.000000e+00 : f32
    %228 = vector.broadcast %cst_82 : f32 to vector<16x1xf32>
    %229 = arith.divf %227, %228 : vector<16x1xf32>
    %230 = vector.broadcast %229 : vector<16x1xf32> to vector<16x4xf32>
    %231 = arith.subf %225, %230 : vector<16x4xf32>
    %232 = arith.mulf %231, %231 : vector<16x4xf32>
    %cst_83 = arith.constant dense<0.000000e+00> : vector<16xf32>
    %233 = vector.multi_reduction <add>, %232, %cst_83 [1] : vector<16x4xf32> to vector<16xf32>
    %234 = vector.shape_cast %233 : vector<16xf32> to vector<16x1xf32>
    %cst_84 = arith.constant 4.000000e+00 : f32
    %235 = vector.broadcast %cst_84 : f32 to vector<16x1xf32>
    %236 = arith.divf %234, %235 : vector<16x1xf32>
    %237 = vector.broadcast %229 : vector<16x1xf32> to vector<16x4xf32>
    %238 = arith.subf %225, %237 : vector<16x4xf32>
    %cst_85 = arith.constant 9.99999974E-6 : f32
    %239 = vector.broadcast %cst_85 : f32 to vector<16x1xf32>
    %240 = arith.addf %236, %239 : vector<16x1xf32>
    %241 = math.rsqrt %240 : vector<16x1xf32>
    %242 = vector.broadcast %241 : vector<16x1xf32> to vector<16x4xf32>
    %243 = arith.mulf %238, %242 : vector<16x4xf32>
    %c768 = arith.constant 768 : index
    %c0_86 = arith.constant 0 : index
    %244 = vector.load %arg1[%c768, %c0_86] : memref<904x128xf32, #tpu.memory_space<vmem>>, vector<1x4xf32>
    %245 = vector.broadcast %244 : vector<1x4xf32> to vector<16x4xf32>
    %246 = arith.mulf %243, %245 : vector<16x4xf32>
    %c776 = arith.constant 776 : index
    %c0_87 = arith.constant 0 : index
    %247 = vector.load %arg1[%c776, %c0_87] : memref<904x128xf32, #tpu.memory_space<vmem>>, vector<1x4xf32>
    %248 = vector.broadcast %247 : vector<1x4xf32> to vector<16x4xf32>
    %249 = arith.addf %246, %248 : vector<16x4xf32>
    %c304 = arith.constant 304 : index
    %c0_88 = arith.constant 0 : index
    %250 = vector.load %arg1[%c304, %c0_88] : memref<904x128xf32, #tpu.memory_space<vmem>>, vector<4x4xf32>
    %cst_89 = arith.constant dense<0.000000e+00> : vector<16x4xf32>
    %251 = tpu.matmul %7, %250, %cst_89 {dimension_numbers = #tpu.dot_dimension_numbers<[1], [0], [0], [1], [0, 0, 1, 1], [], []>} : vector<16x4xf32>, vector<4x4xf32>, vector<16x4xf32> -> vector<16x4xf32>
    %c312 = arith.constant 312 : index
    %c0_90 = arith.constant 0 : index
    %252 = vector.load %arg1[%c312, %c0_90] : memref<904x128xf32, #tpu.memory_space<vmem>>, vector<1x4xf32>
    %253 = vector.broadcast %252 : vector<1x4xf32> to vector<16x4xf32>
    %254 = arith.addf %251, %253 : vector<16x4xf32>
    %c320 = arith.constant 320 : index
    %c0_91 = arith.constant 0 : index
    %255 = vector.load %arg1[%c320, %c0_91] : memref<904x128xf32, #tpu.memory_space<vmem>>, vector<4x4xf32>
    %cst_92 = arith.constant dense<0.000000e+00> : vector<16x4xf32>
    %256 = tpu.matmul %7, %255, %cst_92 {dimension_numbers = #tpu.dot_dimension_numbers<[1], [0], [0], [1], [0, 0, 1, 1], [], []>} : vector<16x4xf32>, vector<4x4xf32>, vector<16x4xf32> -> vector<16x4xf32>
    %c328 = arith.constant 328 : index
    %c0_93 = arith.constant 0 : index
    %257 = vector.load %arg1[%c328, %c0_93] : memref<904x128xf32, #tpu.memory_space<vmem>>, vector<1x4xf32>
    %258 = vector.broadcast %257 : vector<1x4xf32> to vector<16x4xf32>
    %259 = arith.addf %256, %258 : vector<16x4xf32>
    %c336 = arith.constant 336 : index
    %c0_94 = arith.constant 0 : index
    %260 = vector.load %arg1[%c336, %c0_94] : memref<904x128xf32, #tpu.memory_space<vmem>>, vector<4x4xf32>
    %cst_95 = arith.constant dense<0.000000e+00> : vector<16x4xf32>
    %261 = tpu.matmul %7, %260, %cst_95 {dimension_numbers = #tpu.dot_dimension_numbers<[1], [0], [0], [1], [0, 0, 1, 1], [], []>} : vector<16x4xf32>, vector<4x4xf32>, vector<16x4xf32> -> vector<16x4xf32>
    %c344 = arith.constant 344 : index
    %c0_96 = arith.constant 0 : index
    %262 = vector.load %arg1[%c344, %c0_96] : memref<904x128xf32, #tpu.memory_space<vmem>>, vector<1x4xf32>
    %263 = vector.broadcast %262 : vector<1x4xf32> to vector<16x4xf32>
    %264 = arith.addf %261, %263 : vector<16x4xf32>
    %265 = vector.broadcast %4 : vector<1x4xf32> to vector<16x4xf32>
    %266 = arith.mulf %254, %265 : vector<16x4xf32>
    %267 = vector.broadcast %5 : vector<1x4xf32> to vector<16x4xf32>
    %268 = arith.mulf %254, %267 : vector<16x4xf32>
    %269 = tpu.concatenate %266, %268 in 0 : vector<16x4xf32>, vector<16x4xf32> -> vector<32x4xf32>
    %cst_97 = arith.constant dense<0.000000e+00> : vector<32x16xf32>
    %270 = tpu.matmul %269, %259, %cst_97 {dimension_numbers = #tpu.dot_dimension_numbers<[1], [1], [0], [0], [0, 0, 1, 0], [], []>} : vector<32x4xf32>, vector<16x4xf32>, vector<32x16xf32> -> vector<32x16xf32>
    %cst_98 = arith.constant 0.707106769 : f32
    %271 = vector.broadcast %cst_98 : f32 to vector<32x16xf32>
    %272 = arith.mulf %270, %271 : vector<32x16xf32>
    %273 = arith.addf %272, %1 : vector<32x16xf32>
    %cst_99 = arith.constant dense<0xFF800000> : vector<32xf32>
    %274 = vector.multi_reduction <maximumf>, %273, %cst_99 [1] : vector<32x16xf32> to vector<32xf32>
    %275 = vector.shape_cast %274 : vector<32xf32> to vector<32x1xf32>
    %276 = vector.broadcast %275 : vector<32x1xf32> to vector<32x16xf32>
    %277 = arith.subf %273, %276 : vector<32x16xf32>
    %278 = math.exp %277 : vector<32x16xf32>
    %cst_100 = arith.constant dense<0.000000e+00> : vector<32xf32>
    %279 = vector.multi_reduction <add>, %278, %cst_100 [1] : vector<32x16xf32> to vector<32xf32>
    %280 = vector.shape_cast %279 : vector<32xf32> to vector<32x1xf32>
    %281 = tpu.reciprocal %280 {approx = true} : vector<32x1xf32> -> vector<32x1xf32>
    %282 = vector.broadcast %281 : vector<32x1xf32> to vector<32x16xf32>
    %283 = arith.mulf %278, %282 : vector<32x16xf32>
    %cst_101 = arith.constant dense<0.000000e+00> : vector<32x4xf32>
    %284 = tpu.matmul %283, %264, %cst_101 {dimension_numbers = #tpu.dot_dimension_numbers<[1], [0], [0], [1], [0, 0, 1, 1], [], []>} : vector<32x16xf32>, vector<16x4xf32>, vector<32x4xf32> -> vector<32x4xf32>
    %285 = vector.extract_strided_slice %284 {offsets = [0, 0], sizes = [16, 4], strides = [1, 1]} : vector<32x4xf32> to vector<16x4xf32>
    %286 = vector.broadcast %4 : vector<1x4xf32> to vector<16x4xf32>
    %287 = arith.mulf %285, %286 : vector<16x4xf32>
    %288 = vector.extract_strided_slice %284 {offsets = [16, 0], sizes = [16, 4], strides = [1, 1]} : vector<32x4xf32> to vector<16x4xf32>
    %289 = vector.broadcast %5 : vector<1x4xf32> to vector<16x4xf32>
    %290 = arith.mulf %288, %289 : vector<16x4xf32>
    %291 = arith.addf %287, %290 : vector<16x4xf32>
    %c352 = arith.constant 352 : index
    %c0_102 = arith.constant 0 : index
    %292 = vector.load %arg1[%c352, %c0_102] : memref<904x128xf32, #tpu.memory_space<vmem>>, vector<4x4xf32>
    %cst_103 = arith.constant dense<0.000000e+00> : vector<16x4xf32>
    %293 = tpu.matmul %291, %292, %cst_103 {dimension_numbers = #tpu.dot_dimension_numbers<[1], [0], [0], [1], [0, 0, 1, 1], [], []>} : vector<16x4xf32>, vector<4x4xf32>, vector<16x4xf32> -> vector<16x4xf32>
    %c360 = arith.constant 360 : index
    %c0_104 = arith.constant 0 : index
    %294 = vector.load %arg1[%c360, %c0_104] : memref<904x128xf32, #tpu.memory_space<vmem>>, vector<1x4xf32>
    %295 = vector.broadcast %294 : vector<1x4xf32> to vector<16x4xf32>
    %296 = arith.addf %293, %295 : vector<16x4xf32>
    %297 = arith.addf %7, %296 : vector<16x4xf32>
    %cst_105 = arith.constant dense<0.000000e+00> : vector<16xf32>
    %298 = vector.multi_reduction <add>, %297, %cst_105 [1] : vector<16x4xf32> to vector<16xf32>
    %299 = vector.shape_cast %298 : vector<16xf32> to vector<16x1xf32>
    %cst_106 = arith.constant 4.000000e+00 : f32
    %300 = vector.broadcast %cst_106 : f32 to vector<16x1xf32>
    %301 = arith.divf %299, %300 : vector<16x1xf32>
    %302 = vector.broadcast %301 : vector<16x1xf32> to vector<16x4xf32>
    %303 = arith.subf %297, %302 : vector<16x4xf32>
    %304 = arith.mulf %303, %303 : vector<16x4xf32>
    %cst_107 = arith.constant dense<0.000000e+00> : vector<16xf32>
    %305 = vector.multi_reduction <add>, %304, %cst_107 [1] : vector<16x4xf32> to vector<16xf32>
    %306 = vector.shape_cast %305 : vector<16xf32> to vector<16x1xf32>
    %cst_108 = arith.constant 4.000000e+00 : f32
    %307 = vector.broadcast %cst_108 : f32 to vector<16x1xf32>
    %308 = arith.divf %306, %307 : vector<16x1xf32>
    %309 = vector.broadcast %301 : vector<16x1xf32> to vector<16x4xf32>
    %310 = arith.subf %297, %309 : vector<16x4xf32>
    %cst_109 = arith.constant 9.99999974E-6 : f32
    %311 = vector.broadcast %cst_109 : f32 to vector<16x1xf32>
    %312 = arith.addf %308, %311 : vector<16x1xf32>
    %313 = math.rsqrt %312 : vector<16x1xf32>
    %314 = vector.broadcast %313 : vector<16x1xf32> to vector<16x4xf32>
    %315 = arith.mulf %310, %314 : vector<16x4xf32>
    %c488 = arith.constant 488 : index
    %c0_110 = arith.constant 0 : index
    %316 = vector.load %arg1[%c488, %c0_110] : memref<904x128xf32, #tpu.memory_space<vmem>>, vector<1x4xf32>
    %317 = vector.broadcast %316 : vector<1x4xf32> to vector<16x4xf32>
    %318 = arith.mulf %315, %317 : vector<16x4xf32>
    %c496 = arith.constant 496 : index
    %c0_111 = arith.constant 0 : index
    %319 = vector.load %arg1[%c496, %c0_111] : memref<904x128xf32, #tpu.memory_space<vmem>>, vector<1x4xf32>
    %320 = vector.broadcast %319 : vector<1x4xf32> to vector<16x4xf32>
    %321 = arith.addf %318, %320 : vector<16x4xf32>
    %c368 = arith.constant 368 : index
    %c0_112 = arith.constant 0 : index
    %322 = vector.load %arg1[%c368, %c0_112] : memref<904x128xf32, #tpu.memory_space<vmem>>, vector<4x4xf32>
    %cst_113 = arith.constant dense<0.000000e+00> : vector<16x4xf32>
    %323 = tpu.matmul %321, %322, %cst_113 {dimension_numbers = #tpu.dot_dimension_numbers<[1], [0], [0], [1], [0, 0, 1, 1], [], []>} : vector<16x4xf32>, vector<4x4xf32>, vector<16x4xf32> -> vector<16x4xf32>
    %c376 = arith.constant 376 : index
    %c0_114 = arith.constant 0 : index
    %324 = vector.load %arg1[%c376, %c0_114] : memref<904x128xf32, #tpu.memory_space<vmem>>, vector<1x4xf32>
    %325 = vector.broadcast %324 : vector<1x4xf32> to vector<16x4xf32>
    %326 = arith.addf %323, %325 : vector<16x4xf32>
    %c384 = arith.constant 384 : index
    %c0_115 = arith.constant 0 : index
    %327 = vector.load %arg1[%c384, %c0_115] : memref<904x128xf32, #tpu.memory_space<vmem>>, vector<4x4xf32>
    %cst_116 = arith.constant dense<0.000000e+00> : vector<16x4xf32>
    %328 = tpu.matmul %249, %327, %cst_116 {dimension_numbers = #tpu.dot_dimension_numbers<[1], [0], [0], [1], [0, 0, 1, 1], [], []>} : vector<16x4xf32>, vector<4x4xf32>, vector<16x4xf32> -> vector<16x4xf32>
    %c392 = arith.constant 392 : index
    %c0_117 = arith.constant 0 : index
    %329 = vector.load %arg1[%c392, %c0_117] : memref<904x128xf32, #tpu.memory_space<vmem>>, vector<1x4xf32>
    %330 = vector.broadcast %329 : vector<1x4xf32> to vector<16x4xf32>
    %331 = arith.addf %328, %330 : vector<16x4xf32>
    %c400 = arith.constant 400 : index
    %c0_118 = arith.constant 0 : index
    %332 = vector.load %arg1[%c400, %c0_118] : memref<904x128xf32, #tpu.memory_space<vmem>>, vector<4x4xf32>
    %cst_119 = arith.constant dense<0.000000e+00> : vector<16x4xf32>
    %333 = tpu.matmul %249, %332, %cst_119 {dimension_numbers = #tpu.dot_dimension_numbers<[1], [0], [0], [1], [0, 0, 1, 1], [], []>} : vector<16x4xf32>, vector<4x4xf32>, vector<16x4xf32> -> vector<16x4xf32>
    %c408 = arith.constant 408 : index
    %c0_120 = arith.constant 0 : index
    %334 = vector.load %arg1[%c408, %c0_120] : memref<904x128xf32, #tpu.memory_space<vmem>>, vector<1x4xf32>
    %335 = vector.broadcast %334 : vector<1x4xf32> to vector<16x4xf32>
    %336 = arith.addf %333, %335 : vector<16x4xf32>
    %337 = vector.broadcast %4 : vector<1x4xf32> to vector<16x4xf32>
    %338 = arith.mulf %326, %337 : vector<16x4xf32>
    %339 = vector.broadcast %5 : vector<1x4xf32> to vector<16x4xf32>
    %340 = arith.mulf %326, %339 : vector<16x4xf32>
    %341 = tpu.concatenate %338, %340 in 0 : vector<16x4xf32>, vector<16x4xf32> -> vector<32x4xf32>
    %cst_121 = arith.constant dense<0.000000e+00> : vector<32x16xf32>
    %342 = tpu.matmul %341, %331, %cst_121 {dimension_numbers = #tpu.dot_dimension_numbers<[1], [1], [0], [0], [0, 0, 1, 0], [], []>} : vector<32x4xf32>, vector<16x4xf32>, vector<32x16xf32> -> vector<32x16xf32>
    %cst_122 = arith.constant 0.707106769 : f32
    %343 = vector.broadcast %cst_122 : f32 to vector<32x16xf32>
    %344 = arith.mulf %342, %343 : vector<32x16xf32>
    %345 = arith.addf %344, %2 : vector<32x16xf32>
    %cst_123 = arith.constant dense<0xFF800000> : vector<32xf32>
    %346 = vector.multi_reduction <maximumf>, %345, %cst_123 [1] : vector<32x16xf32> to vector<32xf32>
    %347 = vector.shape_cast %346 : vector<32xf32> to vector<32x1xf32>
    %348 = vector.broadcast %347 : vector<32x1xf32> to vector<32x16xf32>
    %349 = arith.subf %345, %348 : vector<32x16xf32>
    %350 = math.exp %349 : vector<32x16xf32>
    %cst_124 = arith.constant dense<0.000000e+00> : vector<32xf32>
    %351 = vector.multi_reduction <add>, %350, %cst_124 [1] : vector<32x16xf32> to vector<32xf32>
    %352 = vector.shape_cast %351 : vector<32xf32> to vector<32x1xf32>
    %353 = tpu.reciprocal %352 {approx = true} : vector<32x1xf32> -> vector<32x1xf32>
    %354 = vector.broadcast %353 : vector<32x1xf32> to vector<32x16xf32>
    %355 = arith.mulf %350, %354 : vector<32x16xf32>
    %cst_125 = arith.constant dense<0.000000e+00> : vector<32x4xf32>
    %356 = tpu.matmul %355, %336, %cst_125 {dimension_numbers = #tpu.dot_dimension_numbers<[1], [0], [0], [1], [0, 0, 1, 1], [], []>} : vector<32x16xf32>, vector<16x4xf32>, vector<32x4xf32> -> vector<32x4xf32>
    %357 = vector.extract_strided_slice %356 {offsets = [0, 0], sizes = [16, 4], strides = [1, 1]} : vector<32x4xf32> to vector<16x4xf32>
    %358 = vector.broadcast %4 : vector<1x4xf32> to vector<16x4xf32>
    %359 = arith.mulf %357, %358 : vector<16x4xf32>
    %360 = vector.extract_strided_slice %356 {offsets = [16, 0], sizes = [16, 4], strides = [1, 1]} : vector<32x4xf32> to vector<16x4xf32>
    %361 = vector.broadcast %5 : vector<1x4xf32> to vector<16x4xf32>
    %362 = arith.mulf %360, %361 : vector<16x4xf32>
    %363 = arith.addf %359, %362 : vector<16x4xf32>
    %c416 = arith.constant 416 : index
    %c0_126 = arith.constant 0 : index
    %364 = vector.load %arg1[%c416, %c0_126] : memref<904x128xf32, #tpu.memory_space<vmem>>, vector<4x4xf32>
    %cst_127 = arith.constant dense<0.000000e+00> : vector<16x4xf32>
    %365 = tpu.matmul %363, %364, %cst_127 {dimension_numbers = #tpu.dot_dimension_numbers<[1], [0], [0], [1], [0, 0, 1, 1], [], []>} : vector<16x4xf32>, vector<4x4xf32>, vector<16x4xf32> -> vector<16x4xf32>
    %c424 = arith.constant 424 : index
    %c0_128 = arith.constant 0 : index
    %366 = vector.load %arg1[%c424, %c0_128] : memref<904x128xf32, #tpu.memory_space<vmem>>, vector<1x4xf32>
    %367 = vector.broadcast %366 : vector<1x4xf32> to vector<16x4xf32>
    %368 = arith.addf %365, %367 : vector<16x4xf32>
    %369 = arith.addf %321, %368 : vector<16x4xf32>
    %cst_129 = arith.constant dense<0.000000e+00> : vector<16xf32>
    %370 = vector.multi_reduction <add>, %369, %cst_129 [1] : vector<16x4xf32> to vector<16xf32>
    %371 = vector.shape_cast %370 : vector<16xf32> to vector<16x1xf32>
    %cst_130 = arith.constant 4.000000e+00 : f32
    %372 = vector.broadcast %cst_130 : f32 to vector<16x1xf32>
    %373 = arith.divf %371, %372 : vector<16x1xf32>
    %374 = vector.broadcast %373 : vector<16x1xf32> to vector<16x4xf32>
    %375 = arith.subf %369, %374 : vector<16x4xf32>
    %376 = arith.mulf %375, %375 : vector<16x4xf32>
    %cst_131 = arith.constant dense<0.000000e+00> : vector<16xf32>
    %377 = vector.multi_reduction <add>, %376, %cst_131 [1] : vector<16x4xf32> to vector<16xf32>
    %378 = vector.shape_cast %377 : vector<16xf32> to vector<16x1xf32>
    %cst_132 = arith.constant 4.000000e+00 : f32
    %379 = vector.broadcast %cst_132 : f32 to vector<16x1xf32>
    %380 = arith.divf %378, %379 : vector<16x1xf32>
    %381 = vector.broadcast %373 : vector<16x1xf32> to vector<16x4xf32>
    %382 = arith.subf %369, %381 : vector<16x4xf32>
    %cst_133 = arith.constant 9.99999974E-6 : f32
    %383 = vector.broadcast %cst_133 : f32 to vector<16x1xf32>
    %384 = arith.addf %380, %383 : vector<16x1xf32>
    %385 = math.rsqrt %384 : vector<16x1xf32>
    %386 = vector.broadcast %385 : vector<16x1xf32> to vector<16x4xf32>
    %387 = arith.mulf %382, %386 : vector<16x4xf32>
    %c504 = arith.constant 504 : index
    %c0_134 = arith.constant 0 : index
    %388 = vector.load %arg1[%c504, %c0_134] : memref<904x128xf32, #tpu.memory_space<vmem>>, vector<1x4xf32>
    %389 = vector.broadcast %388 : vector<1x4xf32> to vector<16x4xf32>
    %390 = arith.mulf %387, %389 : vector<16x4xf32>
    %c512 = arith.constant 512 : index
    %c0_135 = arith.constant 0 : index
    %391 = vector.load %arg1[%c512, %c0_135] : memref<904x128xf32, #tpu.memory_space<vmem>>, vector<1x4xf32>
    %392 = vector.broadcast %391 : vector<1x4xf32> to vector<16x4xf32>
    %393 = arith.addf %390, %392 : vector<16x4xf32>
    %c432 = arith.constant 432 : index
    %c0_136 = arith.constant 0 : index
    %394 = vector.load %arg1[%c432, %c0_136] : memref<904x128xf32, #tpu.memory_space<vmem>>, vector<4x32xf32>
    %cst_137 = arith.constant dense<0.000000e+00> : vector<16x32xf32>
    %395 = tpu.matmul %393, %394, %cst_137 {dimension_numbers = #tpu.dot_dimension_numbers<[1], [0], [0], [1], [0, 0, 1, 1], [], []>} : vector<16x4xf32>, vector<4x32xf32>, vector<16x32xf32> -> vector<16x32xf32>
    %c440 = arith.constant 440 : index
    %c0_138 = arith.constant 0 : index
    %396 = vector.load %arg1[%c440, %c0_138] : memref<904x128xf32, #tpu.memory_space<vmem>>, vector<1x32xf32>
    %397 = vector.broadcast %396 : vector<1x32xf32> to vector<16x32xf32>
    %398 = arith.addf %395, %397 : vector<16x32xf32>
    %cst_139 = arith.constant 0.000000e+00 : f32
    %399 = vector.broadcast %cst_139 : f32 to vector<16x32xf32>
    %400 = arith.maximumf %398, %399 : vector<16x32xf32>
    %c448 = arith.constant 448 : index
    %c0_140 = arith.constant 0 : index
    %401 = vector.load %arg1[%c448, %c0_140] : memref<904x128xf32, #tpu.memory_space<vmem>>, vector<32x4xf32>
    %cst_141 = arith.constant dense<0.000000e+00> : vector<16x4xf32>
    %402 = tpu.matmul %400, %401, %cst_141 {dimension_numbers = #tpu.dot_dimension_numbers<[1], [0], [0], [1], [0, 0, 1, 1], [], []>} : vector<16x32xf32>, vector<32x4xf32>, vector<16x4xf32> -> vector<16x4xf32>
    %c480 = arith.constant 480 : index
    %c0_142 = arith.constant 0 : index
    %403 = vector.load %arg1[%c480, %c0_142] : memref<904x128xf32, #tpu.memory_space<vmem>>, vector<1x4xf32>
    %404 = vector.broadcast %403 : vector<1x4xf32> to vector<16x4xf32>
    %405 = arith.addf %402, %404 : vector<16x4xf32>
    %406 = arith.addf %393, %405 : vector<16x4xf32>
    %cst_143 = arith.constant dense<0.000000e+00> : vector<16xf32>
    %407 = vector.multi_reduction <add>, %406, %cst_143 [1] : vector<16x4xf32> to vector<16xf32>
    %408 = vector.shape_cast %407 : vector<16xf32> to vector<16x1xf32>
    %cst_144 = arith.constant 4.000000e+00 : f32
    %409 = vector.broadcast %cst_144 : f32 to vector<16x1xf32>
    %410 = arith.divf %408, %409 : vector<16x1xf32>
    %411 = vector.broadcast %410 : vector<16x1xf32> to vector<16x4xf32>
    %412 = arith.subf %406, %411 : vector<16x4xf32>
    %413 = arith.mulf %412, %412 : vector<16x4xf32>
    %cst_145 = arith.constant dense<0.000000e+00> : vector<16xf32>
    %414 = vector.multi_reduction <add>, %413, %cst_145 [1] : vector<16x4xf32> to vector<16xf32>
    %415 = vector.shape_cast %414 : vector<16xf32> to vector<16x1xf32>
    %cst_146 = arith.constant 4.000000e+00 : f32
    %416 = vector.broadcast %cst_146 : f32 to vector<16x1xf32>
    %417 = arith.divf %415, %416 : vector<16x1xf32>
    %418 = vector.broadcast %410 : vector<16x1xf32> to vector<16x4xf32>
    %419 = arith.subf %406, %418 : vector<16x4xf32>
    %cst_147 = arith.constant 9.99999974E-6 : f32
    %420 = vector.broadcast %cst_147 : f32 to vector<16x1xf32>
    %421 = arith.addf %417, %420 : vector<16x1xf32>
    %422 = math.rsqrt %421 : vector<16x1xf32>
    %423 = vector.broadcast %422 : vector<16x1xf32> to vector<16x4xf32>
    %424 = arith.mulf %419, %423 : vector<16x4xf32>
    %c520 = arith.constant 520 : index
    %c0_148 = arith.constant 0 : index
    %425 = vector.load %arg1[%c520, %c0_148] : memref<904x128xf32, #tpu.memory_space<vmem>>, vector<1x4xf32>
    %426 = vector.broadcast %425 : vector<1x4xf32> to vector<16x4xf32>
    %427 = arith.mulf %424, %426 : vector<16x4xf32>
    %c528 = arith.constant 528 : index
    %c0_149 = arith.constant 0 : index
    %428 = vector.load %arg1[%c528, %c0_149] : memref<904x128xf32, #tpu.memory_space<vmem>>, vector<1x4xf32>
    %429 = vector.broadcast %428 : vector<1x4xf32> to vector<16x4xf32>
    %430 = arith.addf %427, %429 : vector<16x4xf32>
    %c536 = arith.constant 536 : index
    %c0_150 = arith.constant 0 : index
    %431 = vector.load %arg1[%c536, %c0_150] : memref<904x128xf32, #tpu.memory_space<vmem>>, vector<4x4xf32>
    %cst_151 = arith.constant dense<0.000000e+00> : vector<16x4xf32>
    %432 = tpu.matmul %430, %431, %cst_151 {dimension_numbers = #tpu.dot_dimension_numbers<[1], [0], [0], [1], [0, 0, 1, 1], [], []>} : vector<16x4xf32>, vector<4x4xf32>, vector<16x4xf32> -> vector<16x4xf32>
    %c544 = arith.constant 544 : index
    %c0_152 = arith.constant 0 : index
    %433 = vector.load %arg1[%c544, %c0_152] : memref<904x128xf32, #tpu.memory_space<vmem>>, vector<1x4xf32>
    %434 = vector.broadcast %433 : vector<1x4xf32> to vector<16x4xf32>
    %435 = arith.addf %432, %434 : vector<16x4xf32>
    %c552 = arith.constant 552 : index
    %c0_153 = arith.constant 0 : index
    %436 = vector.load %arg1[%c552, %c0_153] : memref<904x128xf32, #tpu.memory_space<vmem>>, vector<4x4xf32>
    %cst_154 = arith.constant dense<0.000000e+00> : vector<16x4xf32>
    %437 = tpu.matmul %430, %436, %cst_154 {dimension_numbers = #tpu.dot_dimension_numbers<[1], [0], [0], [1], [0, 0, 1, 1], [], []>} : vector<16x4xf32>, vector<4x4xf32>, vector<16x4xf32> -> vector<16x4xf32>
    %c560 = arith.constant 560 : index
    %c0_155 = arith.constant 0 : index
    %438 = vector.load %arg1[%c560, %c0_155] : memref<904x128xf32, #tpu.memory_space<vmem>>, vector<1x4xf32>
    %439 = vector.broadcast %438 : vector<1x4xf32> to vector<16x4xf32>
    %440 = arith.addf %437, %439 : vector<16x4xf32>
    %c568 = arith.constant 568 : index
    %c0_156 = arith.constant 0 : index
    %441 = vector.load %arg1[%c568, %c0_156] : memref<904x128xf32, #tpu.memory_space<vmem>>, vector<4x4xf32>
    %cst_157 = arith.constant dense<0.000000e+00> : vector<16x4xf32>
    %442 = tpu.matmul %430, %441, %cst_157 {dimension_numbers = #tpu.dot_dimension_numbers<[1], [0], [0], [1], [0, 0, 1, 1], [], []>} : vector<16x4xf32>, vector<4x4xf32>, vector<16x4xf32> -> vector<16x4xf32>
    %c576 = arith.constant 576 : index
    %c0_158 = arith.constant 0 : index
    %443 = vector.load %arg1[%c576, %c0_158] : memref<904x128xf32, #tpu.memory_space<vmem>>, vector<1x4xf32>
    %444 = vector.broadcast %443 : vector<1x4xf32> to vector<16x4xf32>
    %445 = arith.addf %442, %444 : vector<16x4xf32>
    %446 = vector.broadcast %4 : vector<1x4xf32> to vector<16x4xf32>
    %447 = arith.mulf %435, %446 : vector<16x4xf32>
    %448 = vector.broadcast %5 : vector<1x4xf32> to vector<16x4xf32>
    %449 = arith.mulf %435, %448 : vector<16x4xf32>
    %450 = tpu.concatenate %447, %449 in 0 : vector<16x4xf32>, vector<16x4xf32> -> vector<32x4xf32>
    %cst_159 = arith.constant dense<0.000000e+00> : vector<32x16xf32>
    %451 = tpu.matmul %450, %440, %cst_159 {dimension_numbers = #tpu.dot_dimension_numbers<[1], [1], [0], [0], [0, 0, 1, 0], [], []>} : vector<32x4xf32>, vector<16x4xf32>, vector<32x16xf32> -> vector<32x16xf32>
    %cst_160 = arith.constant 0.707106769 : f32
    %452 = vector.broadcast %cst_160 : f32 to vector<32x16xf32>
    %453 = arith.mulf %451, %452 : vector<32x16xf32>
    %454 = arith.addf %453, %1 : vector<32x16xf32>
    %cst_161 = arith.constant dense<0xFF800000> : vector<32xf32>
    %455 = vector.multi_reduction <maximumf>, %454, %cst_161 [1] : vector<32x16xf32> to vector<32xf32>
    %456 = vector.shape_cast %455 : vector<32xf32> to vector<32x1xf32>
    %457 = vector.broadcast %456 : vector<32x1xf32> to vector<32x16xf32>
    %458 = arith.subf %454, %457 : vector<32x16xf32>
    %459 = math.exp %458 : vector<32x16xf32>
    %cst_162 = arith.constant dense<0.000000e+00> : vector<32xf32>
    %460 = vector.multi_reduction <add>, %459, %cst_162 [1] : vector<32x16xf32> to vector<32xf32>
    %461 = vector.shape_cast %460 : vector<32xf32> to vector<32x1xf32>
    %462 = tpu.reciprocal %461 {approx = true} : vector<32x1xf32> -> vector<32x1xf32>
    %463 = vector.broadcast %462 : vector<32x1xf32> to vector<32x16xf32>
    %464 = arith.mulf %459, %463 : vector<32x16xf32>
    %cst_163 = arith.constant dense<0.000000e+00> : vector<32x4xf32>
    %465 = tpu.matmul %464, %445, %cst_163 {dimension_numbers = #tpu.dot_dimension_numbers<[1], [0], [0], [1], [0, 0, 1, 1], [], []>} : vector<32x16xf32>, vector<16x4xf32>, vector<32x4xf32> -> vector<32x4xf32>
    %466 = vector.extract_strided_slice %465 {offsets = [0, 0], sizes = [16, 4], strides = [1, 1]} : vector<32x4xf32> to vector<16x4xf32>
    %467 = vector.broadcast %4 : vector<1x4xf32> to vector<16x4xf32>
    %468 = arith.mulf %466, %467 : vector<16x4xf32>
    %469 = vector.extract_strided_slice %465 {offsets = [16, 0], sizes = [16, 4], strides = [1, 1]} : vector<32x4xf32> to vector<16x4xf32>
    %470 = vector.broadcast %5 : vector<1x4xf32> to vector<16x4xf32>
    %471 = arith.mulf %469, %470 : vector<16x4xf32>
    %472 = arith.addf %468, %471 : vector<16x4xf32>
    %c584 = arith.constant 584 : index
    %c0_164 = arith.constant 0 : index
    %473 = vector.load %arg1[%c584, %c0_164] : memref<904x128xf32, #tpu.memory_space<vmem>>, vector<4x4xf32>
    %cst_165 = arith.constant dense<0.000000e+00> : vector<16x4xf32>
    %474 = tpu.matmul %472, %473, %cst_165 {dimension_numbers = #tpu.dot_dimension_numbers<[1], [0], [0], [1], [0, 0, 1, 1], [], []>} : vector<16x4xf32>, vector<4x4xf32>, vector<16x4xf32> -> vector<16x4xf32>
    %c592 = arith.constant 592 : index
    %c0_166 = arith.constant 0 : index
    %475 = vector.load %arg1[%c592, %c0_166] : memref<904x128xf32, #tpu.memory_space<vmem>>, vector<1x4xf32>
    %476 = vector.broadcast %475 : vector<1x4xf32> to vector<16x4xf32>
    %477 = arith.addf %474, %476 : vector<16x4xf32>
    %478 = arith.addf %430, %477 : vector<16x4xf32>
    %cst_167 = arith.constant dense<0.000000e+00> : vector<16xf32>
    %479 = vector.multi_reduction <add>, %478, %cst_167 [1] : vector<16x4xf32> to vector<16xf32>
    %480 = vector.shape_cast %479 : vector<16xf32> to vector<16x1xf32>
    %cst_168 = arith.constant 4.000000e+00 : f32
    %481 = vector.broadcast %cst_168 : f32 to vector<16x1xf32>
    %482 = arith.divf %480, %481 : vector<16x1xf32>
    %483 = vector.broadcast %482 : vector<16x1xf32> to vector<16x4xf32>
    %484 = arith.subf %478, %483 : vector<16x4xf32>
    %485 = arith.mulf %484, %484 : vector<16x4xf32>
    %cst_169 = arith.constant dense<0.000000e+00> : vector<16xf32>
    %486 = vector.multi_reduction <add>, %485, %cst_169 [1] : vector<16x4xf32> to vector<16xf32>
    %487 = vector.shape_cast %486 : vector<16xf32> to vector<16x1xf32>
    %cst_170 = arith.constant 4.000000e+00 : f32
    %488 = vector.broadcast %cst_170 : f32 to vector<16x1xf32>
    %489 = arith.divf %487, %488 : vector<16x1xf32>
    %490 = vector.broadcast %482 : vector<16x1xf32> to vector<16x4xf32>
    %491 = arith.subf %478, %490 : vector<16x4xf32>
    %cst_171 = arith.constant 9.99999974E-6 : f32
    %492 = vector.broadcast %cst_171 : f32 to vector<16x1xf32>
    %493 = arith.addf %489, %492 : vector<16x1xf32>
    %494 = math.rsqrt %493 : vector<16x1xf32>
    %495 = vector.broadcast %494 : vector<16x1xf32> to vector<16x4xf32>
    %496 = arith.mulf %491, %495 : vector<16x4xf32>
    %c720 = arith.constant 720 : index
    %c0_172 = arith.constant 0 : index
    %497 = vector.load %arg1[%c720, %c0_172] : memref<904x128xf32, #tpu.memory_space<vmem>>, vector<1x4xf32>
    %498 = vector.broadcast %497 : vector<1x4xf32> to vector<16x4xf32>
    %499 = arith.mulf %496, %498 : vector<16x4xf32>
    %c728 = arith.constant 728 : index
    %c0_173 = arith.constant 0 : index
    %500 = vector.load %arg1[%c728, %c0_173] : memref<904x128xf32, #tpu.memory_space<vmem>>, vector<1x4xf32>
    %501 = vector.broadcast %500 : vector<1x4xf32> to vector<16x4xf32>
    %502 = arith.addf %499, %501 : vector<16x4xf32>
    %c600 = arith.constant 600 : index
    %c0_174 = arith.constant 0 : index
    %503 = vector.load %arg1[%c600, %c0_174] : memref<904x128xf32, #tpu.memory_space<vmem>>, vector<4x4xf32>
    %cst_175 = arith.constant dense<0.000000e+00> : vector<16x4xf32>
    %504 = tpu.matmul %502, %503, %cst_175 {dimension_numbers = #tpu.dot_dimension_numbers<[1], [0], [0], [1], [0, 0, 1, 1], [], []>} : vector<16x4xf32>, vector<4x4xf32>, vector<16x4xf32> -> vector<16x4xf32>
    %c608 = arith.constant 608 : index
    %c0_176 = arith.constant 0 : index
    %505 = vector.load %arg1[%c608, %c0_176] : memref<904x128xf32, #tpu.memory_space<vmem>>, vector<1x4xf32>
    %506 = vector.broadcast %505 : vector<1x4xf32> to vector<16x4xf32>
    %507 = arith.addf %504, %506 : vector<16x4xf32>
    %c616 = arith.constant 616 : index
    %c0_177 = arith.constant 0 : index
    %508 = vector.load %arg1[%c616, %c0_177] : memref<904x128xf32, #tpu.memory_space<vmem>>, vector<4x4xf32>
    %cst_178 = arith.constant dense<0.000000e+00> : vector<16x4xf32>
    %509 = tpu.matmul %249, %508, %cst_178 {dimension_numbers = #tpu.dot_dimension_numbers<[1], [0], [0], [1], [0, 0, 1, 1], [], []>} : vector<16x4xf32>, vector<4x4xf32>, vector<16x4xf32> -> vector<16x4xf32>
    %c624 = arith.constant 624 : index
    %c0_179 = arith.constant 0 : index
    %510 = vector.load %arg1[%c624, %c0_179] : memref<904x128xf32, #tpu.memory_space<vmem>>, vector<1x4xf32>
    %511 = vector.broadcast %510 : vector<1x4xf32> to vector<16x4xf32>
    %512 = arith.addf %509, %511 : vector<16x4xf32>
    %c632 = arith.constant 632 : index
    %c0_180 = arith.constant 0 : index
    %513 = vector.load %arg1[%c632, %c0_180] : memref<904x128xf32, #tpu.memory_space<vmem>>, vector<4x4xf32>
    %cst_181 = arith.constant dense<0.000000e+00> : vector<16x4xf32>
    %514 = tpu.matmul %249, %513, %cst_181 {dimension_numbers = #tpu.dot_dimension_numbers<[1], [0], [0], [1], [0, 0, 1, 1], [], []>} : vector<16x4xf32>, vector<4x4xf32>, vector<16x4xf32> -> vector<16x4xf32>
    %c640 = arith.constant 640 : index
    %c0_182 = arith.constant 0 : index
    %515 = vector.load %arg1[%c640, %c0_182] : memref<904x128xf32, #tpu.memory_space<vmem>>, vector<1x4xf32>
    %516 = vector.broadcast %515 : vector<1x4xf32> to vector<16x4xf32>
    %517 = arith.addf %514, %516 : vector<16x4xf32>
    %518 = vector.broadcast %4 : vector<1x4xf32> to vector<16x4xf32>
    %519 = arith.mulf %507, %518 : vector<16x4xf32>
    %520 = vector.broadcast %5 : vector<1x4xf32> to vector<16x4xf32>
    %521 = arith.mulf %507, %520 : vector<16x4xf32>
    %522 = tpu.concatenate %519, %521 in 0 : vector<16x4xf32>, vector<16x4xf32> -> vector<32x4xf32>
    %cst_183 = arith.constant dense<0.000000e+00> : vector<32x16xf32>
    %523 = tpu.matmul %522, %512, %cst_183 {dimension_numbers = #tpu.dot_dimension_numbers<[1], [1], [0], [0], [0, 0, 1, 0], [], []>} : vector<32x4xf32>, vector<16x4xf32>, vector<32x16xf32> -> vector<32x16xf32>
    %cst_184 = arith.constant 0.707106769 : f32
    %524 = vector.broadcast %cst_184 : f32 to vector<32x16xf32>
    %525 = arith.mulf %523, %524 : vector<32x16xf32>
    %526 = arith.addf %525, %2 : vector<32x16xf32>
    %cst_185 = arith.constant dense<0xFF800000> : vector<32xf32>
    %527 = vector.multi_reduction <maximumf>, %526, %cst_185 [1] : vector<32x16xf32> to vector<32xf32>
    %528 = vector.shape_cast %527 : vector<32xf32> to vector<32x1xf32>
    %529 = vector.broadcast %528 : vector<32x1xf32> to vector<32x16xf32>
    %530 = arith.subf %526, %529 : vector<32x16xf32>
    %531 = math.exp %530 : vector<32x16xf32>
    %cst_186 = arith.constant dense<0.000000e+00> : vector<32xf32>
    %532 = vector.multi_reduction <add>, %531, %cst_186 [1] : vector<32x16xf32> to vector<32xf32>
    %533 = vector.shape_cast %532 : vector<32xf32> to vector<32x1xf32>
    %534 = tpu.reciprocal %533 {approx = true} : vector<32x1xf32> -> vector<32x1xf32>
    %535 = vector.broadcast %534 : vector<32x1xf32> to vector<32x16xf32>
    %536 = arith.mulf %531, %535 : vector<32x16xf32>
    %cst_187 = arith.constant dense<0.000000e+00> : vector<32x4xf32>
    %537 = tpu.matmul %536, %517, %cst_187 {dimension_numbers = #tpu.dot_dimension_numbers<[1], [0], [0], [1], [0, 0, 1, 1], [], []>} : vector<32x16xf32>, vector<16x4xf32>, vector<32x4xf32> -> vector<32x4xf32>
    %538 = vector.extract_strided_slice %537 {offsets = [0, 0], sizes = [16, 4], strides = [1, 1]} : vector<32x4xf32> to vector<16x4xf32>
    %539 = vector.broadcast %4 : vector<1x4xf32> to vector<16x4xf32>
    %540 = arith.mulf %538, %539 : vector<16x4xf32>
    %541 = vector.extract_strided_slice %537 {offsets = [16, 0], sizes = [16, 4], strides = [1, 1]} : vector<32x4xf32> to vector<16x4xf32>
    %542 = vector.broadcast %5 : vector<1x4xf32> to vector<16x4xf32>
    %543 = arith.mulf %541, %542 : vector<16x4xf32>
    %544 = arith.addf %540, %543 : vector<16x4xf32>
    %c648 = arith.constant 648 : index
    %c0_188 = arith.constant 0 : index
    %545 = vector.load %arg1[%c648, %c0_188] : memref<904x128xf32, #tpu.memory_space<vmem>>, vector<4x4xf32>
    %cst_189 = arith.constant dense<0.000000e+00> : vector<16x4xf32>
    %546 = tpu.matmul %544, %545, %cst_189 {dimension_numbers = #tpu.dot_dimension_numbers<[1], [0], [0], [1], [0, 0, 1, 1], [], []>} : vector<16x4xf32>, vector<4x4xf32>, vector<16x4xf32> -> vector<16x4xf32>
    %c656 = arith.constant 656 : index
    %c0_190 = arith.constant 0 : index
    %547 = vector.load %arg1[%c656, %c0_190] : memref<904x128xf32, #tpu.memory_space<vmem>>, vector<1x4xf32>
    %548 = vector.broadcast %547 : vector<1x4xf32> to vector<16x4xf32>
    %549 = arith.addf %546, %548 : vector<16x4xf32>
    %550 = arith.addf %502, %549 : vector<16x4xf32>
    %cst_191 = arith.constant dense<0.000000e+00> : vector<16xf32>
    %551 = vector.multi_reduction <add>, %550, %cst_191 [1] : vector<16x4xf32> to vector<16xf32>
    %552 = vector.shape_cast %551 : vector<16xf32> to vector<16x1xf32>
    %cst_192 = arith.constant 4.000000e+00 : f32
    %553 = vector.broadcast %cst_192 : f32 to vector<16x1xf32>
    %554 = arith.divf %552, %553 : vector<16x1xf32>
    %555 = vector.broadcast %554 : vector<16x1xf32> to vector<16x4xf32>
    %556 = arith.subf %550, %555 : vector<16x4xf32>
    %557 = arith.mulf %556, %556 : vector<16x4xf32>
    %cst_193 = arith.constant dense<0.000000e+00> : vector<16xf32>
    %558 = vector.multi_reduction <add>, %557, %cst_193 [1] : vector<16x4xf32> to vector<16xf32>
    %559 = vector.shape_cast %558 : vector<16xf32> to vector<16x1xf32>
    %cst_194 = arith.constant 4.000000e+00 : f32
    %560 = vector.broadcast %cst_194 : f32 to vector<16x1xf32>
    %561 = arith.divf %559, %560 : vector<16x1xf32>
    %562 = vector.broadcast %554 : vector<16x1xf32> to vector<16x4xf32>
    %563 = arith.subf %550, %562 : vector<16x4xf32>
    %cst_195 = arith.constant 9.99999974E-6 : f32
    %564 = vector.broadcast %cst_195 : f32 to vector<16x1xf32>
    %565 = arith.addf %561, %564 : vector<16x1xf32>
    %566 = math.rsqrt %565 : vector<16x1xf32>
    %567 = vector.broadcast %566 : vector<16x1xf32> to vector<16x4xf32>
    %568 = arith.mulf %563, %567 : vector<16x4xf32>
    %c736 = arith.constant 736 : index
    %c0_196 = arith.constant 0 : index
    %569 = vector.load %arg1[%c736, %c0_196] : memref<904x128xf32, #tpu.memory_space<vmem>>, vector<1x4xf32>
    %570 = vector.broadcast %569 : vector<1x4xf32> to vector<16x4xf32>
    %571 = arith.mulf %568, %570 : vector<16x4xf32>
    %c744 = arith.constant 744 : index
    %c0_197 = arith.constant 0 : index
    %572 = vector.load %arg1[%c744, %c0_197] : memref<904x128xf32, #tpu.memory_space<vmem>>, vector<1x4xf32>
    %573 = vector.broadcast %572 : vector<1x4xf32> to vector<16x4xf32>
    %574 = arith.addf %571, %573 : vector<16x4xf32>
    %c664 = arith.constant 664 : index
    %c0_198 = arith.constant 0 : index
    %575 = vector.load %arg1[%c664, %c0_198] : memref<904x128xf32, #tpu.memory_space<vmem>>, vector<4x32xf32>
    %cst_199 = arith.constant dense<0.000000e+00> : vector<16x32xf32>
    %576 = tpu.matmul %574, %575, %cst_199 {dimension_numbers = #tpu.dot_dimension_numbers<[1], [0], [0], [1], [0, 0, 1, 1], [], []>} : vector<16x4xf32>, vector<4x32xf32>, vector<16x32xf32> -> vector<16x32xf32>
    %c672 = arith.constant 672 : index
    %c0_200 = arith.constant 0 : index
    %577 = vector.load %arg1[%c672, %c0_200] : memref<904x128xf32, #tpu.memory_space<vmem>>, vector<1x32xf32>
    %578 = vector.broadcast %577 : vector<1x32xf32> to vector<16x32xf32>
    %579 = arith.addf %576, %578 : vector<16x32xf32>
    %cst_201 = arith.constant 0.000000e+00 : f32
    %580 = vector.broadcast %cst_201 : f32 to vector<16x32xf32>
    %581 = arith.maximumf %579, %580 : vector<16x32xf32>
    %c680 = arith.constant 680 : index
    %c0_202 = arith.constant 0 : index
    %582 = vector.load %arg1[%c680, %c0_202] : memref<904x128xf32, #tpu.memory_space<vmem>>, vector<32x4xf32>
    %cst_203 = arith.constant dense<0.000000e+00> : vector<16x4xf32>
    %583 = tpu.matmul %581, %582, %cst_203 {dimension_numbers = #tpu.dot_dimension_numbers<[1], [0], [0], [1], [0, 0, 1, 1], [], []>} : vector<16x32xf32>, vector<32x4xf32>, vector<16x4xf32> -> vector<16x4xf32>
    %c712 = arith.constant 712 : index
    %c0_204 = arith.constant 0 : index
    %584 = vector.load %arg1[%c712, %c0_204] : memref<904x128xf32, #tpu.memory_space<vmem>>, vector<1x4xf32>
    %585 = vector.broadcast %584 : vector<1x4xf32> to vector<16x4xf32>
    %586 = arith.addf %583, %585 : vector<16x4xf32>
    %587 = arith.addf %574, %586 : vector<16x4xf32>
    %cst_205 = arith.constant dense<0.000000e+00> : vector<16xf32>
    %588 = vector.multi_reduction <add>, %587, %cst_205 [1] : vector<16x4xf32> to vector<16xf32>
    %589 = vector.shape_cast %588 : vector<16xf32> to vector<16x1xf32>
    %cst_206 = arith.constant 4.000000e+00 : f32
    %590 = vector.broadcast %cst_206 : f32 to vector<16x1xf32>
    %591 = arith.divf %589, %590 : vector<16x1xf32>
    %592 = vector.broadcast %591 : vector<16x1xf32> to vector<16x4xf32>
    %593 = arith.subf %587, %592 : vector<16x4xf32>
    %594 = arith.mulf %593, %593 : vector<16x4xf32>
    %cst_207 = arith.constant dense<0.000000e+00> : vector<16xf32>
    %595 = vector.multi_reduction <add>, %594, %cst_207 [1] : vector<16x4xf32> to vector<16xf32>
    %596 = vector.shape_cast %595 : vector<16xf32> to vector<16x1xf32>
    %cst_208 = arith.constant 4.000000e+00 : f32
    %597 = vector.broadcast %cst_208 : f32 to vector<16x1xf32>
    %598 = arith.divf %596, %597 : vector<16x1xf32>
    %599 = vector.broadcast %591 : vector<16x1xf32> to vector<16x4xf32>
    %600 = arith.subf %587, %599 : vector<16x4xf32>
    %cst_209 = arith.constant 9.99999974E-6 : f32
    %601 = vector.broadcast %cst_209 : f32 to vector<16x1xf32>
    %602 = arith.addf %598, %601 : vector<16x1xf32>
    %603 = math.rsqrt %602 : vector<16x1xf32>
    %604 = vector.broadcast %603 : vector<16x1xf32> to vector<16x4xf32>
    %605 = arith.mulf %600, %604 : vector<16x4xf32>
    %c752 = arith.constant 752 : index
    %c0_210 = arith.constant 0 : index
    %606 = vector.load %arg1[%c752, %c0_210] : memref<904x128xf32, #tpu.memory_space<vmem>>, vector<1x4xf32>
    %607 = vector.broadcast %606 : vector<1x4xf32> to vector<16x4xf32>
    %608 = arith.mulf %605, %607 : vector<16x4xf32>
    %c760 = arith.constant 760 : index
    %c0_211 = arith.constant 0 : index
    %609 = vector.load %arg1[%c760, %c0_211] : memref<904x128xf32, #tpu.memory_space<vmem>>, vector<1x4xf32>
    %610 = vector.broadcast %609 : vector<1x4xf32> to vector<16x4xf32>
    %611 = arith.addf %608, %610 : vector<16x4xf32>
    %612 = vector.extract_strided_slice %611 {offsets = [14, 0], sizes = [2, 4], strides = [1, 1]} : vector<16x4xf32> to vector<2x4xf32>
    %cst_212 = arith.constant dense<0.000000e+00> : vector<2xf32>
    %613 = vector.multi_reduction <add>, %612, %cst_212 [1] : vector<2x4xf32> to vector<2xf32>
    %614 = vector.shape_cast %613 : vector<2xf32> to vector<2x1xf32>
    %cst_213 = arith.constant 4.000000e+00 : f32
    %615 = vector.broadcast %cst_213 : f32 to vector<2x1xf32>
    %616 = arith.divf %614, %615 : vector<2x1xf32>
    %617 = vector.broadcast %616 : vector<2x1xf32> to vector<2x4xf32>
    %618 = arith.subf %612, %617 : vector<2x4xf32>
    %619 = arith.mulf %618, %618 : vector<2x4xf32>
    %cst_214 = arith.constant dense<0.000000e+00> : vector<2xf32>
    %620 = vector.multi_reduction <add>, %619, %cst_214 [1] : vector<2x4xf32> to vector<2xf32>
    %621 = vector.shape_cast %620 : vector<2xf32> to vector<2x1xf32>
    %cst_215 = arith.constant 4.000000e+00 : f32
    %622 = vector.broadcast %cst_215 : f32 to vector<2x1xf32>
    %623 = arith.divf %621, %622 : vector<2x1xf32>
    %624 = vector.broadcast %616 : vector<2x1xf32> to vector<2x4xf32>
    %625 = arith.subf %612, %624 : vector<2x4xf32>
    %cst_216 = arith.constant 9.99999974E-6 : f32
    %626 = vector.broadcast %cst_216 : f32 to vector<2x1xf32>
    %627 = arith.addf %623, %626 : vector<2x1xf32>
    %628 = math.rsqrt %627 : vector<2x1xf32>
    %629 = vector.broadcast %628 : vector<2x1xf32> to vector<2x4xf32>
    %630 = arith.mulf %625, %629 : vector<2x4xf32>
    %c784 = arith.constant 784 : index
    %c0_217 = arith.constant 0 : index
    %631 = vector.load %arg1[%c784, %c0_217] : memref<904x128xf32, #tpu.memory_space<vmem>>, vector<1x4xf32>
    %632 = vector.broadcast %631 : vector<1x4xf32> to vector<2x4xf32>
    %633 = arith.mulf %630, %632 : vector<2x4xf32>
    %c792 = arith.constant 792 : index
    %c0_218 = arith.constant 0 : index
    %634 = vector.load %arg1[%c792, %c0_218] : memref<904x128xf32, #tpu.memory_space<vmem>>, vector<1x4xf32>
    %635 = vector.broadcast %634 : vector<1x4xf32> to vector<2x4xf32>
    %636 = arith.addf %633, %635 : vector<2x4xf32>
    %c800 = arith.constant 800 : index
    %c0_219 = arith.constant 0 : index
    %637 = vector.load %arg1[%c800, %c0_219] : memref<904x128xf32, #tpu.memory_space<vmem>>, vector<4x2xf32>
    %cst_220 = arith.constant dense<0.000000e+00> : vector<2x2xf32>
    %638 = tpu.matmul %636, %637, %cst_220 {dimension_numbers = #tpu.dot_dimension_numbers<[1], [0], [0], [1], [0, 0, 1, 1], [], []>} : vector<2x4xf32>, vector<4x2xf32>, vector<2x2xf32> -> vector<2x2xf32>
    %c808 = arith.constant 808 : index
    %c0_221 = arith.constant 0 : index
    %639 = vector.load %arg1[%c808, %c0_221] : memref<904x128xf32, #tpu.memory_space<vmem>>, vector<1x2xf32>
    %640 = vector.broadcast %639 : vector<1x2xf32> to vector<2x2xf32>
    %641 = arith.addf %638, %640 : vector<2x2xf32>
    %cst_222 = arith.constant dense<0xFF800000> : vector<2xf32>
    %642 = vector.multi_reduction <maximumf>, %641, %cst_222 [0] : vector<2x2xf32> to vector<2xf32>
    %643 = vector.shape_cast %642 : vector<2xf32> to vector<1x2xf32>
    %644 = vector.broadcast %643 : vector<1x2xf32> to vector<2x2xf32>
    %645 = arith.subf %641, %644 : vector<2x2xf32>
    %646 = math.exp %645 : vector<2x2xf32>
    %cst_223 = arith.constant dense<0.000000e+00> : vector<2xf32>
    %647 = vector.multi_reduction <add>, %646, %cst_223 [0] : vector<2x2xf32> to vector<2xf32>
    %648 = vector.shape_cast %647 : vector<2xf32> to vector<1x2xf32>
    %649 = math.log %648 : vector<1x2xf32>
    %650 = arith.addf %643, %649 : vector<1x2xf32>
    %651 = vector.broadcast %650 : vector<1x2xf32> to vector<2x2xf32>
    %652 = arith.subf %641, %651 : vector<2x2xf32>
    %c0_224 = arith.constant 0 : index
    %c0_225 = arith.constant 0 : index
    %653 = vector.load %arg2[%c0_224, %c0_225] : memref<2x2xf32, #tpu.memory_space<vmem>>, vector<2x2xf32>
    tpu.vector_store %arg2[%c0_224, %c0_225], %652 {strides = array<i32>} : memref<2x2xf32, #tpu.memory_space<vmem>>, vector<2x2xf32>,
    return
  }
}

</mosaic_0001>

<llo_original>
// kernel: transformer_classifier.1
$region0: #{transformer_classifier.1}
  #allocation0 [shape = 'u32[]', space=smem, size = 0x4, offset = 0x4, fixed_abs, tag = 'smem constant byte address 0x4 - core index']
  #allocation1 [shape = 'u32[144,128]{1,0:T(1,128)}', space=vmem, size = 0x12000, scoped, tag = 'internal scratch']
  %s0 = inlined_call_operand.vmem [shape: f32[16,4], index: 0, kind: input, shape index: {}]
  %s1 = inlined_call_operand.hbm [shape: f32[904,128], index: 1, kind: input, shape index: {}]
  %s2 = inlined_call_operand.hbm [shape: f32[2,2], index: 2, kind: output, shape index: {}]
  %s3 = sld [smem:[#allocation0]]
  $region22: #{transformer_classifier.1} parent=0
    _
  %s5 = ssub.s32 1, %s3
  %s6 = scalar_select 0, %s5, %s3
  $region1: #{transformer_classifier.1} parent=0
    #allocation2 [shape = 'u8[462848]{0}', space=vmem, size = 0x71000, scoped, tag = 'input window, operand 1, single buffered']
    #allocation3 [shape = 's32[1]{0}', space=sflag, size = 0x4, scoped, tag = 'scoped memory for transformer_classifier.1']
    #allocation4 [shape = 's32[1]{0}', space=sflag, size = 0x4, scoped, tag = 'scoped memory for transformer_classifier.1']
    #allocation5 [shape = 'u8[1024]{0}', space=vmem, size = 0x400, scoped, tag = 'output window, operand 0, single buffered']
    %7 = vsyncpa [#allocation3], 0
    %8 = vsyncpa [#allocation4], 0
    // Predicated region
    $region2: #{transformer_classifier.1} parent=1 // pred_check
      _
    $region3: #{transformer_classifier.1} parent=1 // pred_check_branch
      %10 = sbr.rel (0) target = $region5
    $region4: #{transformer_classifier.1} parent=1 // pred_region
      _
    $region5: #{transformer_classifier.1} parent=1 // pred_fallthru
      _
    // Predicated region
    $region6: #{transformer_classifier.1} parent=1 // pred_check
      _
    $region7: #{transformer_classifier.1} parent=1 // pred_check_branch
      %12 = sbr.rel (0) target = $region9
    $region8: #{transformer_classifier.1} parent=1 // pred_region
      %s14 = ssub.s32 14464, 14464
      %15 = vsyncadd [#allocation3], %s14
      %s16 = sshll.u32 [#allocation2], 4
      %s17 = int_to_ptr.vmem [resolvable:$true] %s16
      %22 = dma.hbm_to_vmem [thread:$0]  %s1, 14464, %s17, [#allocation3], 128, 128, 8
    $region9: #{transformer_classifier.1} parent=1 // pred_fallthru
      _
    // Predicated region
    $region10: #{transformer_classifier.1} parent=1 // pred_check
      _
    $region11: #{transformer_classifier.1} parent=1 // pred_check_branch
      %24 = sbr.rel (0) target = $region13
    $region12: #{transformer_classifier.1} parent=1 // pred_region
      %25 = dma.done [#allocation3], 14464
    $region13: #{transformer_classifier.1} parent=1 // pred_fallthru
      _
    %v26 = vld [vmem:[#allocation2 + $0x338] sm:$0xff]
    %v27 = vld [vmem:[#allocation2 + $0x340] sm:$0xff]
    %v28 = vld [vmem:[#allocation2 + $0x348] sm:$0xff]
    %v29 = vld [vmem:[#allocation2 + $0x350] sm:$0xff]
    %v30 = vld [vmem:[#allocation2 + $0x358] sm:$0xff]
    %v31 = vld [vmem:[#allocation2 + $0x360] sm:$0xff]
    %v32 = vld [vmem:[#allocation2 + $0x368] sm:$0xff]
    %v33 = vld [vmem:[#allocation2 + $0x370] sm:$0xff]
    %v34 = vld [vmem:[#allocation2 + $0x378] sm:$0xff]
    %v35 = vld [vmem:[#allocation2 + $0x380] sm:$0xff]
    %v36 = vld [vmem:[#allocation2 + $0x330] sm:$0x3]
    %v37 = vld [vmem:[%s0] sm:$0xff]
    %v38 = vld [vmem:[%s0 + $0x8] sm:$0xff]
    %v39 = vadd.f32 %v37, %v26
    %v40 = vadd.f32 %v38, %v27
    %v41 = vld [vmem:[#allocation2] sm:$0xf]
    %v42 = vld [vmem:[#allocation2 + $0x8] sm:$0x1]
    %v43 = vlaneseq
    %v44 = vshrl.u32 %v43, 7
    %v45 = vsub.s32 0, %v44
    %v46 = vrot.slane %v42, %v45
    %vm47 = vcmask 31744
    %v49 = vsel %vm47, %v39, 0
    %v52 = vsel %vm47, %v40, 0
    %vm54 = vcmask 1043456
    %v56 = vsel %vm54, %v41, 0
    %58 = vmatprep.subr.mxu0 0.0
    %59 = vmatpush1.msra.mxu0 %v56
    %60 = vmatprep.subr.mxu0 0.0
    %61 = vmatpush1.msra.mxu0 0.0
    %62 = vmatprep.subr.mxu0 0.0
    %63 = vmatpush1.msra.mxu0 0.0
    %64 = vmatprep.subr.mxu0 0.0
    %65 = vmatpush1.msra.mxu0 0.0
    %66 = vmatprep.subr.mxu0 0.0
    %67 = vmatpush1.msra.mxu0 0.0
    %68 = vmatprep.subr.mxu0 0.0
    %69 = vmatpush1.msra.mxu0 0.0
    %70 = vmatprep.subr.mxu0 0.0
    %71 = vmatpush1.msra.mxu0 0.0
    %72 = vmatprep.subr.mxu0 0.0
    %73 = vmatpush1.msra.mxu0 0.0
    %74 = vmatprep.subr.mxu0 0.0
    %75 = vmatpush1.msra.mxu0 0.0
    %76 = vmatprep.subr.mxu0 0.0
    %77 = vmatpush1.msra.mxu0 0.0
    %78 = vmatprep.subr.mxu0 0.0
    %79 = vmatpush1.msra.mxu0 0.0
    %80 = vmatprep.subr.mxu0 0.0
    %81 = vmatpush1.msra.mxu0 0.0
    %82 = vmatprep.subr.mxu0 0.0
    %83 = vmatpush1.msra.mxu0 0.0
    %84 = vmatprep.subr.mxu0 0.0
    %85 = vmatpush1.msra.mxu0 0.0
    %86 = vmatprep.subr.mxu0 0.0
    %87 = vmatpush1.msra.mxu0 0.0
    %88 = vmatprep.subr.mxu0 0.0
    %89 = vmatpush1.msra.mxu0 0.0
    %90 = vmatprep.subr.mxu0 0.0
    %91 = vmatpush1.msra.mxu0 0.0
    %92 = vmatprep.subr.mxu0 0.0
    %93 = vmatpush1.msra.mxu0 0.0
    %94 = vmatprep.subr.mxu0 0.0
    %95 = vmatpush1.msra.mxu0 0.0
    %96 = vmatprep.subr.mxu0 0.0
    %97 = vmatpush1.msra.mxu0 0.0
    %98 = vmatprep.subr.mxu0 0.0
    %99 = vmatpush1.msra.mxu0 0.0
    %100 = vmatprep.subr.mxu0 0.0
    %101 = vmatpush1.msra.mxu0 0.0
    %102 = vmatprep.subr.mxu0 0.0
    %103 = vmatpush1.msra.mxu0 0.0
    %104 = vmatprep.subr.mxu0 0.0
    %105 = vmatpush1.msra.mxu0 0.0
    %106 = vmatprep.subr.mxu0 0.0
    %107 = vmatpush1.msra.mxu0 0.0
    %108 = vmatprep.subr.mxu0 0.0
    %109 = vmatpush1.msra.mxu0 0.0
    %110 = vmatprep.subr.mxu0 0.0
    %111 = vmatpush1.msra.mxu0 0.0
    %112 = vmatprep.subr.mxu0 0.0
    %113 = vmatpush1.msra.mxu0 0.0
    %114 = vmatprep.subr.mxu0 0.0
    %115 = vmatpush1.msra.mxu0 0.0
    %116 = vmatprep.subr.mxu0 0.0
    %117 = vmatpush1.msra.mxu0 0.0
    %118 = vmatprep.subr.mxu0 0.0
    %119 = vmatpush1.msra.mxu0 0.0
    %120 = vmatprep.subr.mxu0 0.0
    %121 = vmatpush1.msra.mxu0 0.0
    %122 = vmatprep.mubr.f32.mxu0 0.0
    %123 = vmatmul.mubr.f32.gmra.mrb[0].mxu0 %v49
    %v124 = vpop.f32.mrb[0].mxu0
    %v125 = vadd.f32 %v46, %v124
    %v126 = vpop.f32.mrb[0].mxu0
    %127 = vmatprep.mubr.f32.mxu0 0.0
    %128 = vmatmul.mubr.f32.gmra.mrb[0].mxu0 %v52
    %v129 = vpop.f32.mrb[0].mxu0
    %v130 = vadd.f32 %v46, %v129
    %v131 = vpop.f32.mrb[0].mxu0
    %132 = vdwg.mxu0
    %v133 = vld [vmem:[#allocation2 + $0x10] sm:$0xf]
    %v134 = vld [vmem:[#allocation2 + $0x18] sm:$0x1]
    %v135 = vlaneseq
    %v136 = vshrl.u32 %v135, 7
    %v137 = vsub.s32 0, %v136
    %v138 = vrot.slane %v134, %v137
    %v140 = vsel %vm54, %v133, 0
    %142 = vmatprep.subr.mxu0 0.0
    %143 = vmatpush1.msra.mxu0 %v140
    %144 = vmatprep.subr.mxu0 0.0
    %145 = vmatpush1.msra.mxu0 0.0
    %146 = vmatprep.subr.mxu0 0.0
    %147 = vmatpush1.msra.mxu0 0.0
    %148 = vmatprep.subr.mxu0 0.0
    %149 = vmatpush1.msra.mxu0 0.0
    %150 = vmatprep.subr.mxu0 0.0
    %151 = vmatpush1.msra.mxu0 0.0
    %152 = vmatprep.subr.mxu0 0.0
    %153 = vmatpush1.msra.mxu0 0.0
    %154 = vmatprep.subr.mxu0 0.0
    %155 = vmatpush1.msra.mxu0 0.0
    %156 = vmatprep.subr.mxu0 0.0
    %157 = vmatpush1.msra.mxu0 0.0
    %158 = vmatprep.subr.mxu0 0.0
    %159 = vmatpush1.msra.mxu0 0.0
    %160 = vmatprep.subr.mxu0 0.0
    %161 = vmatpush1.msra.mxu0 0.0
    %162 = vmatprep.subr.mxu0 0.0
    %163 = vmatpush1.msra.mxu0 0.0
    %164 = vmatprep.subr.mxu0 0.0
    %165 = vmatpush1.msra.mxu0 0.0
    %166 = vmatprep.subr.mxu0 0.0
    %167 = vmatpush1.msra.mxu0 0.0
    %168 = vmatprep.subr.mxu0 0.0
    %169 = vmatpush1.msra.mxu0 0.0
    %170 = vmatprep.subr.mxu0 0.0
    %171 = vmatpush1.msra.mxu0 0.0
    %172 = vmatprep.subr.mxu0 0.0
    %173 = vmatpush1.msra.mxu0 0.0
    %174 = vmatprep.subr.mxu0 0.0
    %175 = vmatpush1.msra.mxu0 0.0
    %176 = vmatprep.subr.mxu0 0.0
    %177 = vmatpush1.msra.mxu0 0.0
    %178 = vmatprep.subr.mxu0 0.0
    %179 = vmatpush1.msra.mxu0 0.0
    %180 = vmatprep.subr.mxu0 0.0
    %181 = vmatpush1.msra.mxu0 0.0
    %182 = vmatprep.subr.mxu0 0.0
    %183 = vmatpush1.msra.mxu0 0.0
    %184 = vmatprep.subr.mxu0 0.0
    %185 = vmatpush1.msra.mxu0 0.0
    %186 = vmatprep.subr.mxu0 0.0
    %187 = vmatpush1.msra.mxu0 0.0
    %188 = vmatprep.subr.mxu0 0.0
    %189 = vmatpush1.msra.mxu0 0.0
    %190 = vmatprep.subr.mxu0 0.0
    %191 = vmatpush1.msra.mxu0 0.0
    %192 = vmatprep.subr.mxu0 0.0
    %193 = vmatpush1.msra.mxu0 0.0
    %194 = vmatprep.subr.mxu0 0.0
    %195 = vmatpush1.msra.mxu0 0.0
    %196 = vmatprep.subr.mxu0 0.0
    %197 = vmatpush1.msra.mxu0 0.0
    %198 = vmatprep.subr.mxu0 0.0
    %199 = vmatpush1.msra.mxu0 0.0
    %200 = vmatprep.subr.mxu0 0.0
    %201 = vmatpush1.msra.mxu0 0.0
    %202 = vmatprep.subr.mxu0 0.0
    %203 = vmatpush1.msra.mxu0 0.0
    %204 = vmatprep.subr.mxu0 0.0
    %205 = vmatpush1.msra.mxu0 0.0
    %206 = vmatprep.mubr.f32.mxu0 0.0
    %207 = vmatmul.mubr.f32.gmra.mrb[0].mxu0 %v49
    %v208 = vpop.f32.mrb[0].mxu0
    %v209 = vadd.f32 %v138, %v208
    %v210 = vpop.f32.mrb[0].mxu0
    %211 = vmatprep.mubr.f32.mxu0 0.0
    %212 = vmatmul.mubr.f32.gmra.mrb[0].mxu0 %v52
    %v213 = vpop.f32.mrb[0].mxu0
    %v214 = vadd.f32 %v138, %v213
    %v215 = vpop.f32.mrb[0].mxu0
    %216 = vdwg.mxu0
    %v217 = vld [vmem:[#allocation2 + $0x20] sm:$0xf]
    %v218 = vld [vmem:[#allocation2 + $0x28] sm:$0x1]
    %v219 = vlaneseq
    %v220 = vshrl.u32 %v219, 7
    %v221 = vsub.s32 0, %v220
    %v222 = vrot.slane %v218, %v221
    %v224 = vsel %vm54, %v217, 0
    %226 = vmatprep.subr.mxu0 0.0
    %227 = vmatpush1.msra.mxu0 %v224
    %228 = vmatprep.subr.mxu0 0.0
    %229 = vmatpush1.msra.mxu0 0.0
    %230 = vmatprep.subr.mxu0 0.0
    %231 = vmatpush1.msra.mxu0 0.0
    %232 = vmatprep.subr.mxu0 0.0
    %233 = vmatpush1.msra.mxu0 0.0
    %234 = vmatprep.subr.mxu0 0.0
    %235 = vmatpush1.msra.mxu0 0.0
    %236 = vmatprep.subr.mxu0 0.0
    %237 = vmatpush1.msra.mxu0 0.0
    %238 = vmatprep.subr.mxu0 0.0
    %239 = vmatpush1.msra.mxu0 0.0
    %240 = vmatprep.subr.mxu0 0.0
    %241 = vmatpush1.msra.mxu0 0.0
    %242 = vmatprep.subr.mxu0 0.0
    %243 = vmatpush1.msra.mxu0 0.0
    %244 = vmatprep.subr.mxu0 0.0
    %245 = vmatpush1.msra.mxu0 0.0
    %246 = vmatprep.subr.mxu0 0.0
    %247 = vmatpush1.msra.mxu0 0.0
    %248 = vmatprep.subr.mxu0 0.0
    %249 = vmatpush1.msra.mxu0 0.0
    %250 = vmatprep.subr.mxu0 0.0
    %251 = vmatpush1.msra.mxu0 0.0
    %252 = vmatprep.subr.mxu0 0.0
    %253 = vmatpush1.msra.mxu0 0.0
    %254 = vmatprep.subr.mxu0 0.0
    %255 = vmatpush1.msra.mxu0 0.0
    %256 = vmatprep.subr.mxu0 0.0
    %257 = vmatpush1.msra.mxu0 0.0
    %258 = vmatprep.subr.mxu0 0.0
    %259 = vmatpush1.msra.mxu0 0.0
    %260 = vmatprep.subr.mxu0 0.0
    %261 = vmatpush1.msra.mxu0 0.0
    %262 = vmatprep.subr.mxu0 0.0
    %263 = vmatpush1.msra.mxu0 0.0
    %264 = vmatprep.subr.mxu0 0.0
    %265 = vmatpush1.msra.mxu0 0.0
    %266 = vmatprep.subr.mxu0 0.0
    %267 = vmatpush1.msra.mxu0 0.0
    %268 = vmatprep.subr.mxu0 0.0
    %269 = vmatpush1.msra.mxu0 0.0
    %270 = vmatprep.subr.mxu0 0.0
    %271 = vmatpush1.msra.mxu0 0.0
    %272 = vmatprep.subr.mxu0 0.0
    %273 = vmatpush1.msra.mxu0 0.0
    %274 = vmatprep.subr.mxu0 0.0
    %275 = vmatpush1.msra.mxu0 0.0
    %276 = vmatprep.subr.mxu0 0.0
    %277 = vmatpush1.msra.mxu0 0.0
    %278 = vmatprep.subr.mxu0 0.0
    %279 = vmatpush1.msra.mxu0 0.0
    %280 = vmatprep.subr.mxu0 0.0
    %281 = vmatpush1.msra.mxu0 0.0
    %282 = vmatprep.subr.mxu0 0.0
    %283 = vmatpush1.msra.mxu0 0.0
    %284 = vmatprep.subr.mxu0 0.0
    %285 = vmatpush1.msra.mxu0 0.0
    %286 = vmatprep.subr.mxu0 0.0
    %287 = vmatpush1.msra.mxu0 0.0
    %288 = vmatprep.subr.mxu0 0.0
    %289 = vmatpush1.msra.mxu0 0.0
    %290 = vmatprep.mubr.f32.mxu0 0.0
    %291 = vmatmul.mubr.f32.gmra.mrb[0].mxu0 %v49
    %v292 = vpop.f32.mrb[0].mxu0
    %v293 = vadd.f32 %v222, %v292
    %v294 = vpop.f32.mrb[0].mxu0
    %295 = vmatprep.mubr.f32.mxu0 0.0
    %296 = vmatmul.mubr.f32.gmra.mrb[0].mxu0 %v52
    %v297 = vpop.f32.mrb[0].mxu0
    %v298 = vadd.f32 %v222, %v297
    %v299 = vpop.f32.mrb[0].mxu0
    %300 = vdwg.mxu0
    %v301 = vlaneseq
    %v302 = vshrl.u32 %v301, 7
    %v303 = vsub.s32 0, %v302
    %v304 = vrot.slane %v36, %v303
    %v305 = vmul.f32 %v125, %v304
    %v306 = vmul.f32 %v130, %v304
    %v307 = vlaneseq
    %v308 = vshrl.u32 %v307, 7
    %v309 = vsub.s32 1, %v308
    %v310 = vrot.slane %v36, %v309
    %v311 = vmul.f32 %v125, %v310
    %v312 = vmul.f32 %v130, %v310
    %v314 = vsel %vm47, %v305, 0
    %v317 = vsel %vm47, %v306, 0
    %v320 = vsel %vm47, %v311, 0
    %v323 = vsel %vm47, %v312, 0
    %v326 = vsel %vm47, %v209, 0
    %v329 = vsel %vm47, %v214, 0
    %331 = vmatprep.subr.mxu0 0.0
    %332 = vmatpush1.xpose.msra.mxu0 %v326
    %333 = vmatprep.subr.mxu0 0.0
    %334 = vmatpush1.xpose.msra.mxu0 %v329
    %335 = vmatprep.subr.mxu0 0.0
    %336 = vmatpush1.xpose.msra.mxu0 0.0
    %337 = vmatprep.subr.mxu0 0.0
    %338 = vmatpush1.xpose.msra.mxu0 0.0
    %339 = vmatprep.subr.mxu0 0.0
    %340 = vmatpush1.xpose.msra.mxu0 0.0
    %341 = vmatprep.subr.mxu0 0.0
    %342 = vmatpush1.xpose.msra.mxu0 0.0
    %343 = vmatprep.subr.mxu0 0.0
    %344 = vmatpush1.xpose.msra.mxu0 0.0
    %345 = vmatprep.subr.mxu0 0.0
    %346 = vmatpush1.xpose.msra.mxu0 0.0
    %347 = vmatprep.subr.mxu0 0.0
    %348 = vmatpush1.xpose.msra.mxu0 0.0
    %349 = vmatprep.subr.mxu0 0.0
    %350 = vmatpush1.xpose.msra.mxu0 0.0
    %351 = vmatprep.subr.mxu0 0.0
    %352 = vmatpush1.xpose.msra.mxu0 0.0
    %353 = vmatprep.subr.mxu0 0.0
    %354 = vmatpush1.xpose.msra.mxu0 0.0
    %355 = vmatprep.subr.mxu0 0.0
    %356 = vmatpush1.xpose.msra.mxu0 0.0
    %357 = vmatprep.subr.mxu0 0.0
    %358 = vmatpush1.xpose.msra.mxu0 0.0
    %359 = vmatprep.subr.mxu0 0.0
    %360 = vmatpush1.xpose.msra.mxu0 0.0
    %361 = vmatprep.subr.mxu0 0.0
    %362 = vmatpush1.xpose.msra.mxu0 0.0
    %363 = vmatprep.subr.mxu0 0.0
    %364 = vmatpush1.xpose.msra.mxu0 0.0
    %365 = vmatprep.subr.mxu0 0.0
    %366 = vmatpush1.xpose.msra.mxu0 0.0
    %367 = vmatprep.subr.mxu0 0.0
    %368 = vmatpush1.xpose.msra.mxu0 0.0
    %369 = vmatprep.subr.mxu0 0.0
    %370 = vmatpush1.xpose.msra.mxu0 0.0
    %371 = vmatprep.subr.mxu0 0.0
    %372 = vmatpush1.xpose.msra.mxu0 0.0
    %373 = vmatprep.subr.mxu0 0.0
    %374 = vmatpush1.xpose.msra.mxu0 0.0
    %375 = vmatprep.subr.mxu0 0.0
    %376 = vmatpush1.xpose.msra.mxu0 0.0
    %377 = vmatprep.subr.mxu0 0.0
    %378 = vmatpush1.xpose.msra.mxu0 0.0
    %379 = vmatprep.subr.mxu0 0.0
    %380 = vmatpush1.xpose.msra.mxu0 0.0
    %381 = vmatprep.subr.mxu0 0.0
    %382 = vmatpush1.xpose.msra.mxu0 0.0
    %383 = vmatprep.subr.mxu0 0.0
    %384 = vmatpush1.xpose.msra.mxu0 0.0
    %385 = vmatprep.subr.mxu0 0.0
    %386 = vmatpush1.xpose.msra.mxu0 0.0
    %387 = vmatprep.subr.mxu0 0.0
    %388 = vmatpush1.xpose.msra.mxu0 0.0
    %389 = vmatprep.subr.mxu0 0.0
    %390 = vmatpush1.xpose.msra.mxu0 0.0
    %391 = vmatprep.subr.mxu0 0.0
    %392 = vmatpush1.xpose.msra.mxu0 0.0
    %393 = vmatprep.subr.mxu0 0.0
    %394 = vmatpush1.xpose.msra.mxu0 0.0
    %395 = vmatprep.mubr.f32.mxu0 0.0
    %396 = vmatmul.mubr.f32.gmra.mrb[0].mxu0 %v314
    %v397 = vpop.f32.mrb[0].mxu0
    %v398 = vadd.f32 0.0, %v397
    %v399 = vpop.f32.mrb[0].mxu0
    %400 = vmatprep.mubr.f32.mxu0 0.0
    %401 = vmatmul.mubr.f32.gmra.mrb[0].mxu0 %v317
    %v402 = vpop.f32.mrb[0].mxu0
    %v403 = vadd.f32 0.0, %v402
    %v404 = vpop.f32.mrb[0].mxu0
    %405 = vmatprep.mubr.f32.mxu0 0.0
    %406 = vmatmul.mubr.f32.gmra.mrb[0].mxu0 %v320
    %v407 = vpop.f32.mrb[0].mxu0
    %v408 = vadd.f32 0.0, %v407
    %v409 = vpop.f32.mrb[0].mxu0
    %410 = vmatprep.mubr.f32.mxu0 0.0
    %411 = vmatmul.mubr.f32.gmra.mrb[0].mxu0 %v323
    %v412 = vpop.f32.mrb[0].mxu0
    %v413 = vadd.f32 0.0, %v412
    %v414 = vpop.f32.mrb[0].mxu0
    %415 = vdwg.mxu0
    %v416 = vmul.f32 %v398, 0.70710677
    %v417 = vmul.f32 %v403, 0.70710677
    %v418 = vmul.f32 %v408, 0.70710677
    %v419 = vmul.f32 %v413, 0.70710677
    %v420 = vadd.f32 %v416, %v28
    %v421 = vadd.f32 %v417, %v29
    %v422 = vadd.f32 %v418, %v30
    %v423 = vadd.f32 %v419, %v31
    %vm424 = vcmask 130048
    %v425 = vsel %vm424, %v420, -inf
    %426 = vmax.xlane.f32.xlu0 %v425
    %v427 = vpop.xlane.xlu0 %426
    %v428 = vsel %vm424, %v421, -inf
    %429 = vmax.xlane.f32.xlu0 %v428
    %v430 = vpop.xlane.xlu0 %429
    %v431 = vsel %vm424, %v422, -inf
    %432 = vmax.xlane.f32.xlu0 %v431
    %v433 = vpop.xlane.xlu0 %432
    %v434 = vsel %vm424, %v423, -inf
    %435 = vmax.xlane.f32.xlu0 %v434
    %v436 = vpop.xlane.xlu0 %435
    %v437 = vsub.f32 %v420, %v427
    %v438 = vsub.f32 %v421, %v430
    %v439 = vsub.f32 %v422, %v433
    %v440 = vsub.f32 %v423, %v436
    %v441 = vmul.f32 %v437, 1.442695
    %v442 = vpow.pop %v441
    %v443 = vmul.f32 %v438, 1.442695
    %v444 = vpow.pop %v443
    %v445 = vmul.f32 %v439, 1.442695
    %v446 = vpow.pop %v445
    %v447 = vmul.f32 %v440, 1.442695
    %v448 = vpow.pop %v447
    %v449 = vsel %vm424, %v442, 0.0
    %450 = vadd.xlane.f32.xlu0 %v449
    %v451 = vpop.xlane.xlu0 %450
    %v452 = vsel %vm424, %v444, 0.0
    %453 = vadd.xlane.f32.xlu0 %v452
    %v454 = vpop.xlane.xlu0 %453
    %v455 = vsel %vm424, %v446, 0.0
    %456 = vadd.xlane.f32.xlu0 %v455
    %v457 = vpop.xlane.xlu0 %456
    %v458 = vsel %vm424, %v448, 0.0
    %459 = vadd.xlane.f32.xlu0 %v458
    %v460 = vpop.xlane.xlu0 %459
    %v461 = vrcp.pop %v451
    %v462 = vrcp.pop %v454
    %v463 = vrcp.pop %v457
    %v464 = vrcp.pop %v460
    %v465 = vmul.f32 %v442, %v461
    %v466 = vmul.f32 %v444, %v462
    %v467 = vmul.f32 %v446, %v463
    %v468 = vmul.f32 %v448, %v464
    %v470 = vsel %vm424, %v465, 0
    %v473 = vsel %vm424, %v466, 0
    %v476 = vsel %vm424, %v467, 0
    %v479 = vsel %vm424, %v468, 0
    %481 = vmatprep.subr.mxu0 0.0
    %482 = vmatpush1.msra.mxu0 %v293
    %483 = vmatprep.subr.mxu0 0.0
    %484 = vmatpush1.msra.mxu0 %v298
    %485 = vmatprep.subr.mxu0 0.0
    %486 = vmatpush1.msra.mxu0 0.0
    %487 = vmatprep.subr.mxu0 0.0
    %488 = vmatpush1.msra.mxu0 0.0
    %489 = vmatprep.subr.mxu0 0.0
    %490 = vmatpush1.msra.mxu0 0.0
    %491 = vmatprep.subr.mxu0 0.0
    %492 = vmatpush1.msra.mxu0 0.0
    %493 = vmatprep.subr.mxu0 0.0
    %494 = vmatpush1.msra.mxu0 0.0
    %495 = vmatprep.subr.mxu0 0.0
    %496 = vmatpush1.msra.mxu0 0.0
    %497 = vmatprep.subr.mxu0 0.0
    %498 = vmatpush1.msra.mxu0 0.0
    %499 = vmatprep.subr.mxu0 0.0
    %500 = vmatpush1.msra.mxu0 0.0
    %501 = vmatprep.subr.mxu0 0.0
    %502 = vmatpush1.msra.mxu0 0.0
    %503 = vmatprep.subr.mxu0 0.0
    %504 = vmatpush1.msra.mxu0 0.0
    %505 = vmatprep.subr.mxu0 0.0
    %506 = vmatpush1.msra.mxu0 0.0
    %507 = vmatprep.subr.mxu0 0.0
    %508 = vmatpush1.msra.mxu0 0.0
    %509 = vmatprep.subr.mxu0 0.0
    %510 = vmatpush1.msra.mxu0 0.0
    %511 = vmatprep.subr.mxu0 0.0
    %512 = vmatpush1.msra.mxu0 0.0
    %513 = vmatprep.subr.mxu0 0.0
    %514 = vmatpush1.msra.mxu0 0.0
    %515 = vmatprep.subr.mxu0 0.0
    %516 = vmatpush1.msra.mxu0 0.0
    %517 = vmatprep.subr.mxu0 0.0
    %518 = vmatpush1.msra.mxu0 0.0
    %519 = vmatprep.subr.mxu0 0.0
    %520 = vmatpush1.msra.mxu0 0.0
    %521 = vmatprep.subr.mxu0 0.0
    %522 = vmatpush1.msra.mxu0 0.0
    %523 = vmatprep.subr.mxu0 0.0
    %524 = vmatpush1.msra.mxu0 0.0
    %525 = vmatprep.subr.mxu0 0.0
    %526 = vmatpush1.msra.mxu0 0.0
    %527 = vmatprep.subr.mxu0 0.0
    %528 = vmatpush1.msra.mxu0 0.0
    %529 = vmatprep.subr.mxu0 0.0
    %530 = vmatpush1.msra.mxu0 0.0
    %531 = vmatprep.subr.mxu0 0.0
    %532 = vmatpush1.msra.mxu0 0.0
    %533 = vmatprep.subr.mxu0 0.0
    %534 = vmatpush1.msra.mxu0 0.0
    %535 = vmatprep.subr.mxu0 0.0
    %536 = vmatpush1.msra.mxu0 0.0
    %537 = vmatprep.subr.mxu0 0.0
    %538 = vmatpush1.msra.mxu0 0.0
    %539 = vmatprep.subr.mxu0 0.0
    %540 = vmatpush1.msra.mxu0 0.0
    %541 = vmatprep.subr.mxu0 0.0
    %542 = vmatpush1.msra.mxu0 0.0
    %543 = vmatprep.subr.mxu0 0.0
    %544 = vmatpush1.msra.mxu0 0.0
    %545 = vmatprep.mubr.f32.mxu0 0.0
    %546 = vmatmul.mubr.f32.gmra.mrb[0].mxu0 %v470
    %v547 = vpop.f32.mrb[0].mxu0
    %v548 = vadd.f32 0.0, %v547
    %v549 = vpop.f32.mrb[0].mxu0
    %550 = vmatprep.mubr.f32.mxu0 0.0
    %551 = vmatmul.mubr.f32.gmra.mrb[0].mxu0 %v473
    %v552 = vpop.f32.mrb[0].mxu0
    %v553 = vadd.f32 0.0, %v552
    %v554 = vpop.f32.mrb[0].mxu0
    %555 = vmatprep.mubr.f32.mxu0 0.0
    %556 = vmatmul.mubr.f32.gmra.mrb[0].mxu0 %v476
    %v557 = vpop.f32.mrb[0].mxu0
    %v558 = vadd.f32 0.0, %v557
    %v559 = vpop.f32.mrb[0].mxu0
    %560 = vmatprep.mubr.f32.mxu0 0.0
    %561 = vmatmul.mubr.f32.gmra.mrb[0].mxu0 %v479
    %v562 = vpop.f32.mrb[0].mxu0
    %v563 = vadd.f32 0.0, %v562
    %v564 = vpop.f32.mrb[0].mxu0
    %565 = vdwg.mxu0
    %v566 = vmul.f32 %v548, %v304
    %v567 = vmul.f32 %v553, %v304
    %v568 = vmul.f32 %v558, %v310
    %v569 = vmul.f32 %v563, %v310
    %v570 = vadd.f32 %v566, %v568
    %v571 = vadd.f32 %v567, %v569
    %v572 = vld [vmem:[#allocation2 + $0x30] sm:$0xf]
    %v573 = vld [vmem:[#allocation2 + $0x38] sm:$0x1]
    %v574 = vlaneseq
    %v575 = vshrl.u32 %v574, 7
    %v576 = vsub.s32 0, %v575
    %v577 = vrot.slane %v573, %v576
    %v579 = vsel %vm47, %v570, 0
    %v582 = vsel %vm47, %v571, 0
    %v585 = vsel %vm54, %v572, 0
    %587 = vmatprep.subr.mxu0 0.0
    %588 = vmatpush1.msra.mxu0 %v585
    %589 = vmatprep.subr.mxu0 0.0
    %590 = vmatpush1.msra.mxu0 0.0
    %591 = vmatprep.subr.mxu0 0.0
    %592 = vmatpush1.msra.mxu0 0.0
    %593 = vmatprep.subr.mxu0 0.0
    %594 = vmatpush1.msra.mxu0 0.0
    %595 = vmatprep.subr.mxu0 0.0
    %596 = vmatpush1.msra.mxu0 0.0
    %597 = vmatprep.subr.mxu0 0.0
    %598 = vmatpush1.msra.mxu0 0.0
    %599 = vmatprep.subr.mxu0 0.0
    %600 = vmatpush1.msra.mxu0 0.0
    %601 = vmatprep.subr.mxu0 0.0
    %602 = vmatpush1.msra.mxu0 0.0
    %603 = vmatprep.subr.mxu0 0.0
    %604 = vmatpush1.msra.mxu0 0.0
    %605 = vmatprep.subr.mxu0 0.0
    %606 = vmatpush1.msra.mxu0 0.0
    %607 = vmatprep.subr.mxu0 0.0
    %608 = vmatpush1.msra.mxu0 0.0
    %609 = vmatprep.subr.mxu0 0.0
    %610 = vmatpush1.msra.mxu0 0.0
    %611 = vmatprep.subr.mxu0 0.0
    %612 = vmatpush1.msra.mxu0 0.0
    %613 = vmatprep.subr.mxu0 0.0
    %614 = vmatpush1.msra.mxu0 0.0
    %615 = vmatprep.subr.mxu0 0.0
    %616 = vmatpush1.msra.mxu0 0.0
    %617 = vmatprep.subr.mxu0 0.0
    %618 = vmatpush1.msra.mxu0 0.0
    %619 = vmatprep.subr.mxu0 0.0
    %620 = vmatpush1.msra.mxu0 0.0
    %621 = vmatprep.subr.mxu0 0.0
    %622 = vmatpush1.msra.mxu0 0.0
    %623 = vmatprep.subr.mxu0 0.0
    %624 = vmatpush1.msra.mxu0 0.0
    %625 = vmatprep.subr.mxu0 0.0
    %626 = vmatpush1.msra.mxu0 0.0
    %627 = vmatprep.subr.mxu0 0.0
    %628 = vmatpush1.msra.mxu0 0.0
    %629 = vmatprep.subr.mxu0 0.0
    %630 = vmatpush1.msra.mxu0 0.0
    %631 = vmatprep.subr.mxu0 0.0
    %632 = vmatpush1.msra.mxu0 0.0
    %633 = vmatprep.subr.mxu0 0.0
    %634 = vmatpush1.msra.mxu0 0.0
    %635 = vmatprep.subr.mxu0 0.0
    %636 = vmatpush1.msra.mxu0 0.0
    %637 = vmatprep.subr.mxu0 0.0
    %638 = vmatpush1.msra.mxu0 0.0
    %639 = vmatprep.subr.mxu0 0.0
    %640 = vmatpush1.msra.mxu0 0.0
    %641 = vmatprep.subr.mxu0 0.0
    %642 = vmatpush1.msra.mxu0 0.0
    %643 = vmatprep.subr.mxu0 0.0
    %644 = vmatpush1.msra.mxu0 0.0
    %645 = vmatprep.subr.mxu0 0.0
    %646 = vmatpush1.msra.mxu0 0.0
    %647 = vmatprep.subr.mxu0 0.0
    %648 = vmatpush1.msra.mxu0 0.0
    %649 = vmatprep.subr.mxu0 0.0
    %650 = vmatpush1.msra.mxu0 0.0
    %651 = vmatprep.mubr.f32.mxu0 0.0
    %652 = vmatmul.mubr.f32.gmra.mrb[0].mxu0 %v579
    %v653 = vpop.f32.mrb[0].mxu0
    %v654 = vadd.f32 %v577, %v653
    %v655 = vpop.f32.mrb[0].mxu0
    %656 = vmatprep.mubr.f32.mxu0 0.0
    %657 = vmatmul.mubr.f32.gmra.mrb[0].mxu0 %v582
    %v658 = vpop.f32.mrb[0].mxu0
    %v659 = vadd.f32 %v577, %v658
    %v660 = vpop.f32.mrb[0].mxu0
    %661 = vdwg.mxu0
    %v662 = vadd.f32 %v39, %v654
    %v663 = vadd.f32 %v40, %v659
    %v664 = vsel %vm47, %v662, 0.0
    %665 = vadd.xlane.f32.xlu0 %v664
    %v666 = vpop.xlane.xlu0 %665
    %v667 = vsel %vm47, %v663, 0.0
    %668 = vadd.xlane.f32.xlu0 %v667
    %v669 = vpop.xlane.xlu0 %668
    %v670 = vrcp.pop 4.0
    %v671 = vmul.f32 %v666, %v670
    %v672 = vmul.f32 %v669, %v670
    %v673 = vsub.f32 %v662, %v671
    %v674 = vsub.f32 %v663, %v672
    %v675 = vmul.f32 %v673, %v673
    %v676 = vmul.f32 %v674, %v674
    %v677 = vsel %vm47, %v675, 0.0
    %678 = vadd.xlane.f32.xlu0 %v677
    %v679 = vpop.xlane.xlu0 %678
    %v680 = vsel %vm47, %v676, 0.0
    %681 = vadd.xlane.f32.xlu0 %v680
    %v682 = vpop.xlane.xlu0 %681
    %v683 = vmul.f32 %v679, %v670
    %v684 = vmul.f32 %v682, %v670
    %v685 = vadd.f32 %v683, 1e-05
    %v686 = vadd.f32 %v684, 1e-05
    %v687 = vrsqrt.pop %v685
    %v688 = vrsqrt.pop %v686
    %v689 = vmul.f32 %v673, %v687
    %v690 = vmul.f32 %v674, %v688
    %v691 = vld [vmem:[#allocation2 + $0x78] sm:$0x1]
    %v692 = vlaneseq
    %v693 = vshrl.u32 %v692, 7
    %v694 = vsub.s32 0, %v693
    %v695 = vrot.slane %v691, %v694
    %v696 = vmul.f32 %v689, %v695
    %v697 = vmul.f32 %v690, %v695
    %v698 = vld [vmem:[#allocation2 + $0x80] sm:$0x1]
    %v699 = vlaneseq
    %v700 = vshrl.u32 %v699, 7
    %v701 = vsub.s32 0, %v700
    %v702 = vrot.slane %v698, %v701
    %v703 = vadd.f32 %v696, %v702
    %v704 = vadd.f32 %v697, %v702
    %v705 = vld [vmem:[#allocation2 + $0x40] sm:$0xf]
    %v706 = vld [vmem:[#allocation2 + $0x48] sm:$0x1]
    %v707 = vlaneseq
    %v708 = vshrl.u32 %v707, 7
    %v709 = vsub.s32 0, %v708
    %v710 = vrot.slane %v706, %v709
    %v712 = vsel %vm47, %v703, 0
    %v715 = vsel %vm47, %v704, 0
    %v718 = vsel %vm54, %v705, 0
    %720 = vmatprep.subr.mxu0 0.0
    %721 = vmatpush1.msra.mxu0 %v718
    %722 = vmatprep.subr.mxu0 0.0
    %723 = vmatpush1.msra.mxu0 0.0
    %724 = vmatprep.subr.mxu0 0.0
    %725 = vmatpush1.msra.mxu0 0.0
    %726 = vmatprep.subr.mxu0 0.0
    %727 = vmatpush1.msra.mxu0 0.0
    %728 = vmatprep.subr.mxu0 0.0
    %729 = vmatpush1.msra.mxu0 0.0
    %730 = vmatprep.subr.mxu0 0.0
    %731 = vmatpush1.msra.mxu0 0.0
    %732 = vmatprep.subr.mxu0 0.0
    %733 = vmatpush1.msra.mxu0 0.0
    %734 = vmatprep.subr.mxu0 0.0
    %735 = vmatpush1.msra.mxu0 0.0
    %736 = vmatprep.subr.mxu0 0.0
    %737 = vmatpush1.msra.mxu0 0.0
    %738 = vmatprep.subr.mxu0 0.0
    %739 = vmatpush1.msra.mxu0 0.0
    %740 = vmatprep.subr.mxu0 0.0
    %741 = vmatpush1.msra.mxu0 0.0
    %742 = vmatprep.subr.mxu0 0.0
    %743 = vmatpush1.msra.mxu0 0.0
    %744 = vmatprep.subr.mxu0 0.0
    %745 = vmatpush1.msra.mxu0 0.0
    %746 = vmatprep.subr.mxu0 0.0
    %747 = vmatpush1.msra.mxu0 0.0
    %748 = vmatprep.subr.mxu0 0.0
    %749 = vmatpush1.msra.mxu0 0.0
    %750 = vmatprep.subr.mxu0 0.0
    %751 = vmatpush1.msra.mxu0 0.0
    %752 = vmatprep.subr.mxu0 0.0
    %753 = vmatpush1.msra.mxu0 0.0
    %754 = vmatprep.subr.mxu0 0.0
    %755 = vmatpush1.msra.mxu0 0.0
    %756 = vmatprep.subr.mxu0 0.0
    %757 = vmatpush1.msra.mxu0 0.0
    %758 = vmatprep.subr.mxu0 0.0
    %759 = vmatpush1.msra.mxu0 0.0
    %760 = vmatprep.subr.mxu0 0.0
    %761 = vmatpush1.msra.mxu0 0.0
    %762 = vmatprep.subr.mxu0 0.0
    %763 = vmatpush1.msra.mxu0 0.0
    %764 = vmatprep.subr.mxu0 0.0
    %765 = vmatpush1.msra.mxu0 0.0
    %766 = vmatprep.subr.mxu0 0.0
    %767 = vmatpush1.msra.mxu0 0.0
    %768 = vmatprep.subr.mxu0 0.0
    %769 = vmatpush1.msra.mxu0 0.0
    %770 = vmatprep.subr.mxu0 0.0
    %771 = vmatpush1.msra.mxu0 0.0
    %772 = vmatprep.subr.mxu0 0.0
    %773 = vmatpush1.msra.mxu0 0.0
    %774 = vmatprep.subr.mxu0 0.0
    %775 = vmatpush1.msra.mxu0 0.0
    %776 = vmatprep.subr.mxu0 0.0
    %777 = vmatpush1.msra.mxu0 0.0
    %778 = vmatprep.subr.mxu0 0.0
    %779 = vmatpush1.msra.mxu0 0.0
    %780 = vmatprep.subr.mxu0 0.0
    %781 = vmatpush1.msra.mxu0 0.0
    %782 = vmatprep.subr.mxu0 0.0
    %783 = vmatpush1.msra.mxu0 0.0
    %784 = vmatprep.mubr.f32.mxu0 0.0
    %785 = vmatmul.mubr.f32.gmra.mrb[0].mxu0 %v712
    %v786 = vpop.f32.mrb[0].mxu0
    %v787 = vadd.f32 %v710, %v786
    %v788 = vpop.f32.mrb[0].mxu0
    %789 = vmatprep.mubr.f32.mxu0 0.0
    %790 = vmatmul.mubr.f32.gmra.mrb[0].mxu0 %v715
    %v791 = vpop.f32.mrb[0].mxu0
    %v792 = vadd.f32 %v710, %v791
    %v793 = vpop.f32.mrb[0].mxu0
    %794 = vdwg.mxu0
    %v795 = vmax.f32 %v787, 0.0
    %v796 = vmax.f32 %v792, 0.0
    %v797 = vld [vmem:[#allocation2 + $0x50] sm:$0xff]
    %v798 = vld [vmem:[#allocation2 + $0x58] sm:$0xff]
    %v799 = vld [vmem:[#allocation2 + $0x60] sm:$0xff]
    %v800 = vld [vmem:[#allocation2 + $0x68] sm:$0xff]
    %v801 = vld [vmem:[#allocation2 + $0x70] sm:$0x1]
    %v802 = vlaneseq
    %v803 = vshrl.u32 %v802, 7
    %v804 = vsub.s32 0, %v803
    %v805 = vrot.slane %v801, %v804
    %vm806 = vcmask 261120
    %v808 = vsel %vm806, %v795, 0
    %v811 = vsel %vm806, %v796, 0
    %813 = vmatprep.subr.mxu0 0.0
    %814 = vmatpush1.msra.mxu0 %v797
    %815 = vmatprep.subr.mxu0 0.0
    %816 = vmatpush1.msra.mxu0 %v798
    %817 = vmatprep.subr.mxu0 0.0
    %818 = vmatpush1.msra.mxu0 %v799
    %819 = vmatprep.subr.mxu0 0.0
    %820 = vmatpush1.msra.mxu0 %v800
    %821 = vmatprep.subr.mxu0 0.0
    %822 = vmatpush1.msra.mxu0 0.0
    %823 = vmatprep.subr.mxu0 0.0
    %824 = vmatpush1.msra.mxu0 0.0
    %825 = vmatprep.subr.mxu0 0.0
    %826 = vmatpush1.msra.mxu0 0.0
    %827 = vmatprep.subr.mxu0 0.0
    %828 = vmatpush1.msra.mxu0 0.0
    %829 = vmatprep.subr.mxu0 0.0
    %830 = vmatpush1.msra.mxu0 0.0
    %831 = vmatprep.subr.mxu0 0.0
    %832 = vmatpush1.msra.mxu0 0.0
    %833 = vmatprep.subr.mxu0 0.0
    %834 = vmatpush1.msra.mxu0 0.0
    %835 = vmatprep.subr.mxu0 0.0
    %836 = vmatpush1.msra.mxu0 0.0
    %837 = vmatprep.subr.mxu0 0.0
    %838 = vmatpush1.msra.mxu0 0.0
    %839 = vmatprep.subr.mxu0 0.0
    %840 = vmatpush1.msra.mxu0 0.0
    %841 = vmatprep.subr.mxu0 0.0
    %842 = vmatpush1.msra.mxu0 0.0
    %843 = vmatprep.subr.mxu0 0.0
    %844 = vmatpush1.msra.mxu0 0.0
    %845 = vmatprep.subr.mxu0 0.0
    %846 = vmatpush1.msra.mxu0 0.0
    %847 = vmatprep.subr.mxu0 0.0
    %848 = vmatpush1.msra.mxu0 0.0
    %849 = vmatprep.subr.mxu0 0.0
    %850 = vmatpush1.msra.mxu0 0.0
    %851 = vmatprep.subr.mxu0 0.0
    %852 = vmatpush1.msra.mxu0 0.0
    %853 = vmatprep.subr.mxu0 0.0
    %854 = vmatpush1.msra.mxu0 0.0
    %855 = vmatprep.subr.mxu0 0.0
    %856 = vmatpush1.msra.mxu0 0.0
    %857 = vmatprep.subr.mxu0 0.0
    %858 = vmatpush1.msra.mxu0 0.0
    %859 = vmatprep.subr.mxu0 0.0
    %860 = vmatpush1.msra.mxu0 0.0
    %861 = vmatprep.subr.mxu0 0.0
    %862 = vmatpush1.msra.mxu0 0.0
    %863 = vmatprep.subr.mxu0 0.0
    %864 = vmatpush1.msra.mxu0 0.0
    %865 = vmatprep.subr.mxu0 0.0
    %866 = vmatpush1.msra.mxu0 0.0
    %867 = vmatprep.subr.mxu0 0.0
    %868 = vmatpush1.msra.mxu0 0.0
    %869 = vmatprep.subr.mxu0 0.0
    %870 = vmatpush1.msra.mxu0 0.0
    %871 = vmatprep.subr.mxu0 0.0
    %872 = vmatpush1.msra.mxu0 0.0
    %873 = vmatprep.subr.mxu0 0.0
    %874 = vmatpush1.msra.mxu0 0.0
    %875 = vmatprep.subr.mxu0 0.0
    %876 = vmatpush1.msra.mxu0 0.0
    %877 = vmatprep.mubr.f32.mxu0 0.0
    %878 = vmatmul.mubr.f32.gmra.mrb[0].mxu0 %v808
    %v879 = vpop.f32.mrb[0].mxu0
    %v880 = vadd.f32 %v805, %v879
    %v881 = vpop.f32.mrb[0].mxu0
    %882 = vmatprep.mubr.f32.mxu0 0.0
    %883 = vmatmul.mubr.f32.gmra.mrb[0].mxu0 %v811
    %v884 = vpop.f32.mrb[0].mxu0
    %v885 = vadd.f32 %v805, %v884
    %v886 = vpop.f32.mrb[0].mxu0
    %887 = vdwg.mxu0
    %v888 = vadd.f32 %v703, %v880
    %v889 = vadd.f32 %v704, %v885
    %v890 = vsel %vm47, %v888, 0.0
    %891 = vadd.xlane.f32.xlu0 %v890
    %v892 = vpop.xlane.xlu0 %891
    %v893 = vsel %vm47, %v889, 0.0
    %894 = vadd.xlane.f32.xlu0 %v893
    %v895 = vpop.xlane.xlu0 %894
    %v896 = vmul.f32 %v892, %v670
    %v897 = vmul.f32 %v895, %v670
    %v898 = vsub.f32 %v888, %v896
    %v899 = vsub.f32 %v889, %v897
    %v900 = vmul.f32 %v898, %v898
    %v901 = vmul.f32 %v899, %v899
    %v902 = vsel %vm47, %v900, 0.0
    %903 = vadd.xlane.f32.xlu0 %v902
    %v904 = vpop.xlane.xlu0 %903
    %v905 = vsel %vm47, %v901, 0.0
    %906 = vadd.xlane.f32.xlu0 %v905
    %v907 = vpop.xlane.xlu0 %906
    %v908 = vmul.f32 %v904, %v670
    %v909 = vmul.f32 %v907, %v670
    %v910 = vadd.f32 %v908, 1e-05
    %v911 = vadd.f32 %v909, 1e-05
    %v912 = vrsqrt.pop %v910
    %v913 = vrsqrt.pop %v911
    %v914 = vmul.f32 %v898, %v912
    %v915 = vmul.f32 %v899, %v913
    %v916 = vld [vmem:[#allocation2 + $0x88] sm:$0x1]
    %v917 = vlaneseq
    %v918 = vshrl.u32 %v917, 7
    %v919 = vsub.s32 0, %v918
    %v920 = vrot.slane %v916, %v919
    %v921 = vmul.f32 %v914, %v920
    %v922 = vmul.f32 %v915, %v920
    %v923 = vld [vmem:[#allocation2 + $0x90] sm:$0x1]
    %v924 = vlaneseq
    %v925 = vshrl.u32 %v924, 7
    %v926 = vsub.s32 0, %v925
    %v927 = vrot.slane %v923, %v926
    %v928 = vadd.f32 %v921, %v927
    %v929 = vadd.f32 %v922, %v927
    %v930 = vld [vmem:[#allocation2 + $0x98] sm:$0xf]
    %v931 = vld [vmem:[#allocation2 + $0xa0] sm:$0x1]
    %v932 = vlaneseq
    %v933 = vshrl.u32 %v932, 7
    %v934 = vsub.s32 0, %v933
    %v935 = vrot.slane %v931, %v934
    %v937 = vsel %vm47, %v928, 0
    %v940 = vsel %vm47, %v929, 0
    %v943 = vsel %vm54, %v930, 0
    %945 = vmatprep.subr.mxu0 0.0
    %946 = vmatpush1.msra.mxu0 %v943
    %947 = vmatprep.subr.mxu0 0.0
    %948 = vmatpush1.msra.mxu0 0.0
    %949 = vmatprep.subr.mxu0 0.0
    %950 = vmatpush1.msra.mxu0 0.0
    %951 = vmatprep.subr.mxu0 0.0
    %952 = vmatpush1.msra.mxu0 0.0
    %953 = vmatprep.subr.mxu0 0.0
    %954 = vmatpush1.msra.mxu0 0.0
    %955 = vmatprep.subr.mxu0 0.0
    %956 = vmatpush1.msra.mxu0 0.0
    %957 = vmatprep.subr.mxu0 0.0
    %958 = vmatpush1.msra.mxu0 0.0
    %959 = vmatprep.subr.mxu0 0.0
    %960 = vmatpush1.msra.mxu0 0.0
    %961 = vmatprep.subr.mxu0 0.0
    %962 = vmatpush1.msra.mxu0 0.0
    %963 = vmatprep.subr.mxu0 0.0
    %964 = vmatpush1.msra.mxu0 0.0
    %965 = vmatprep.subr.mxu0 0.0
    %966 = vmatpush1.msra.mxu0 0.0
    %967 = vmatprep.subr.mxu0 0.0
    %968 = vmatpush1.msra.mxu0 0.0
    %969 = vmatprep.subr.mxu0 0.0
    %970 = vmatpush1.msra.mxu0 0.0
    %971 = vmatprep.subr.mxu0 0.0
    %972 = vmatpush1.msra.mxu0 0.0
    %973 = vmatprep.subr.mxu0 0.0
    %974 = vmatpush1.msra.mxu0 0.0
    %975 = vmatprep.subr.mxu0 0.0
    %976 = vmatpush1.msra.mxu0 0.0
    %977 = vmatprep.subr.mxu0 0.0
    %978 = vmatpush1.msra.mxu0 0.0
    %979 = vmatprep.subr.mxu0 0.0
    %980 = vmatpush1.msra.mxu0 0.0
    %981 = vmatprep.subr.mxu0 0.0
    %982 = vmatpush1.msra.mxu0 0.0
    %983 = vmatprep.subr.mxu0 0.0
    %984 = vmatpush1.msra.mxu0 0.0
    %985 = vmatprep.subr.mxu0 0.0
    %986 = vmatpush1.msra.mxu0 0.0
    %987 = vmatprep.subr.mxu0 0.0
    %988 = vmatpush1.msra.mxu0 0.0
    %989 = vmatprep.subr.mxu0 0.0
    %990 = vmatpush1.msra.mxu0 0.0
    %991 = vmatprep.subr.mxu0 0.0
    %992 = vmatpush1.msra.mxu0 0.0
    %993 = vmatprep.subr.mxu0 0.0
    %994 = vmatpush1.msra.mxu0 0.0
    %995 = vmatprep.subr.mxu0 0.0
    %996 = vmatpush1.msra.mxu0 0.0
    %997 = vmatprep.subr.mxu0 0.0
    %998 = vmatpush1.msra.mxu0 0.0
    %999 = vmatprep.subr.mxu0 0.0
    %1000 = vmatpush1.msra.mxu0 0.0
    %1001 = vmatprep.subr.mxu0 0.0
    %1002 = vmatpush1.msra.mxu0 0.0
    %1003 = vmatprep.subr.mxu0 0.0
    %1004 = vmatpush1.msra.mxu0 0.0
    %1005 = vmatprep.subr.mxu0 0.0
    %1006 = vmatpush1.msra.mxu0 0.0
    %1007 = vmatprep.subr.mxu0 0.0
    %1008 = vmatpush1.msra.mxu0 0.0
    %1009 = vmatprep.mubr.f32.mxu0 0.0
    %1010 = vmatmul.mubr.f32.gmra.mrb[0].mxu0 %v937
    %v1011 = vpop.f32.mrb[0].mxu0
    %v1012 = vadd.f32 %v935, %v1011
    %v1013 = vpop.f32.mrb[0].mxu0
    %1014 = vmatprep.mubr.f32.mxu0 0.0
    %1015 = vmatmul.mubr.f32.gmra.mrb[0].mxu0 %v940
    %v1016 = vpop.f32.mrb[0].mxu0
    %v1017 = vadd.f32 %v935, %v1016
    %v1018 = vpop.f32.mrb[0].mxu0
    %1019 = vdwg.mxu0
    %v1020 = vld [vmem:[#allocation2 + $0xa8] sm:$0xf]
    %v1021 = vld [vmem:[#allocation2 + $0xb0] sm:$0x1]
    %v1022 = vlaneseq
    %v1023 = vshrl.u32 %v1022, 7
    %v1024 = vsub.s32 0, %v1023
    %v1025 = vrot.slane %v1021, %v1024
    %v1027 = vsel %vm54, %v1020, 0
    %1029 = vmatprep.subr.mxu0 0.0
    %1030 = vmatpush1.msra.mxu0 %v1027
    %1031 = vmatprep.subr.mxu0 0.0
    %1032 = vmatpush1.msra.mxu0 0.0
    %1033 = vmatprep.subr.mxu0 0.0
    %1034 = vmatpush1.msra.mxu0 0.0
    %1035 = vmatprep.subr.mxu0 0.0
    %1036 = vmatpush1.msra.mxu0 0.0
    %1037 = vmatprep.subr.mxu0 0.0
    %1038 = vmatpush1.msra.mxu0 0.0
    %1039 = vmatprep.subr.mxu0 0.0
    %1040 = vmatpush1.msra.mxu0 0.0
    %1041 = vmatprep.subr.mxu0 0.0
    %1042 = vmatpush1.msra.mxu0 0.0
    %1043 = vmatprep.subr.mxu0 0.0
    %1044 = vmatpush1.msra.mxu0 0.0
    %1045 = vmatprep.subr.mxu0 0.0
    %1046 = vmatpush1.msra.mxu0 0.0
    %1047 = vmatprep.subr.mxu0 0.0
    %1048 = vmatpush1.msra.mxu0 0.0
    %1049 = vmatprep.subr.mxu0 0.0
    %1050 = vmatpush1.msra.mxu0 0.0
    %1051 = vmatprep.subr.mxu0 0.0
    %1052 = vmatpush1.msra.mxu0 0.0
    %1053 = vmatprep.subr.mxu0 0.0
    %1054 = vmatpush1.msra.mxu0 0.0
    %1055 = vmatprep.subr.mxu0 0.0
    %1056 = vmatpush1.msra.mxu0 0.0
    %1057 = vmatprep.subr.mxu0 0.0
    %1058 = vmatpush1.msra.mxu0 0.0
    %1059 = vmatprep.subr.mxu0 0.0
    %1060 = vmatpush1.msra.mxu0 0.0
    %1061 = vmatprep.subr.mxu0 0.0
    %1062 = vmatpush1.msra.mxu0 0.0
    %1063 = vmatprep.subr.mxu0 0.0
    %1064 = vmatpush1.msra.mxu0 0.0
    %1065 = vmatprep.subr.mxu0 0.0
    %1066 = vmatpush1.msra.mxu0 0.0
    %1067 = vmatprep.subr.mxu0 0.0
    %1068 = vmatpush1.msra.mxu0 0.0
    %1069 = vmatprep.subr.mxu0 0.0
    %1070 = vmatpush1.msra.mxu0 0.0
    %1071 = vmatprep.subr.mxu0 0.0
    %1072 = vmatpush1.msra.mxu0 0.0
    %1073 = vmatprep.subr.mxu0 0.0
    %1074 = vmatpush1.msra.mxu0 0.0
    %1075 = vmatprep.subr.mxu0 0.0
    %1076 = vmatpush1.msra.mxu0 0.0
    %1077 = vmatprep.subr.mxu0 0.0
    %1078 = vmatpush1.msra.mxu0 0.0
    %1079 = vmatprep.subr.mxu0 0.0
    %1080 = vmatpush1.msra.mxu0 0.0
    %1081 = vmatprep.subr.mxu0 0.0
    %1082 = vmatpush1.msra.mxu0 0.0
    %1083 = vmatprep.subr.mxu0 0.0
    %1084 = vmatpush1.msra.mxu0 0.0
    %1085 = vmatprep.subr.mxu0 0.0
    %1086 = vmatpush1.msra.mxu0 0.0
    %1087 = vmatprep.subr.mxu0 0.0
    %1088 = vmatpush1.msra.mxu0 0.0
    %1089 = vmatprep.subr.mxu0 0.0
    %1090 = vmatpush1.msra.mxu0 0.0
    %1091 = vmatprep.subr.mxu0 0.0
    %1092 = vmatpush1.msra.mxu0 0.0
    %1093 = vmatprep.mubr.f32.mxu0 0.0
    %1094 = vmatmul.mubr.f32.gmra.mrb[0].mxu0 %v937
    %v1095 = vpop.f32.mrb[0].mxu0
    %v1096 = vadd.f32 %v1025, %v1095
    %v1097 = vpop.f32.mrb[0].mxu0
    %1098 = vmatprep.mubr.f32.mxu0 0.0
    %1099 = vmatmul.mubr.f32.gmra.mrb[0].mxu0 %v940
    %v1100 = vpop.f32.mrb[0].mxu0
    %v1101 = vadd.f32 %v1025, %v1100
    %v1102 = vpop.f32.mrb[0].mxu0
    %1103 = vdwg.mxu0
    %v1104 = vld [vmem:[#allocation2 + $0xb8] sm:$0xf]
    %v1105 = vld [vmem:[#allocation2 + $0xc0] sm:$0x1]
    %v1106 = vlaneseq
    %v1107 = vshrl.u32 %v1106, 7
    %v1108 = vsub.s32 0, %v1107
    %v1109 = vrot.slane %v1105, %v1108
    %v1111 = vsel %vm54, %v1104, 0
    %1113 = vmatprep.subr.mxu0 0.0
    %1114 = vmatpush1.msra.mxu0 %v1111
    %1115 = vmatprep.subr.mxu0 0.0
    %1116 = vmatpush1.msra.mxu0 0.0
    %1117 = vmatprep.subr.mxu0 0.0
    %1118 = vmatpush1.msra.mxu0 0.0
    %1119 = vmatprep.subr.mxu0 0.0
    %1120 = vmatpush1.msra.mxu0 0.0
    %1121 = vmatprep.subr.mxu0 0.0
    %1122 = vmatpush1.msra.mxu0 0.0
    %1123 = vmatprep.subr.mxu0 0.0
    %1124 = vmatpush1.msra.mxu0 0.0
    %1125 = vmatprep.subr.mxu0 0.0
    %1126 = vmatpush1.msra.mxu0 0.0
    %1127 = vmatprep.subr.mxu0 0.0
    %1128 = vmatpush1.msra.mxu0 0.0
    %1129 = vmatprep.subr.mxu0 0.0
    %1130 = vmatpush1.msra.mxu0 0.0
    %1131 = vmatprep.subr.mxu0 0.0
    %1132 = vmatpush1.msra.mxu0 0.0
    %1133 = vmatprep.subr.mxu0 0.0
    %1134 = vmatpush1.msra.mxu0 0.0
    %1135 = vmatprep.subr.mxu0 0.0
    %1136 = vmatpush1.msra.mxu0 0.0
    %1137 = vmatprep.subr.mxu0 0.0
    %1138 = vmatpush1.msra.mxu0 0.0
    %1139 = vmatprep.subr.mxu0 0.0
    %1140 = vmatpush1.msra.mxu0 0.0
    %1141 = vmatprep.subr.mxu0 0.0
    %1142 = vmatpush1.msra.mxu0 0.0
    %1143 = vmatprep.subr.mxu0 0.0
    %1144 = vmatpush1.msra.mxu0 0.0
    %1145 = vmatprep.subr.mxu0 0.0
    %1146 = vmatpush1.msra.mxu0 0.0
    %1147 = vmatprep.subr.mxu0 0.0
    %1148 = vmatpush1.msra.mxu0 0.0
    %1149 = vmatprep.subr.mxu0 0.0
    %1150 = vmatpush1.msra.mxu0 0.0
    %1151 = vmatprep.subr.mxu0 0.0
    %1152 = vmatpush1.msra.mxu0 0.0
    %1153 = vmatprep.subr.mxu0 0.0
    %1154 = vmatpush1.msra.mxu0 0.0
    %1155 = vmatprep.subr.mxu0 0.0
    %1156 = vmatpush1.msra.mxu0 0.0
    %1157 = vmatprep.subr.mxu0 0.0
    %1158 = vmatpush1.msra.mxu0 0.0
    %1159 = vmatprep.subr.mxu0 0.0
    %1160 = vmatpush1.msra.mxu0 0.0
    %1161 = vmatprep.subr.mxu0 0.0
    %1162 = vmatpush1.msra.mxu0 0.0
    %1163 = vmatprep.subr.mxu0 0.0
    %1164 = vmatpush1.msra.mxu0 0.0
    %1165 = vmatprep.subr.mxu0 0.0
    %1166 = vmatpush1.msra.mxu0 0.0
    %1167 = vmatprep.subr.mxu0 0.0
    %1168 = vmatpush1.msra.mxu0 0.0
    %1169 = vmatprep.subr.mxu0 0.0
    %1170 = vmatpush1.msra.mxu0 0.0
    %1171 = vmatprep.subr.mxu0 0.0
    %1172 = vmatpush1.msra.mxu0 0.0
    %1173 = vmatprep.subr.mxu0 0.0
    %1174 = vmatpush1.msra.mxu0 0.0
    %1175 = vmatprep.subr.mxu0 0.0
    %1176 = vmatpush1.msra.mxu0 0.0
    %1177 = vmatprep.mubr.f32.mxu0 0.0
    %1178 = vmatmul.mubr.f32.gmra.mrb[0].mxu0 %v937
    %v1179 = vpop.f32.mrb[0].mxu0
    %v1180 = vadd.f32 %v1109, %v1179
    %v1181 = vpop.f32.mrb[0].mxu0
    %1182 = vmatprep.mubr.f32.mxu0 0.0
    %1183 = vmatmul.mubr.f32.gmra.mrb[0].mxu0 %v940
    %v1184 = vpop.f32.mrb[0].mxu0
    %v1185 = vadd.f32 %v1109, %v1184
    %v1186 = vpop.f32.mrb[0].mxu0
    %1187 = vdwg.mxu0
    %v1188 = vmul.f32 %v1012, %v304
    %v1189 = vmul.f32 %v1017, %v304
    %v1190 = vmul.f32 %v1012, %v310
    %v1191 = vmul.f32 %v1017, %v310
    %v1193 = vsel %vm47, %v1188, 0
    %v1196 = vsel %vm47, %v1189, 0
    %v1199 = vsel %vm47, %v1190, 0
    %v1202 = vsel %vm47, %v1191, 0
    %v1205 = vsel %vm47, %v1096, 0
    %v1208 = vsel %vm47, %v1101, 0
    %1210 = vmatprep.subr.mxu0 0.0
    %1211 = vmatpush1.xpose.msra.mxu0 %v1205
    %1212 = vmatprep.subr.mxu0 0.0
    %1213 = vmatpush1.xpose.msra.mxu0 %v1208
    %1214 = vmatprep.subr.mxu0 0.0
    %1215 = vmatpush1.xpose.msra.mxu0 0.0
    %1216 = vmatprep.subr.mxu0 0.0
    %1217 = vmatpush1.xpose.msra.mxu0 0.0
    %1218 = vmatprep.subr.mxu0 0.0
    %1219 = vmatpush1.xpose.msra.mxu0 0.0
    %1220 = vmatprep.subr.mxu0 0.0
    %1221 = vmatpush1.xpose.msra.mxu0 0.0
    %1222 = vmatprep.subr.mxu0 0.0
    %1223 = vmatpush1.xpose.msra.mxu0 0.0
    %1224 = vmatprep.subr.mxu0 0.0
    %1225 = vmatpush1.xpose.msra.mxu0 0.0
    %1226 = vmatprep.subr.mxu0 0.0
    %1227 = vmatpush1.xpose.msra.mxu0 0.0
    %1228 = vmatprep.subr.mxu0 0.0
    %1229 = vmatpush1.xpose.msra.mxu0 0.0
    %1230 = vmatprep.subr.mxu0 0.0
    %1231 = vmatpush1.xpose.msra.mxu0 0.0
    %1232 = vmatprep.subr.mxu0 0.0
    %1233 = vmatpush1.xpose.msra.mxu0 0.0
    %1234 = vmatprep.subr.mxu0 0.0
    %1235 = vmatpush1.xpose.msra.mxu0 0.0
    %1236 = vmatprep.subr.mxu0 0.0
    %1237 = vmatpush1.xpose.msra.mxu0 0.0
    %1238 = vmatprep.subr.mxu0 0.0
    %1239 = vmatpush1.xpose.msra.mxu0 0.0
    %1240 = vmatprep.subr.mxu0 0.0
    %1241 = vmatpush1.xpose.msra.mxu0 0.0
    %1242 = vmatprep.subr.mxu0 0.0
    %1243 = vmatpush1.xpose.msra.mxu0 0.0
    %1244 = vmatprep.subr.mxu0 0.0
    %1245 = vmatpush1.xpose.msra.mxu0 0.0
    %1246 = vmatprep.subr.mxu0 0.0
    %1247 = vmatpush1.xpose.msra.mxu0 0.0
    %1248 = vmatprep.subr.mxu0 0.0
    %1249 = vmatpush1.xpose.msra.mxu0 0.0
    %1250 = vmatprep.subr.mxu0 0.0
    %1251 = vmatpush1.xpose.msra.mxu0 0.0
    %1252 = vmatprep.subr.mxu0 0.0
    %1253 = vmatpush1.xpose.msra.mxu0 0.0
    %1254 = vmatprep.subr.mxu0 0.0
    %1255 = vmatpush1.xpose.msra.mxu0 0.0
    %1256 = vmatprep.subr.mxu0 0.0
    %1257 = vmatpush1.xpose.msra.mxu0 0.0
    %1258 = vmatprep.subr.mxu0 0.0
    %1259 = vmatpush1.xpose.msra.mxu0 0.0
    %1260 = vmatprep.subr.mxu0 0.0
    %1261 = vmatpush1.xpose.msra.mxu0 0.0
    %1262 = vmatprep.subr.mxu0 0.0
    %1263 = vmatpush1.xpose.msra.mxu0 0.0
    %1264 = vmatprep.subr.mxu0 0.0
    %1265 = vmatpush1.xpose.msra.mxu0 0.0
    %1266 = vmatprep.subr.mxu0 0.0
    %1267 = vmatpush1.xpose.msra.mxu0 0.0
    %1268 = vmatprep.subr.mxu0 0.0
    %1269 = vmatpush1.xpose.msra.mxu0 0.0
    %1270 = vmatprep.subr.mxu0 0.0
    %1271 = vmatpush1.xpose.msra.mxu0 0.0
    %1272 = vmatprep.subr.mxu0 0.0
    %1273 = vmatpush1.xpose.msra.mxu0 0.0
    %1274 = vmatprep.mubr.f32.mxu0 0.0
    %1275 = vmatmul.mubr.f32.gmra.mrb[0].mxu0 %v1193
    %v1276 = vpop.f32.mrb[0].mxu0
    %v1277 = vadd.f32 0.0, %v1276
    %v1278 = vpop.f32.mrb[0].mxu0
    %1279 = vmatprep.mubr.f32.mxu0 0.0
    %1280 = vmatmul.mubr.f32.gmra.mrb[0].mxu0 %v1196
    %v1281 = vpop.f32.mrb[0].mxu0
    %v1282 = vadd.f32 0.0, %v1281
    %v1283 = vpop.f32.mrb[0].mxu0
    %1284 = vmatprep.mubr.f32.mxu0 0.0
    %1285 = vmatmul.mubr.f32.gmra.mrb[0].mxu0 %v1199
    %v1286 = vpop.f32.mrb[0].mxu0
    %v1287 = vadd.f32 0.0, %v1286
    %v1288 = vpop.f32.mrb[0].mxu0
    %1289 = vmatprep.mubr.f32.mxu0 0.0
    %1290 = vmatmul.mubr.f32.gmra.mrb[0].mxu0 %v1202
    %v1291 = vpop.f32.mrb[0].mxu0
    %v1292 = vadd.f32 0.0, %v1291
    %v1293 = vpop.f32.mrb[0].mxu0
    %1294 = vdwg.mxu0
    %v1295 = vmul.f32 %v1277, 0.70710677
    %v1296 = vmul.f32 %v1282, 0.70710677
    %v1297 = vmul.f32 %v1287, 0.70710677
    %v1298 = vmul.f32 %v1292, 0.70710677
    %v1299 = vadd.f32 %v1295, %v28
    %v1300 = vadd.f32 %v1296, %v29
    %v1301 = vadd.f32 %v1297, %v30
    %v1302 = vadd.f32 %v1298, %v31
    %v1303 = vsel %vm424, %v1299, -inf
    %1304 = vmax.xlane.f32.xlu0 %v1303
    %v1305 = vpop.xlane.xlu0 %1304
    %v1306 = vsel %vm424, %v1300, -inf
    %1307 = vmax.xlane.f32.xlu0 %v1306
    %v1308 = vpop.xlane.xlu0 %1307
    %v1309 = vsel %vm424, %v1301, -inf
    %1310 = vmax.xlane.f32.xlu0 %v1309
    %v1311 = vpop.xlane.xlu0 %1310
    %v1312 = vsel %vm424, %v1302, -inf
    %1313 = vmax.xlane.f32.xlu0 %v1312
    %v1314 = vpop.xlane.xlu0 %1313
    %v1315 = vsub.f32 %v1299, %v1305
    %v1316 = vsub.f32 %v1300, %v1308
    %v1317 = vsub.f32 %v1301, %v1311
    %v1318 = vsub.f32 %v1302, %v1314
    %v1319 = vmul.f32 %v1315, 1.442695
    %v1320 = vpow.pop %v1319
    %v1321 = vmul.f32 %v1316, 1.442695
    %v1322 = vpow.pop %v1321
    %v1323 = vmul.f32 %v1317, 1.442695
    %v1324 = vpow.pop %v1323
    %v1325 = vmul.f32 %v1318, 1.442695
    %v1326 = vpow.pop %v1325
    %v1327 = vsel %vm424, %v1320, 0.0
    %1328 = vadd.xlane.f32.xlu0 %v1327
    %v1329 = vpop.xlane.xlu0 %1328
    %v1330 = vsel %vm424, %v1322, 0.0
    %1331 = vadd.xlane.f32.xlu0 %v1330
    %v1332 = vpop.xlane.xlu0 %1331
    %v1333 = vsel %vm424, %v1324, 0.0
    %1334 = vadd.xlane.f32.xlu0 %v1333
    %v1335 = vpop.xlane.xlu0 %1334
    %v1336 = vsel %vm424, %v1326, 0.0
    %1337 = vadd.xlane.f32.xlu0 %v1336
    %v1338 = vpop.xlane.xlu0 %1337
    %v1339 = vrcp.pop %v1329
    %v1340 = vrcp.pop %v1332
    %v1341 = vrcp.pop %v1335
    %v1342 = vrcp.pop %v1338
    %v1343 = vmul.f32 %v1320, %v1339
    %v1344 = vmul.f32 %v1322, %v1340
    %v1345 = vmul.f32 %v1324, %v1341
    %v1346 = vmul.f32 %v1326, %v1342
    %v1348 = vsel %vm424, %v1343, 0
    %v1351 = vsel %vm424, %v1344, 0
    %v1354 = vsel %vm424, %v1345, 0
    %v1357 = vsel %vm424, %v1346, 0
    %1359 = vmatprep.subr.mxu0 0.0
    %1360 = vmatpush1.msra.mxu0 %v1180
    %1361 = vmatprep.subr.mxu0 0.0
    %1362 = vmatpush1.msra.mxu0 %v1185
    %1363 = vmatprep.subr.mxu0 0.0
    %1364 = vmatpush1.msra.mxu0 0.0
    %1365 = vmatprep.subr.mxu0 0.0
    %1366 = vmatpush1.msra.mxu0 0.0
    %1367 = vmatprep.subr.mxu0 0.0
    %1368 = vmatpush1.msra.mxu0 0.0
    %1369 = vmatprep.subr.mxu0 0.0
    %1370 = vmatpush1.msra.mxu0 0.0
    %1371 = vmatprep.subr.mxu0 0.0
    %1372 = vmatpush1.msra.mxu0 0.0
    %1373 = vmatprep.subr.mxu0 0.0
    %1374 = vmatpush1.msra.mxu0 0.0
    %1375 = vmatprep.subr.mxu0 0.0
    %1376 = vmatpush1.msra.mxu0 0.0
    %1377 = vmatprep.subr.mxu0 0.0
    %1378 = vmatpush1.msra.mxu0 0.0
    %1379 = vmatprep.subr.mxu0 0.0
    %1380 = vmatpush1.msra.mxu0 0.0
    %1381 = vmatprep.subr.mxu0 0.0
    %1382 = vmatpush1.msra.mxu0 0.0
    %1383 = vmatprep.subr.mxu0 0.0
    %1384 = vmatpush1.msra.mxu0 0.0
    %1385 = vmatprep.subr.mxu0 0.0
    %1386 = vmatpush1.msra.mxu0 0.0
    %1387 = vmatprep.subr.mxu0 0.0
    %1388 = vmatpush1.msra.mxu0 0.0
    %1389 = vmatprep.subr.mxu0 0.0
    %1390 = vmatpush1.msra.mxu0 0.0
    %1391 = vmatprep.subr.mxu0 0.0
    %1392 = vmatpush1.msra.mxu0 0.0
    %1393 = vmatprep.subr.mxu0 0.0
    %1394 = vmatpush1.msra.mxu0 0.0
    %1395 = vmatprep.subr.mxu0 0.0
    %1396 = vmatpush1.msra.mxu0 0.0
    %1397 = vmatprep.subr.mxu0 0.0
    %1398 = vmatpush1.msra.mxu0 0.0
    %1399 = vmatprep.subr.mxu0 0.0
    %1400 = vmatpush1.msra.mxu0 0.0
    %1401 = vmatprep.subr.mxu0 0.0
    %1402 = vmatpush1.msra.mxu0 0.0
    %1403 = vmatprep.subr.mxu0 0.0
    %1404 = vmatpush1.msra.mxu0 0.0
    %1405 = vmatprep.subr.mxu0 0.0
    %1406 = vmatpush1.msra.mxu0 0.0
    %1407 = vmatprep.subr.mxu0 0.0
    %1408 = vmatpush1.msra.mxu0 0.0
    %1409 = vmatprep.subr.mxu0 0.0
    %1410 = vmatpush1.msra.mxu0 0.0
    %1411 = vmatprep.subr.mxu0 0.0
    %1412 = vmatpush1.msra.mxu0 0.0
    %1413 = vmatprep.subr.mxu0 0.0
    %1414 = vmatpush1.msra.mxu0 0.0
    %1415 = vmatprep.subr.mxu0 0.0
    %1416 = vmatpush1.msra.mxu0 0.0
    %1417 = vmatprep.subr.mxu0 0.0
    %1418 = vmatpush1.msra.mxu0 0.0
    %1419 = vmatprep.subr.mxu0 0.0
    %1420 = vmatpush1.msra.mxu0 0.0
    %1421 = vmatprep.subr.mxu0 0.0
    %1422 = vmatpush1.msra.mxu0 0.0
    %1423 = vmatprep.mubr.f32.mxu0 0.0
    %1424 = vmatmul.mubr.f32.gmra.mrb[0].mxu0 %v1348
    %v1425 = vpop.f32.mrb[0].mxu0
    %v1426 = vadd.f32 0.0, %v1425
    %v1427 = vpop.f32.mrb[0].mxu0
    %1428 = vmatprep.mubr.f32.mxu0 0.0
    %1429 = vmatmul.mubr.f32.gmra.mrb[0].mxu0 %v1351
    %v1430 = vpop.f32.mrb[0].mxu0
    %v1431 = vadd.f32 0.0, %v1430
    %v1432 = vpop.f32.mrb[0].mxu0
    %1433 = vmatprep.mubr.f32.mxu0 0.0
    %1434 = vmatmul.mubr.f32.gmra.mrb[0].mxu0 %v1354
    %v1435 = vpop.f32.mrb[0].mxu0
    %v1436 = vadd.f32 0.0, %v1435
    %v1437 = vpop.f32.mrb[0].mxu0
    %1438 = vmatprep.mubr.f32.mxu0 0.0
    %1439 = vmatmul.mubr.f32.gmra.mrb[0].mxu0 %v1357
    %v1440 = vpop.f32.mrb[0].mxu0
    %v1441 = vadd.f32 0.0, %v1440
    %v1442 = vpop.f32.mrb[0].mxu0
    %1443 = vdwg.mxu0
    %v1444 = vmul.f32 %v1426, %v304
    %v1445 = vmul.f32 %v1431, %v304
    %v1446 = vmul.f32 %v1436, %v310
    %v1447 = vmul.f32 %v1441, %v310
    %v1448 = vadd.f32 %v1444, %v1446
    %v1449 = vadd.f32 %v1445, %v1447
    %v1450 = vld [vmem:[#allocation2 + $0xc8] sm:$0xf]
    %v1451 = vld [vmem:[#allocation2 + $0xd0] sm:$0x1]
    %v1452 = vlaneseq
    %v1453 = vshrl.u32 %v1452, 7
    %v1454 = vsub.s32 0, %v1453
    %v1455 = vrot.slane %v1451, %v1454
    %v1457 = vsel %vm47, %v1448, 0
    %v1460 = vsel %vm47, %v1449, 0
    %v1463 = vsel %vm54, %v1450, 0
    %1465 = vmatprep.subr.mxu0 0.0
    %1466 = vmatpush1.msra.mxu0 %v1463
    %1467 = vmatprep.subr.mxu0 0.0
    %1468 = vmatpush1.msra.mxu0 0.0
    %1469 = vmatprep.subr.mxu0 0.0
    %1470 = vmatpush1.msra.mxu0 0.0
    %1471 = vmatprep.subr.mxu0 0.0
    %1472 = vmatpush1.msra.mxu0 0.0
    %1473 = vmatprep.subr.mxu0 0.0
    %1474 = vmatpush1.msra.mxu0 0.0
    %1475 = vmatprep.subr.mxu0 0.0
    %1476 = vmatpush1.msra.mxu0 0.0
    %1477 = vmatprep.subr.mxu0 0.0
    %1478 = vmatpush1.msra.mxu0 0.0
    %1479 = vmatprep.subr.mxu0 0.0
    %1480 = vmatpush1.msra.mxu0 0.0
    %1481 = vmatprep.subr.mxu0 0.0
    %1482 = vmatpush1.msra.mxu0 0.0
    %1483 = vmatprep.subr.mxu0 0.0
    %1484 = vmatpush1.msra.mxu0 0.0
    %1485 = vmatprep.subr.mxu0 0.0
    %1486 = vmatpush1.msra.mxu0 0.0
    %1487 = vmatprep.subr.mxu0 0.0
    %1488 = vmatpush1.msra.mxu0 0.0
    %1489 = vmatprep.subr.mxu0 0.0
    %1490 = vmatpush1.msra.mxu0 0.0
    %1491 = vmatprep.subr.mxu0 0.0
    %1492 = vmatpush1.msra.mxu0 0.0
    %1493 = vmatprep.subr.mxu0 0.0
    %1494 = vmatpush1.msra.mxu0 0.0
    %1495 = vmatprep.subr.mxu0 0.0
    %1496 = vmatpush1.msra.mxu0 0.0
    %1497 = vmatprep.subr.mxu0 0.0
    %1498 = vmatpush1.msra.mxu0 0.0
    %1499 = vmatprep.subr.mxu0 0.0
    %1500 = vmatpush1.msra.mxu0 0.0
    %1501 = vmatprep.subr.mxu0 0.0
    %1502 = vmatpush1.msra.mxu0 0.0
    %1503 = vmatprep.subr.mxu0 0.0
    %1504 = vmatpush1.msra.mxu0 0.0
    %1505 = vmatprep.subr.mxu0 0.0
    %1506 = vmatpush1.msra.mxu0 0.0
    %1507 = vmatprep.subr.mxu0 0.0
    %1508 = vmatpush1.msra.mxu0 0.0
    %1509 = vmatprep.subr.mxu0 0.0
    %1510 = vmatpush1.msra.mxu0 0.0
    %1511 = vmatprep.subr.mxu0 0.0
    %1512 = vmatpush1.msra.mxu0 0.0
    %1513 = vmatprep.subr.mxu0 0.0
    %1514 = vmatpush1.msra.mxu0 0.0
    %1515 = vmatprep.subr.mxu0 0.0
    %1516 = vmatpush1.msra.mxu0 0.0
    %1517 = vmatprep.subr.mxu0 0.0
    %1518 = vmatpush1.msra.mxu0 0.0
    %1519 = vmatprep.subr.mxu0 0.0
    %1520 = vmatpush1.msra.mxu0 0.0
    %1521 = vmatprep.subr.mxu0 0.0
    %1522 = vmatpush1.msra.mxu0 0.0
    %1523 = vmatprep.subr.mxu0 0.0
    %1524 = vmatpush1.msra.mxu0 0.0
    %1525 = vmatprep.subr.mxu0 0.0
    %1526 = vmatpush1.msra.mxu0 0.0
    %1527 = vmatprep.subr.mxu0 0.0
    %1528 = vmatpush1.msra.mxu0 0.0
    %1529 = vmatprep.mubr.f32.mxu0 0.0
    %1530 = vmatmul.mubr.f32.gmra.mrb[0].mxu0 %v1457
    %v1531 = vpop.f32.mrb[0].mxu0
    %v1532 = vadd.f32 %v1455, %v1531
    %v1533 = vpop.f32.mrb[0].mxu0
    %1534 = vmatprep.mubr.f32.mxu0 0.0
    %1535 = vmatmul.mubr.f32.gmra.mrb[0].mxu0 %v1460
    %v1536 = vpop.f32.mrb[0].mxu0
    %v1537 = vadd.f32 %v1455, %v1536
    %v1538 = vpop.f32.mrb[0].mxu0
    %1539 = vdwg.mxu0
    %v1540 = vadd.f32 %v928, %v1532
    %v1541 = vadd.f32 %v929, %v1537
    %v1542 = vsel %vm47, %v1540, 0.0
    %1543 = vadd.xlane.f32.xlu0 %v1542
    %v1544 = vpop.xlane.xlu0 %1543
    %v1545 = vsel %vm47, %v1541, 0.0
    %1546 = vadd.xlane.f32.xlu0 %v1545
    %v1547 = vpop.xlane.xlu0 %1546
    %v1548 = vmul.f32 %v1544, %v670
    %v1549 = vmul.f32 %v1547, %v670
    %v1550 = vsub.f32 %v1540, %v1548
    %v1551 = vsub.f32 %v1541, %v1549
    %v1552 = vmul.f32 %v1550, %v1550
    %v1553 = vmul.f32 %v1551, %v1551
    %v1554 = vsel %vm47, %v1552, 0.0
    %1555 = vadd.xlane.f32.xlu0 %v1554
    %v1556 = vpop.xlane.xlu0 %1555
    %v1557 = vsel %vm47, %v1553, 0.0
    %1558 = vadd.xlane.f32.xlu0 %v1557
    %v1559 = vpop.xlane.xlu0 %1558
    %v1560 = vmul.f32 %v1556, %v670
    %v1561 = vmul.f32 %v1559, %v670
    %v1562 = vadd.f32 %v1560, 1e-05
    %v1563 = vadd.f32 %v1561, 1e-05
    %v1564 = vrsqrt.pop %v1562
    %v1565 = vrsqrt.pop %v1563
    %v1566 = vmul.f32 %v1550, %v1564
    %v1567 = vmul.f32 %v1551, %v1565
    %v1568 = vld [vmem:[#allocation2 + $0x110] sm:$0x1]
    %v1569 = vlaneseq
    %v1570 = vshrl.u32 %v1569, 7
    %v1571 = vsub.s32 0, %v1570
    %v1572 = vrot.slane %v1568, %v1571
    %v1573 = vmul.f32 %v1566, %v1572
    %v1574 = vmul.f32 %v1567, %v1572
    %v1575 = vld [vmem:[#allocation2 + $0x118] sm:$0x1]
    %v1576 = vlaneseq
    %v1577 = vshrl.u32 %v1576, 7
    %v1578 = vsub.s32 0, %v1577
    %v1579 = vrot.slane %v1575, %v1578
    %v1580 = vadd.f32 %v1573, %v1579
    %v1581 = vadd.f32 %v1574, %v1579
    %v1582 = vld [vmem:[#allocation2 + $0xd8] sm:$0xf]
    %v1583 = vld [vmem:[#allocation2 + $0xe0] sm:$0x1]
    %v1584 = vlaneseq
    %v1585 = vshrl.u32 %v1584, 7
    %v1586 = vsub.s32 0, %v1585
    %v1587 = vrot.slane %v1583, %v1586
    %v1589 = vsel %vm47, %v1580, 0
    %v1592 = vsel %vm47, %v1581, 0
    %v1595 = vsel %vm54, %v1582, 0
    %1597 = vmatprep.subr.mxu0 0.0
    %1598 = vmatpush1.msra.mxu0 %v1595
    %1599 = vmatprep.subr.mxu0 0.0
    %1600 = vmatpush1.msra.mxu0 0.0
    %1601 = vmatprep.subr.mxu0 0.0
    %1602 = vmatpush1.msra.mxu0 0.0
    %1603 = vmatprep.subr.mxu0 0.0
    %1604 = vmatpush1.msra.mxu0 0.0
    %1605 = vmatprep.subr.mxu0 0.0
    %1606 = vmatpush1.msra.mxu0 0.0
    %1607 = vmatprep.subr.mxu0 0.0
    %1608 = vmatpush1.msra.mxu0 0.0
    %1609 = vmatprep.subr.mxu0 0.0
    %1610 = vmatpush1.msra.mxu0 0.0
    %1611 = vmatprep.subr.mxu0 0.0
    %1612 = vmatpush1.msra.mxu0 0.0
    %1613 = vmatprep.subr.mxu0 0.0
    %1614 = vmatpush1.msra.mxu0 0.0
    %1615 = vmatprep.subr.mxu0 0.0
    %1616 = vmatpush1.msra.mxu0 0.0
    %1617 = vmatprep.subr.mxu0 0.0
    %1618 = vmatpush1.msra.mxu0 0.0
    %1619 = vmatprep.subr.mxu0 0.0
    %1620 = vmatpush1.msra.mxu0 0.0
    %1621 = vmatprep.subr.mxu0 0.0
    %1622 = vmatpush1.msra.mxu0 0.0
    %1623 = vmatprep.subr.mxu0 0.0
    %1624 = vmatpush1.msra.mxu0 0.0
    %1625 = vmatprep.subr.mxu0 0.0
    %1626 = vmatpush1.msra.mxu0 0.0
    %1627 = vmatprep.subr.mxu0 0.0
    %1628 = vmatpush1.msra.mxu0 0.0
    %1629 = vmatprep.subr.mxu0 0.0
    %1630 = vmatpush1.msra.mxu0 0.0
    %1631 = vmatprep.subr.mxu0 0.0
    %1632 = vmatpush1.msra.mxu0 0.0
    %1633 = vmatprep.subr.mxu0 0.0
    %1634 = vmatpush1.msra.mxu0 0.0
    %1635 = vmatprep.subr.mxu0 0.0
    %1636 = vmatpush1.msra.mxu0 0.0
    %1637 = vmatprep.subr.mxu0 0.0
    %1638 = vmatpush1.msra.mxu0 0.0
    %1639 = vmatprep.subr.mxu0 0.0
    %1640 = vmatpush1.msra.mxu0 0.0
    %1641 = vmatprep.subr.mxu0 0.0
    %1642 = vmatpush1.msra.mxu0 0.0
    %1643 = vmatprep.subr.mxu0 0.0
    %1644 = vmatpush1.msra.mxu0 0.0
    %1645 = vmatprep.subr.mxu0 0.0
    %1646 = vmatpush1.msra.mxu0 0.0
    %1647 = vmatprep.subr.mxu0 0.0
    %1648 = vmatpush1.msra.mxu0 0.0
    %1649 = vmatprep.subr.mxu0 0.0
    %1650 = vmatpush1.msra.mxu0 0.0
    %1651 = vmatprep.subr.mxu0 0.0
    %1652 = vmatpush1.msra.mxu0 0.0
    %1653 = vmatprep.subr.mxu0 0.0
    %1654 = vmatpush1.msra.mxu0 0.0
    %1655 = vmatprep.subr.mxu0 0.0
    %1656 = vmatpush1.msra.mxu0 0.0
    %1657 = vmatprep.subr.mxu0 0.0
    %1658 = vmatpush1.msra.mxu0 0.0
    %1659 = vmatprep.subr.mxu0 0.0
    %1660 = vmatpush1.msra.mxu0 0.0
    %1661 = vmatprep.mubr.f32.mxu0 0.0
    %1662 = vmatmul.mubr.f32.gmra.mrb[0].mxu0 %v1589
    %v1663 = vpop.f32.mrb[0].mxu0
    %v1664 = vadd.f32 %v1587, %v1663
    %v1665 = vpop.f32.mrb[0].mxu0
    %1666 = vmatprep.mubr.f32.mxu0 0.0
    %1667 = vmatmul.mubr.f32.gmra.mrb[0].mxu0 %v1592
    %v1668 = vpop.f32.mrb[0].mxu0
    %v1669 = vadd.f32 %v1587, %v1668
    %v1670 = vpop.f32.mrb[0].mxu0
    %1671 = vdwg.mxu0
    %v1672 = vmax.f32 %v1664, 0.0
    %v1673 = vmax.f32 %v1669, 0.0
    %v1674 = vld [vmem:[#allocation2 + $0xe8] sm:$0xff]
    %v1675 = vld [vmem:[#allocation2 + $0xf0] sm:$0xff]
    %v1676 = vld [vmem:[#allocation2 + $0xf8] sm:$0xff]
    %v1677 = vld [vmem:[#allocation2 + $0x100] sm:$0xff]
    %v1678 = vld [vmem:[#allocation2 + $0x108] sm:$0x1]
    %v1679 = vlaneseq
    %v1680 = vshrl.u32 %v1679, 7
    %v1681 = vsub.s32 0, %v1680
    %v1682 = vrot.slane %v1678, %v1681
    %v1684 = vsel %vm806, %v1672, 0
    %v1687 = vsel %vm806, %v1673, 0
    %1689 = vmatprep.subr.mxu0 0.0
    %1690 = vmatpush1.msra.mxu0 %v1674
    %1691 = vmatprep.subr.mxu0 0.0
    %1692 = vmatpush1.msra.mxu0 %v1675
    %1693 = vmatprep.subr.mxu0 0.0
    %1694 = vmatpush1.msra.mxu0 %v1676
    %1695 = vmatprep.subr.mxu0 0.0
    %1696 = vmatpush1.msra.mxu0 %v1677
    %1697 = vmatprep.subr.mxu0 0.0
    %1698 = vmatpush1.msra.mxu0 0.0
    %1699 = vmatprep.subr.mxu0 0.0
    %1700 = vmatpush1.msra.mxu0 0.0
    %1701 = vmatprep.subr.mxu0 0.0
    %1702 = vmatpush1.msra.mxu0 0.0
    %1703 = vmatprep.subr.mxu0 0.0
    %1704 = vmatpush1.msra.mxu0 0.0
    %1705 = vmatprep.subr.mxu0 0.0
    %1706 = vmatpush1.msra.mxu0 0.0
    %1707 = vmatprep.subr.mxu0 0.0
    %1708 = vmatpush1.msra.mxu0 0.0
    %1709 = vmatprep.subr.mxu0 0.0
    %1710 = vmatpush1.msra.mxu0 0.0
    %1711 = vmatprep.subr.mxu0 0.0
    %1712 = vmatpush1.msra.mxu0 0.0
    %1713 = vmatprep.subr.mxu0 0.0
    %1714 = vmatpush1.msra.mxu0 0.0
    %1715 = vmatprep.subr.mxu0 0.0
    %1716 = vmatpush1.msra.mxu0 0.0
    %1717 = vmatprep.subr.mxu0 0.0
    %1718 = vmatpush1.msra.mxu0 0.0
    %1719 = vmatprep.subr.mxu0 0.0
    %1720 = vmatpush1.msra.mxu0 0.0
    %1721 = vmatprep.subr.mxu0 0.0
    %1722 = vmatpush1.msra.mxu0 0.0
    %1723 = vmatprep.subr.mxu0 0.0
    %1724 = vmatpush1.msra.mxu0 0.0
    %1725 = vmatprep.subr.mxu0 0.0
    %1726 = vmatpush1.msra.mxu0 0.0
    %1727 = vmatprep.subr.mxu0 0.0
    %1728 = vmatpush1.msra.mxu0 0.0
    %1729 = vmatprep.subr.mxu0 0.0
    %1730 = vmatpush1.msra.mxu0 0.0
    %1731 = vmatprep.subr.mxu0 0.0
    %1732 = vmatpush1.msra.mxu0 0.0
    %1733 = vmatprep.subr.mxu0 0.0
    %1734 = vmatpush1.msra.mxu0 0.0
    %1735 = vmatprep.subr.mxu0 0.0
    %1736 = vmatpush1.msra.mxu0 0.0
    %1737 = vmatprep.subr.mxu0 0.0
    %1738 = vmatpush1.msra.mxu0 0.0
    %1739 = vmatprep.subr.mxu0 0.0
    %1740 = vmatpush1.msra.mxu0 0.0
    %1741 = vmatprep.subr.mxu0 0.0
    %1742 = vmatpush1.msra.mxu0 0.0
    %1743 = vmatprep.subr.mxu0 0.0
    %1744 = vmatpush1.msra.mxu0 0.0
    %1745 = vmatprep.subr.mxu0 0.0
    %1746 = vmatpush1.msra.mxu0 0.0
    %1747 = vmatprep.subr.mxu0 0.0
    %1748 = vmatpush1.msra.mxu0 0.0
    %1749 = vmatprep.subr.mxu0 0.0
    %1750 = vmatpush1.msra.mxu0 0.0
    %1751 = vmatprep.subr.mxu0 0.0
    %1752 = vmatpush1.msra.mxu0 0.0
    %1753 = vmatprep.mubr.f32.mxu0 0.0
    %1754 = vmatmul.mubr.f32.gmra.mrb[0].mxu0 %v1684
    %v1755 = vpop.f32.mrb[0].mxu0
    %v1756 = vadd.f32 %v1682, %v1755
    %v1757 = vpop.f32.mrb[0].mxu0
    %1758 = vmatprep.mubr.f32.mxu0 0.0
    %1759 = vmatmul.mubr.f32.gmra.mrb[0].mxu0 %v1687
    %v1760 = vpop.f32.mrb[0].mxu0
    %v1761 = vadd.f32 %v1682, %v1760
    %v1762 = vpop.f32.mrb[0].mxu0
    %1763 = vdwg.mxu0
    %v1764 = vadd.f32 %v1580, %v1756
    %v1765 = vadd.f32 %v1581, %v1761
    %v1766 = vsel %vm47, %v1764, 0.0
    %1767 = vadd.xlane.f32.xlu0 %v1766
    %v1768 = vpop.xlane.xlu0 %1767
    %v1769 = vsel %vm47, %v1765, 0.0
    %1770 = vadd.xlane.f32.xlu0 %v1769
    %v1771 = vpop.xlane.xlu0 %1770
    %v1772 = vmul.f32 %v1768, %v670
    %v1773 = vmul.f32 %v1771, %v670
    %v1774 = vsub.f32 %v1764, %v1772
    %v1775 = vsub.f32 %v1765, %v1773
    %v1776 = vmul.f32 %v1774, %v1774
    %v1777 = vmul.f32 %v1775, %v1775
    %v1778 = vsel %vm47, %v1776, 0.0
    %1779 = vadd.xlane.f32.xlu0 %v1778
    %v1780 = vpop.xlane.xlu0 %1779
    %v1781 = vsel %vm47, %v1777, 0.0
    %1782 = vadd.xlane.f32.xlu0 %v1781
    %v1783 = vpop.xlane.xlu0 %1782
    %v1784 = vmul.f32 %v1780, %v670
    %v1785 = vmul.f32 %v1783, %v670
    %v1786 = vadd.f32 %v1784, 1e-05
    %v1787 = vadd.f32 %v1785, 1e-05
    %v1788 = vrsqrt.pop %v1786
    %v1789 = vrsqrt.pop %v1787
    %v1790 = vmul.f32 %v1774, %v1788
    %v1791 = vmul.f32 %v1775, %v1789
    %v1792 = vld [vmem:[#allocation2 + $0x120] sm:$0x1]
    %v1793 = vlaneseq
    %v1794 = vshrl.u32 %v1793, 7
    %v1795 = vsub.s32 0, %v1794
    %v1796 = vrot.slane %v1792, %v1795
    %v1797 = vmul.f32 %v1790, %v1796
    %v1798 = vmul.f32 %v1791, %v1796
    %v1799 = vld [vmem:[#allocation2 + $0x128] sm:$0x1]
    %v1800 = vlaneseq
    %v1801 = vshrl.u32 %v1800, 7
    %v1802 = vsub.s32 0, %v1801
    %v1803 = vrot.slane %v1799, %v1802
    %v1804 = vadd.f32 %v1797, %v1803
    %v1805 = vadd.f32 %v1798, %v1803
    %v1806 = vsel %vm47, %v1804, 0.0
    %1807 = vadd.xlane.f32.xlu0 %v1806
    %v1808 = vpop.xlane.xlu0 %1807
    %v1809 = vsel %vm47, %v1805, 0.0
    %1810 = vadd.xlane.f32.xlu0 %v1809
    %v1811 = vpop.xlane.xlu0 %1810
    %v1812 = vmul.f32 %v1808, %v670
    %v1813 = vmul.f32 %v1811, %v670
    %v1814 = vsub.f32 %v1804, %v1812
    %v1815 = vsub.f32 %v1805, %v1813
    %v1816 = vmul.f32 %v1814, %v1814
    %v1817 = vmul.f32 %v1815, %v1815
    %v1818 = vsel %vm47, %v1816, 0.0
    %1819 = vadd.xlane.f32.xlu0 %v1818
    %v1820 = vpop.xlane.xlu0 %1819
    %v1821 = vsel %vm47, %v1817, 0.0
    %1822 = vadd.xlane.f32.xlu0 %v1821
    %v1823 = vpop.xlane.xlu0 %1822
    %v1824 = vmul.f32 %v1820, %v670
    %v1825 = vmul.f32 %v1823, %v670
    %v1826 = vadd.f32 %v1824, 1e-05
    %v1827 = vadd.f32 %v1825, 1e-05
    %v1828 = vrsqrt.pop %v1826
    %v1829 = vrsqrt.pop %v1827
    %v1830 = vmul.f32 %v1814, %v1828
    %v1831 = vmul.f32 %v1815, %v1829
    %v1832 = vld [vmem:[#allocation2 + $0x300] sm:$0x1]
    %v1833 = vlaneseq
    %v1834 = vshrl.u32 %v1833, 7
    %v1835 = vsub.s32 0, %v1834
    %v1836 = vrot.slane %v1832, %v1835
    %v1837 = vmul.f32 %v1830, %v1836
    %v1838 = vmul.f32 %v1831, %v1836
    %v1839 = vld [vmem:[#allocation2 + $0x308] sm:$0x1]
    %v1840 = vlaneseq
    %v1841 = vshrl.u32 %v1840, 7
    %v1842 = vsub.s32 0, %v1841
    %v1843 = vrot.slane %v1839, %v1842
    %v1844 = vadd.f32 %v1837, %v1843
    %v1845 = vadd.f32 %v1838, %v1843
    %v1846 = vld [vmem:[#allocation2 + $0x130] sm:$0xf]
    %v1847 = vld [vmem:[#allocation2 + $0x138] sm:$0x1]
    %v1848 = vlaneseq
    %v1849 = vshrl.u32 %v1848, 7
    %v1850 = vsub.s32 0, %v1849
    %v1851 = vrot.slane %v1847, %v1850
    %v1853 = vsel %vm54, %v1846, 0
    %1855 = vmatprep.subr.mxu0 0.0
    %1856 = vmatpush1.msra.mxu0 %v1853
    %1857 = vmatprep.subr.mxu0 0.0
    %1858 = vmatpush1.msra.mxu0 0.0
    %1859 = vmatprep.subr.mxu0 0.0
    %1860 = vmatpush1.msra.mxu0 0.0
    %1861 = vmatprep.subr.mxu0 0.0
    %1862 = vmatpush1.msra.mxu0 0.0
    %1863 = vmatprep.subr.mxu0 0.0
    %1864 = vmatpush1.msra.mxu0 0.0
    %1865 = vmatprep.subr.mxu0 0.0
    %1866 = vmatpush1.msra.mxu0 0.0
    %1867 = vmatprep.subr.mxu0 0.0
    %1868 = vmatpush1.msra.mxu0 0.0
    %1869 = vmatprep.subr.mxu0 0.0
    %1870 = vmatpush1.msra.mxu0 0.0
    %1871 = vmatprep.subr.mxu0 0.0
    %1872 = vmatpush1.msra.mxu0 0.0
    %1873 = vmatprep.subr.mxu0 0.0
    %1874 = vmatpush1.msra.mxu0 0.0
    %1875 = vmatprep.subr.mxu0 0.0
    %1876 = vmatpush1.msra.mxu0 0.0
    %1877 = vmatprep.subr.mxu0 0.0
    %1878 = vmatpush1.msra.mxu0 0.0
    %1879 = vmatprep.subr.mxu0 0.0
    %1880 = vmatpush1.msra.mxu0 0.0
    %1881 = vmatprep.subr.mxu0 0.0
    %1882 = vmatpush1.msra.mxu0 0.0
    %1883 = vmatprep.subr.mxu0 0.0
    %1884 = vmatpush1.msra.mxu0 0.0
    %1885 = vmatprep.subr.mxu0 0.0
    %1886 = vmatpush1.msra.mxu0 0.0
    %1887 = vmatprep.subr.mxu0 0.0
    %1888 = vmatpush1.msra.mxu0 0.0
    %1889 = vmatprep.subr.mxu0 0.0
    %1890 = vmatpush1.msra.mxu0 0.0
    %1891 = vmatprep.subr.mxu0 0.0
    %1892 = vmatpush1.msra.mxu0 0.0
    %1893 = vmatprep.subr.mxu0 0.0
    %1894 = vmatpush1.msra.mxu0 0.0
    %1895 = vmatprep.subr.mxu0 0.0
    %1896 = vmatpush1.msra.mxu0 0.0
    %1897 = vmatprep.subr.mxu0 0.0
    %1898 = vmatpush1.msra.mxu0 0.0
    %1899 = vmatprep.subr.mxu0 0.0
    %1900 = vmatpush1.msra.mxu0 0.0
    %1901 = vmatprep.subr.mxu0 0.0
    %1902 = vmatpush1.msra.mxu0 0.0
    %1903 = vmatprep.subr.mxu0 0.0
    %1904 = vmatpush1.msra.mxu0 0.0
    %1905 = vmatprep.subr.mxu0 0.0
    %1906 = vmatpush1.msra.mxu0 0.0
    %1907 = vmatprep.subr.mxu0 0.0
    %1908 = vmatpush1.msra.mxu0 0.0
    %1909 = vmatprep.subr.mxu0 0.0
    %1910 = vmatpush1.msra.mxu0 0.0
    %1911 = vmatprep.subr.mxu0 0.0
    %1912 = vmatpush1.msra.mxu0 0.0
    %1913 = vmatprep.subr.mxu0 0.0
    %1914 = vmatpush1.msra.mxu0 0.0
    %1915 = vmatprep.subr.mxu0 0.0
    %1916 = vmatpush1.msra.mxu0 0.0
    %1917 = vmatprep.subr.mxu0 0.0
    %1918 = vmatpush1.msra.mxu0 0.0
    %1919 = vmatprep.mubr.f32.mxu0 0.0
    %1920 = vmatmul.mubr.f32.gmra.mrb[0].mxu0 %v49
    %v1921 = vpop.f32.mrb[0].mxu0
    %v1922 = vadd.f32 %v1851, %v1921
    %v1923 = vpop.f32.mrb[0].mxu0
    %1924 = vmatprep.mubr.f32.mxu0 0.0
    %1925 = vmatmul.mubr.f32.gmra.mrb[0].mxu0 %v52
    %v1926 = vpop.f32.mrb[0].mxu0
    %v1927 = vadd.f32 %v1851, %v1926
    %v1928 = vpop.f32.mrb[0].mxu0
    %1929 = vdwg.mxu0
    %v1930 = vld [vmem:[#allocation2 + $0x140] sm:$0xf]
    %v1931 = vld [vmem:[#allocation2 + $0x148] sm:$0x1]
    %v1932 = vlaneseq
    %v1933 = vshrl.u32 %v1932, 7
    %v1934 = vsub.s32 0, %v1933
    %v1935 = vrot.slane %v1931, %v1934
    %v1937 = vsel %vm54, %v1930, 0
    %1939 = vmatprep.subr.mxu0 0.0
    %1940 = vmatpush1.msra.mxu0 %v1937
    %1941 = vmatprep.subr.mxu0 0.0
    %1942 = vmatpush1.msra.mxu0 0.0
    %1943 = vmatprep.subr.mxu0 0.0
    %1944 = vmatpush1.msra.mxu0 0.0
    %1945 = vmatprep.subr.mxu0 0.0
    %1946 = vmatpush1.msra.mxu0 0.0
    %1947 = vmatprep.subr.mxu0 0.0
    %1948 = vmatpush1.msra.mxu0 0.0
    %1949 = vmatprep.subr.mxu0 0.0
    %1950 = vmatpush1.msra.mxu0 0.0
    %1951 = vmatprep.subr.mxu0 0.0
    %1952 = vmatpush1.msra.mxu0 0.0
    %1953 = vmatprep.subr.mxu0 0.0
    %1954 = vmatpush1.msra.mxu0 0.0
    %1955 = vmatprep.subr.mxu0 0.0
    %1956 = vmatpush1.msra.mxu0 0.0
    %1957 = vmatprep.subr.mxu0 0.0
    %1958 = vmatpush1.msra.mxu0 0.0
    %1959 = vmatprep.subr.mxu0 0.0
    %1960 = vmatpush1.msra.mxu0 0.0
    %1961 = vmatprep.subr.mxu0 0.0
    %1962 = vmatpush1.msra.mxu0 0.0
    %1963 = vmatprep.subr.mxu0 0.0
    %1964 = vmatpush1.msra.mxu0 0.0
    %1965 = vmatprep.subr.mxu0 0.0
    %1966 = vmatpush1.msra.mxu0 0.0
    %1967 = vmatprep.subr.mxu0 0.0
    %1968 = vmatpush1.msra.mxu0 0.0
    %1969 = vmatprep.subr.mxu0 0.0
    %1970 = vmatpush1.msra.mxu0 0.0
    %1971 = vmatprep.subr.mxu0 0.0
    %1972 = vmatpush1.msra.mxu0 0.0
    %1973 = vmatprep.subr.mxu0 0.0
    %1974 = vmatpush1.msra.mxu0 0.0
    %1975 = vmatprep.subr.mxu0 0.0
    %1976 = vmatpush1.msra.mxu0 0.0
    %1977 = vmatprep.subr.mxu0 0.0
    %1978 = vmatpush1.msra.mxu0 0.0
    %1979 = vmatprep.subr.mxu0 0.0
    %1980 = vmatpush1.msra.mxu0 0.0
    %1981 = vmatprep.subr.mxu0 0.0
    %1982 = vmatpush1.msra.mxu0 0.0
    %1983 = vmatprep.subr.mxu0 0.0
    %1984 = vmatpush1.msra.mxu0 0.0
    %1985 = vmatprep.subr.mxu0 0.0
    %1986 = vmatpush1.msra.mxu0 0.0
    %1987 = vmatprep.subr.mxu0 0.0
    %1988 = vmatpush1.msra.mxu0 0.0
    %1989 = vmatprep.subr.mxu0 0.0
    %1990 = vmatpush1.msra.mxu0 0.0
    %1991 = vmatprep.subr.mxu0 0.0
    %1992 = vmatpush1.msra.mxu0 0.0
    %1993 = vmatprep.subr.mxu0 0.0
    %1994 = vmatpush1.msra.mxu0 0.0
    %1995 = vmatprep.subr.mxu0 0.0
    %1996 = vmatpush1.msra.mxu0 0.0
    %1997 = vmatprep.subr.mxu0 0.0
    %1998 = vmatpush1.msra.mxu0 0.0
    %1999 = vmatprep.subr.mxu0 0.0
    %2000 = vmatpush1.msra.mxu0 0.0
    %2001 = vmatprep.subr.mxu0 0.0
    %2002 = vmatpush1.msra.mxu0 0.0
    %2003 = vmatprep.mubr.f32.mxu0 0.0
    %2004 = vmatmul.mubr.f32.gmra.mrb[0].mxu0 %v49
    %v2005 = vpop.f32.mrb[0].mxu0
    %v2006 = vadd.f32 %v1935, %v2005
    %v2007 = vpop.f32.mrb[0].mxu0
    %2008 = vmatprep.mubr.f32.mxu0 0.0
    %2009 = vmatmul.mubr.f32.gmra.mrb[0].mxu0 %v52
    %v2010 = vpop.f32.mrb[0].mxu0
    %v2011 = vadd.f32 %v1935, %v2010
    %v2012 = vpop.f32.mrb[0].mxu0
    %2013 = vdwg.mxu0
    %v2014 = vld [vmem:[#allocation2 + $0x150] sm:$0xf]
    %v2015 = vld [vmem:[#allocation2 + $0x158] sm:$0x1]
    %v2016 = vlaneseq
    %v2017 = vshrl.u32 %v2016, 7
    %v2018 = vsub.s32 0, %v2017
    %v2019 = vrot.slane %v2015, %v2018
    %v2021 = vsel %vm54, %v2014, 0
    %2023 = vmatprep.subr.mxu0 0.0
    %2024 = vmatpush1.msra.mxu0 %v2021
    %2025 = vmatprep.subr.mxu0 0.0
    %2026 = vmatpush1.msra.mxu0 0.0
    %2027 = vmatprep.subr.mxu0 0.0
    %2028 = vmatpush1.msra.mxu0 0.0
    %2029 = vmatprep.subr.mxu0 0.0
    %2030 = vmatpush1.msra.mxu0 0.0
    %2031 = vmatprep.subr.mxu0 0.0
    %2032 = vmatpush1.msra.mxu0 0.0
    %2033 = vmatprep.subr.mxu0 0.0
    %2034 = vmatpush1.msra.mxu0 0.0
    %2035 = vmatprep.subr.mxu0 0.0
    %2036 = vmatpush1.msra.mxu0 0.0
    %2037 = vmatprep.subr.mxu0 0.0
    %2038 = vmatpush1.msra.mxu0 0.0
    %2039 = vmatprep.subr.mxu0 0.0
    %2040 = vmatpush1.msra.mxu0 0.0
    %2041 = vmatprep.subr.mxu0 0.0
    %2042 = vmatpush1.msra.mxu0 0.0
    %2043 = vmatprep.subr.mxu0 0.0
    %2044 = vmatpush1.msra.mxu0 0.0
    %2045 = vmatprep.subr.mxu0 0.0
    %2046 = vmatpush1.msra.mxu0 0.0
    %2047 = vmatprep.subr.mxu0 0.0
    %2048 = vmatpush1.msra.mxu0 0.0
    %2049 = vmatprep.subr.mxu0 0.0
    %2050 = vmatpush1.msra.mxu0 0.0
    %2051 = vmatprep.subr.mxu0 0.0
    %2052 = vmatpush1.msra.mxu0 0.0
    %2053 = vmatprep.subr.mxu0 0.0
    %2054 = vmatpush1.msra.mxu0 0.0
    %2055 = vmatprep.subr.mxu0 0.0
    %2056 = vmatpush1.msra.mxu0 0.0
    %2057 = vmatprep.subr.mxu0 0.0
    %2058 = vmatpush1.msra.mxu0 0.0
    %2059 = vmatprep.subr.mxu0 0.0
    %2060 = vmatpush1.msra.mxu0 0.0
    %2061 = vmatprep.subr.mxu0 0.0
    %2062 = vmatpush1.msra.mxu0 0.0
    %2063 = vmatprep.subr.mxu0 0.0
    %2064 = vmatpush1.msra.mxu0 0.0
    %2065 = vmatprep.subr.mxu0 0.0
    %2066 = vmatpush1.msra.mxu0 0.0
    %2067 = vmatprep.subr.mxu0 0.0
    %2068 = vmatpush1.msra.mxu0 0.0
    %2069 = vmatprep.subr.mxu0 0.0
    %2070 = vmatpush1.msra.mxu0 0.0
    %2071 = vmatprep.subr.mxu0 0.0
    %2072 = vmatpush1.msra.mxu0 0.0
    %2073 = vmatprep.subr.mxu0 0.0
    %2074 = vmatpush1.msra.mxu0 0.0
    %2075 = vmatprep.subr.mxu0 0.0
    %2076 = vmatpush1.msra.mxu0 0.0
    %2077 = vmatprep.subr.mxu0 0.0
    %2078 = vmatpush1.msra.mxu0 0.0
    %2079 = vmatprep.subr.mxu0 0.0
    %2080 = vmatpush1.msra.mxu0 0.0
    %2081 = vmatprep.subr.mxu0 0.0
    %2082 = vmatpush1.msra.mxu0 0.0
    %2083 = vmatprep.subr.mxu0 0.0
    %2084 = vmatpush1.msra.mxu0 0.0
    %2085 = vmatprep.subr.mxu0 0.0
    %2086 = vmatpush1.msra.mxu0 0.0
    %2087 = vmatprep.mubr.f32.mxu0 0.0
    %2088 = vmatmul.mubr.f32.gmra.mrb[0].mxu0 %v49
    %v2089 = vpop.f32.mrb[0].mxu0
    %v2090 = vadd.f32 %v2019, %v2089
    %v2091 = vpop.f32.mrb[0].mxu0
    %2092 = vmatprep.mubr.f32.mxu0 0.0
    %2093 = vmatmul.mubr.f32.gmra.mrb[0].mxu0 %v52
    %v2094 = vpop.f32.mrb[0].mxu0
    %v2095 = vadd.f32 %v2019, %v2094
    %v2096 = vpop.f32.mrb[0].mxu0
    %2097 = vdwg.mxu0
    %v2098 = vmul.f32 %v1922, %v304
    %v2099 = vmul.f32 %v1927, %v304
    %v2100 = vmul.f32 %v1922, %v310
    %v2101 = vmul.f32 %v1927, %v310
    %v2103 = vsel %vm47, %v2098, 0
    %v2106 = vsel %vm47, %v2099, 0
    %v2109 = vsel %vm47, %v2100, 0
    %v2112 = vsel %vm47, %v2101, 0
    %v2115 = vsel %vm47, %v2006, 0
    %v2118 = vsel %vm47, %v2011, 0
    %2120 = vmatprep.subr.mxu0 0.0
    %2121 = vmatpush1.xpose.msra.mxu0 %v2115
    %2122 = vmatprep.subr.mxu0 0.0
    %2123 = vmatpush1.xpose.msra.mxu0 %v2118
    %2124 = vmatprep.subr.mxu0 0.0
    %2125 = vmatpush1.xpose.msra.mxu0 0.0
    %2126 = vmatprep.subr.mxu0 0.0
    %2127 = vmatpush1.xpose.msra.mxu0 0.0
    %2128 = vmatprep.subr.mxu0 0.0
    %2129 = vmatpush1.xpose.msra.mxu0 0.0
    %2130 = vmatprep.subr.mxu0 0.0
    %2131 = vmatpush1.xpose.msra.mxu0 0.0
    %2132 = vmatprep.subr.mxu0 0.0
    %2133 = vmatpush1.xpose.msra.mxu0 0.0
    %2134 = vmatprep.subr.mxu0 0.0
    %2135 = vmatpush1.xpose.msra.mxu0 0.0
    %2136 = vmatprep.subr.mxu0 0.0
    %2137 = vmatpush1.xpose.msra.mxu0 0.0
    %2138 = vmatprep.subr.mxu0 0.0
    %2139 = vmatpush1.xpose.msra.mxu0 0.0
    %2140 = vmatprep.subr.mxu0 0.0
    %2141 = vmatpush1.xpose.msra.mxu0 0.0
    %2142 = vmatprep.subr.mxu0 0.0
    %2143 = vmatpush1.xpose.msra.mxu0 0.0
    %2144 = vmatprep.subr.mxu0 0.0
    %2145 = vmatpush1.xpose.msra.mxu0 0.0
    %2146 = vmatprep.subr.mxu0 0.0
    %2147 = vmatpush1.xpose.msra.mxu0 0.0
    %2148 = vmatprep.subr.mxu0 0.0
    %2149 = vmatpush1.xpose.msra.mxu0 0.0
    %2150 = vmatprep.subr.mxu0 0.0
    %2151 = vmatpush1.xpose.msra.mxu0 0.0
    %2152 = vmatprep.subr.mxu0 0.0
    %2153 = vmatpush1.xpose.msra.mxu0 0.0
    %2154 = vmatprep.subr.mxu0 0.0
    %2155 = vmatpush1.xpose.msra.mxu0 0.0
    %2156 = vmatprep.subr.mxu0 0.0
    %2157 = vmatpush1.xpose.msra.mxu0 0.0
    %2158 = vmatprep.subr.mxu0 0.0
    %2159 = vmatpush1.xpose.msra.mxu0 0.0
    %2160 = vmatprep.subr.mxu0 0.0
    %2161 = vmatpush1.xpose.msra.mxu0 0.0
    %2162 = vmatprep.subr.mxu0 0.0
    %2163 = vmatpush1.xpose.msra.mxu0 0.0
    %2164 = vmatprep.subr.mxu0 0.0
    %2165 = vmatpush1.xpose.msra.mxu0 0.0
    %2166 = vmatprep.subr.mxu0 0.0
    %2167 = vmatpush1.xpose.msra.mxu0 0.0
    %2168 = vmatprep.subr.mxu0 0.0
    %2169 = vmatpush1.xpose.msra.mxu0 0.0
    %2170 = vmatprep.subr.mxu0 0.0
    %2171 = vmatpush1.xpose.msra.mxu0 0.0
    %2172 = vmatprep.subr.mxu0 0.0
    %2173 = vmatpush1.xpose.msra.mxu0 0.0
    %2174 = vmatprep.subr.mxu0 0.0
    %2175 = vmatpush1.xpose.msra.mxu0 0.0
    %2176 = vmatprep.subr.mxu0 0.0
    %2177 = vmatpush1.xpose.msra.mxu0 0.0
    %2178 = vmatprep.subr.mxu0 0.0
    %2179 = vmatpush1.xpose.msra.mxu0 0.0
    %2180 = vmatprep.subr.mxu0 0.0
    %2181 = vmatpush1.xpose.msra.mxu0 0.0
    %2182 = vmatprep.subr.mxu0 0.0
    %2183 = vmatpush1.xpose.msra.mxu0 0.0
    %2184 = vmatprep.mubr.f32.mxu0 0.0
    %2185 = vmatmul.mubr.f32.gmra.mrb[0].mxu0 %v2103
    %v2186 = vpop.f32.mrb[0].mxu0
    %v2187 = vadd.f32 0.0, %v2186
    %v2188 = vpop.f32.mrb[0].mxu0
    %2189 = vmatprep.mubr.f32.mxu0 0.0
    %2190 = vmatmul.mubr.f32.gmra.mrb[0].mxu0 %v2106
    %v2191 = vpop.f32.mrb[0].mxu0
    %v2192 = vadd.f32 0.0, %v2191
    %v2193 = vpop.f32.mrb[0].mxu0
    %2194 = vmatprep.mubr.f32.mxu0 0.0
    %2195 = vmatmul.mubr.f32.gmra.mrb[0].mxu0 %v2109
    %v2196 = vpop.f32.mrb[0].mxu0
    %v2197 = vadd.f32 0.0, %v2196
    %v2198 = vpop.f32.mrb[0].mxu0
    %2199 = vmatprep.mubr.f32.mxu0 0.0
    %2200 = vmatmul.mubr.f32.gmra.mrb[0].mxu0 %v2112
    %v2201 = vpop.f32.mrb[0].mxu0
    %v2202 = vadd.f32 0.0, %v2201
    %v2203 = vpop.f32.mrb[0].mxu0
    %2204 = vdwg.mxu0
    %v2205 = vmul.f32 %v2187, 0.70710677
    %v2206 = vmul.f32 %v2192, 0.70710677
    %v2207 = vmul.f32 %v2197, 0.70710677
    %v2208 = vmul.f32 %v2202, 0.70710677
    %v2209 = vadd.f32 %v2205, %v28
    %v2210 = vadd.f32 %v2206, %v29
    %v2211 = vadd.f32 %v2207, %v30
    %v2212 = vadd.f32 %v2208, %v31
    %v2213 = vsel %vm424, %v2209, -inf
    %2214 = vmax.xlane.f32.xlu0 %v2213
    %v2215 = vpop.xlane.xlu0 %2214
    %v2216 = vsel %vm424, %v2210, -inf
    %2217 = vmax.xlane.f32.xlu0 %v2216
    %v2218 = vpop.xlane.xlu0 %2217
    %v2219 = vsel %vm424, %v2211, -inf
    %2220 = vmax.xlane.f32.xlu0 %v2219
    %v2221 = vpop.xlane.xlu0 %2220
    %v2222 = vsel %vm424, %v2212, -inf
    %2223 = vmax.xlane.f32.xlu0 %v2222
    %v2224 = vpop.xlane.xlu0 %2223
    %v2225 = vsub.f32 %v2209, %v2215
    %v2226 = vsub.f32 %v2210, %v2218
    %v2227 = vsub.f32 %v2211, %v2221
    %v2228 = vsub.f32 %v2212, %v2224
    %v2229 = vmul.f32 %v2225, 1.442695
    %v2230 = vpow.pop %v2229
    %v2231 = vmul.f32 %v2226, 1.442695
    %v2232 = vpow.pop %v2231
    %v2233 = vmul.f32 %v2227, 1.442695
    %v2234 = vpow.pop %v2233
    %v2235 = vmul.f32 %v2228, 1.442695
    %v2236 = vpow.pop %v2235
    %v2237 = vsel %vm424, %v2230, 0.0
    %2238 = vadd.xlane.f32.xlu0 %v2237
    %v2239 = vpop.xlane.xlu0 %2238
    %v2240 = vsel %vm424, %v2232, 0.0
    %2241 = vadd.xlane.f32.xlu0 %v2240
    %v2242 = vpop.xlane.xlu0 %2241
    %v2243 = vsel %vm424, %v2234, 0.0
    %2244 = vadd.xlane.f32.xlu0 %v2243
    %v2245 = vpop.xlane.xlu0 %2244
    %v2246 = vsel %vm424, %v2236, 0.0
    %2247 = vadd.xlane.f32.xlu0 %v2246
    %v2248 = vpop.xlane.xlu0 %2247
    %v2249 = vrcp.pop %v2239
    %v2250 = vrcp.pop %v2242
    %v2251 = vrcp.pop %v2245
    %v2252 = vrcp.pop %v2248
    %v2253 = vmul.f32 %v2230, %v2249
    %v2254 = vmul.f32 %v2232, %v2250
    %v2255 = vmul.f32 %v2234, %v2251
    %v2256 = vmul.f32 %v2236, %v2252
    %v2258 = vsel %vm424, %v2253, 0
    %v2261 = vsel %vm424, %v2254, 0
    %v2264 = vsel %vm424, %v2255, 0
    %v2267 = vsel %vm424, %v2256, 0
    %2269 = vmatprep.subr.mxu0 0.0
    %2270 = vmatpush1.msra.mxu0 %v2090
    %2271 = vmatprep.subr.mxu0 0.0
    %2272 = vmatpush1.msra.mxu0 %v2095
    %2273 = vmatprep.subr.mxu0 0.0
    %2274 = vmatpush1.msra.mxu0 0.0
    %2275 = vmatprep.subr.mxu0 0.0
    %2276 = vmatpush1.msra.mxu0 0.0
    %2277 = vmatprep.subr.mxu0 0.0
    %2278 = vmatpush1.msra.mxu0 0.0
    %2279 = vmatprep.subr.mxu0 0.0
    %2280 = vmatpush1.msra.mxu0 0.0
    %2281 = vmatprep.subr.mxu0 0.0
    %2282 = vmatpush1.msra.mxu0 0.0
    %2283 = vmatprep.subr.mxu0 0.0
    %2284 = vmatpush1.msra.mxu0 0.0
    %2285 = vmatprep.subr.mxu0 0.0
    %2286 = vmatpush1.msra.mxu0 0.0
    %2287 = vmatprep.subr.mxu0 0.0
    %2288 = vmatpush1.msra.mxu0 0.0
    %2289 = vmatprep.subr.mxu0 0.0
    %2290 = vmatpush1.msra.mxu0 0.0
    %2291 = vmatprep.subr.mxu0 0.0
    %2292 = vmatpush1.msra.mxu0 0.0
    %2293 = vmatprep.subr.mxu0 0.0
    %2294 = vmatpush1.msra.mxu0 0.0
    %2295 = vmatprep.subr.mxu0 0.0
    %2296 = vmatpush1.msra.mxu0 0.0
    %2297 = vmatprep.subr.mxu0 0.0
    %2298 = vmatpush1.msra.mxu0 0.0
    %2299 = vmatprep.subr.mxu0 0.0
    %2300 = vmatpush1.msra.mxu0 0.0
    %2301 = vmatprep.subr.mxu0 0.0
    %2302 = vmatpush1.msra.mxu0 0.0
    %2303 = vmatprep.subr.mxu0 0.0
    %2304 = vmatpush1.msra.mxu0 0.0
    %2305 = vmatprep.subr.mxu0 0.0
    %2306 = vmatpush1.msra.mxu0 0.0
    %2307 = vmatprep.subr.mxu0 0.0
    %2308 = vmatpush1.msra.mxu0 0.0
    %2309 = vmatprep.subr.mxu0 0.0
    %2310 = vmatpush1.msra.mxu0 0.0
    %2311 = vmatprep.subr.mxu0 0.0
    %2312 = vmatpush1.msra.mxu0 0.0
    %2313 = vmatprep.subr.mxu0 0.0
    %2314 = vmatpush1.msra.mxu0 0.0
    %2315 = vmatprep.subr.mxu0 0.0
    %2316 = vmatpush1.msra.mxu0 0.0
    %2317 = vmatprep.subr.mxu0 0.0
    %2318 = vmatpush1.msra.mxu0 0.0
    %2319 = vmatprep.subr.mxu0 0.0
    %2320 = vmatpush1.msra.mxu0 0.0
    %2321 = vmatprep.subr.mxu0 0.0
    %2322 = vmatpush1.msra.mxu0 0.0
    %2323 = vmatprep.subr.mxu0 0.0
    %2324 = vmatpush1.msra.mxu0 0.0
    %2325 = vmatprep.subr.mxu0 0.0
    %2326 = vmatpush1.msra.mxu0 0.0
    %2327 = vmatprep.subr.mxu0 0.0
    %2328 = vmatpush1.msra.mxu0 0.0
    %2329 = vmatprep.subr.mxu0 0.0
    %2330 = vmatpush1.msra.mxu0 0.0
    %2331 = vmatprep.subr.mxu0 0.0
    %2332 = vmatpush1.msra.mxu0 0.0
    %2333 = vmatprep.mubr.f32.mxu0 0.0
    %2334 = vmatmul.mubr.f32.gmra.mrb[0].mxu0 %v2258
    %v2335 = vpop.f32.mrb[0].mxu0
    %v2336 = vadd.f32 0.0, %v2335
    %v2337 = vpop.f32.mrb[0].mxu0
    %2338 = vmatprep.mubr.f32.mxu0 0.0
    %2339 = vmatmul.mubr.f32.gmra.mrb[0].mxu0 %v2261
    %v2340 = vpop.f32.mrb[0].mxu0
    %v2341 = vadd.f32 0.0, %v2340
    %v2342 = vpop.f32.mrb[0].mxu0
    %2343 = vmatprep.mubr.f32.mxu0 0.0
    %2344 = vmatmul.mubr.f32.gmra.mrb[0].mxu0 %v2264
    %v2345 = vpop.f32.mrb[0].mxu0
    %v2346 = vadd.f32 0.0, %v2345
    %v2347 = vpop.f32.mrb[0].mxu0
    %2348 = vmatprep.mubr.f32.mxu0 0.0
    %2349 = vmatmul.mubr.f32.gmra.mrb[0].mxu0 %v2267
    %v2350 = vpop.f32.mrb[0].mxu0
    %v2351 = vadd.f32 0.0, %v2350
    %v2352 = vpop.f32.mrb[0].mxu0
    %2353 = vdwg.mxu0
    %v2354 = vmul.f32 %v2336, %v304
    %v2355 = vmul.f32 %v2341, %v304
    %v2356 = vmul.f32 %v2346, %v310
    %v2357 = vmul.f32 %v2351, %v310
    %v2358 = vadd.f32 %v2354, %v2356
    %v2359 = vadd.f32 %v2355, %v2357
    %v2360 = vld [vmem:[#allocation2 + $0x160] sm:$0xf]
    %v2361 = vld [vmem:[#allocation2 + $0x168] sm:$0x1]
    %v2362 = vlaneseq
    %v2363 = vshrl.u32 %v2362, 7
    %v2364 = vsub.s32 0, %v2363
    %v2365 = vrot.slane %v2361, %v2364
    %v2367 = vsel %vm47, %v2358, 0
    %v2370 = vsel %vm47, %v2359, 0
    %v2373 = vsel %vm54, %v2360, 0
    %2375 = vmatprep.subr.mxu0 0.0
    %2376 = vmatpush1.msra.mxu0 %v2373
    %2377 = vmatprep.subr.mxu0 0.0
    %2378 = vmatpush1.msra.mxu0 0.0
    %2379 = vmatprep.subr.mxu0 0.0
    %2380 = vmatpush1.msra.mxu0 0.0
    %2381 = vmatprep.subr.mxu0 0.0
    %2382 = vmatpush1.msra.mxu0 0.0
    %2383 = vmatprep.subr.mxu0 0.0
    %2384 = vmatpush1.msra.mxu0 0.0
    %2385 = vmatprep.subr.mxu0 0.0
    %2386 = vmatpush1.msra.mxu0 0.0
    %2387 = vmatprep.subr.mxu0 0.0
    %2388 = vmatpush1.msra.mxu0 0.0
    %2389 = vmatprep.subr.mxu0 0.0
    %2390 = vmatpush1.msra.mxu0 0.0
    %2391 = vmatprep.subr.mxu0 0.0
    %2392 = vmatpush1.msra.mxu0 0.0
    %2393 = vmatprep.subr.mxu0 0.0
    %2394 = vmatpush1.msra.mxu0 0.0
    %2395 = vmatprep.subr.mxu0 0.0
    %2396 = vmatpush1.msra.mxu0 0.0
    %2397 = vmatprep.subr.mxu0 0.0
    %2398 = vmatpush1.msra.mxu0 0.0
    %2399 = vmatprep.subr.mxu0 0.0
    %2400 = vmatpush1.msra.mxu0 0.0
    %2401 = vmatprep.subr.mxu0 0.0
    %2402 = vmatpush1.msra.mxu0 0.0
    %2403 = vmatprep.subr.mxu0 0.0
    %2404 = vmatpush1.msra.mxu0 0.0
    %2405 = vmatprep.subr.mxu0 0.0
    %2406 = vmatpush1.msra.mxu0 0.0
    %2407 = vmatprep.subr.mxu0 0.0
    %2408 = vmatpush1.msra.mxu0 0.0
    %2409 = vmatprep.subr.mxu0 0.0
    %2410 = vmatpush1.msra.mxu0 0.0
    %2411 = vmatprep.subr.mxu0 0.0
    %2412 = vmatpush1.msra.mxu0 0.0
    %2413 = vmatprep.subr.mxu0 0.0
    %2414 = vmatpush1.msra.mxu0 0.0
    %2415 = vmatprep.subr.mxu0 0.0
    %2416 = vmatpush1.msra.mxu0 0.0
    %2417 = vmatprep.subr.mxu0 0.0
    %2418 = vmatpush1.msra.mxu0 0.0
    %2419 = vmatprep.subr.mxu0 0.0
    %2420 = vmatpush1.msra.mxu0 0.0
    %2421 = vmatprep.subr.mxu0 0.0
    %2422 = vmatpush1.msra.mxu0 0.0
    %2423 = vmatprep.subr.mxu0 0.0
    %2424 = vmatpush1.msra.mxu0 0.0
    %2425 = vmatprep.subr.mxu0 0.0
    %2426 = vmatpush1.msra.mxu0 0.0
    %2427 = vmatprep.subr.mxu0 0.0
    %2428 = vmatpush1.msra.mxu0 0.0
    %2429 = vmatprep.subr.mxu0 0.0
    %2430 = vmatpush1.msra.mxu0 0.0
    %2431 = vmatprep.subr.mxu0 0.0
    %2432 = vmatpush1.msra.mxu0 0.0
    %2433 = vmatprep.subr.mxu0 0.0
    %2434 = vmatpush1.msra.mxu0 0.0
    %2435 = vmatprep.subr.mxu0 0.0
    %2436 = vmatpush1.msra.mxu0 0.0
    %2437 = vmatprep.subr.mxu0 0.0
    %2438 = vmatpush1.msra.mxu0 0.0
    %2439 = vmatprep.mubr.f32.mxu0 0.0
    %2440 = vmatmul.mubr.f32.gmra.mrb[0].mxu0 %v2367
    %v2441 = vpop.f32.mrb[0].mxu0
    %v2442 = vadd.f32 %v2365, %v2441
    %v2443 = vpop.f32.mrb[0].mxu0
    %2444 = vmatprep.mubr.f32.mxu0 0.0
    %2445 = vmatmul.mubr.f32.gmra.mrb[0].mxu0 %v2370
    %v2446 = vpop.f32.mrb[0].mxu0
    %v2447 = vadd.f32 %v2365, %v2446
    %v2448 = vpop.f32.mrb[0].mxu0
    %2449 = vdwg.mxu0
    %v2450 = vadd.f32 %v39, %v2442
    %v2451 = vadd.f32 %v40, %v2447
    %v2452 = vsel %vm47, %v2450, 0.0
    %2453 = vadd.xlane.f32.xlu0 %v2452
    %v2454 = vpop.xlane.xlu0 %2453
    %v2455 = vsel %vm47, %v2451, 0.0
    %2456 = vadd.xlane.f32.xlu0 %v2455
    %v2457 = vpop.xlane.xlu0 %2456
    %v2458 = vmul.f32 %v2454, %v670
    %v2459 = vmul.f32 %v2457, %v670
    %v2460 = vsub.f32 %v2450, %v2458
    %v2461 = vsub.f32 %v2451, %v2459
    %v2462 = vmul.f32 %v2460, %v2460
    %v2463 = vmul.f32 %v2461, %v2461
    %v2464 = vsel %vm47, %v2462, 0.0
    %2465 = vadd.xlane.f32.xlu0 %v2464
    %v2466 = vpop.xlane.xlu0 %2465
    %v2467 = vsel %vm47, %v2463, 0.0
    %2468 = vadd.xlane.f32.xlu0 %v2467
    %v2469 = vpop.xlane.xlu0 %2468
    %v2470 = vmul.f32 %v2466, %v670
    %v2471 = vmul.f32 %v2469, %v670
    %v2472 = vadd.f32 %v2470, 1e-05
    %v2473 = vadd.f32 %v2471, 1e-05
    %v2474 = vrsqrt.pop %v2472
    %v2475 = vrsqrt.pop %v2473
    %v2476 = vmul.f32 %v2460, %v2474
    %v2477 = vmul.f32 %v2461, %v2475
    %v2478 = vld [vmem:[#allocation2 + $0x1e8] sm:$0x1]
    %v2479 = vlaneseq
    %v2480 = vshrl.u32 %v2479, 7
    %v2481 = vsub.s32 0, %v2480
    %v2482 = vrot.slane %v2478, %v2481
    %v2483 = vmul.f32 %v2476, %v2482
    %v2484 = vmul.f32 %v2477, %v2482
    %v2485 = vld [vmem:[#allocation2 + $0x1f0] sm:$0x1]
    %v2486 = vlaneseq
    %v2487 = vshrl.u32 %v2486, 7
    %v2488 = vsub.s32 0, %v2487
    %v2489 = vrot.slane %v2485, %v2488
    %v2490 = vadd.f32 %v2483, %v2489
    %v2491 = vadd.f32 %v2484, %v2489
    %v2492 = vld [vmem:[#allocation2 + $0x170] sm:$0xf]
    %v2493 = vld [vmem:[#allocation2 + $0x178] sm:$0x1]
    %v2494 = vlaneseq
    %v2495 = vshrl.u32 %v2494, 7
    %v2496 = vsub.s32 0, %v2495
    %v2497 = vrot.slane %v2493, %v2496
    %v2499 = vsel %vm47, %v2490, 0
    %v2502 = vsel %vm47, %v2491, 0
    %v2505 = vsel %vm54, %v2492, 0
    %2507 = vmatprep.subr.mxu0 0.0
    %2508 = vmatpush1.msra.mxu0 %v2505
    %2509 = vmatprep.subr.mxu0 0.0
    %2510 = vmatpush1.msra.mxu0 0.0
    %2511 = vmatprep.subr.mxu0 0.0
    %2512 = vmatpush1.msra.mxu0 0.0
    %2513 = vmatprep.subr.mxu0 0.0
    %2514 = vmatpush1.msra.mxu0 0.0
    %2515 = vmatprep.subr.mxu0 0.0
    %2516 = vmatpush1.msra.mxu0 0.0
    %2517 = vmatprep.subr.mxu0 0.0
    %2518 = vmatpush1.msra.mxu0 0.0
    %2519 = vmatprep.subr.mxu0 0.0
    %2520 = vmatpush1.msra.mxu0 0.0
    %2521 = vmatprep.subr.mxu0 0.0
    %2522 = vmatpush1.msra.mxu0 0.0
    %2523 = vmatprep.subr.mxu0 0.0
    %2524 = vmatpush1.msra.mxu0 0.0
    %2525 = vmatprep.subr.mxu0 0.0
    %2526 = vmatpush1.msra.mxu0 0.0
    %2527 = vmatprep.subr.mxu0 0.0
    %2528 = vmatpush1.msra.mxu0 0.0
    %2529 = vmatprep.subr.mxu0 0.0
    %2530 = vmatpush1.msra.mxu0 0.0
    %2531 = vmatprep.subr.mxu0 0.0
    %2532 = vmatpush1.msra.mxu0 0.0
    %2533 = vmatprep.subr.mxu0 0.0
    %2534 = vmatpush1.msra.mxu0 0.0
    %2535 = vmatprep.subr.mxu0 0.0
    %2536 = vmatpush1.msra.mxu0 0.0
    %2537 = vmatprep.subr.mxu0 0.0
    %2538 = vmatpush1.msra.mxu0 0.0
    %2539 = vmatprep.subr.mxu0 0.0
    %2540 = vmatpush1.msra.mxu0 0.0
    %2541 = vmatprep.subr.mxu0 0.0
    %2542 = vmatpush1.msra.mxu0 0.0
    %2543 = vmatprep.subr.mxu0 0.0
    %2544 = vmatpush1.msra.mxu0 0.0
    %2545 = vmatprep.subr.mxu0 0.0
    %2546 = vmatpush1.msra.mxu0 0.0
    %2547 = vmatprep.subr.mxu0 0.0
    %2548 = vmatpush1.msra.mxu0 0.0
    %2549 = vmatprep.subr.mxu0 0.0
    %2550 = vmatpush1.msra.mxu0 0.0
    %2551 = vmatprep.subr.mxu0 0.0
    %2552 = vmatpush1.msra.mxu0 0.0
    %2553 = vmatprep.subr.mxu0 0.0
    %2554 = vmatpush1.msra.mxu0 0.0
    %2555 = vmatprep.subr.mxu0 0.0
    %2556 = vmatpush1.msra.mxu0 0.0
    %2557 = vmatprep.subr.mxu0 0.0
    %2558 = vmatpush1.msra.mxu0 0.0
    %2559 = vmatprep.subr.mxu0 0.0
    %2560 = vmatpush1.msra.mxu0 0.0
    %2561 = vmatprep.subr.mxu0 0.0
    %2562 = vmatpush1.msra.mxu0 0.0
    %2563 = vmatprep.subr.mxu0 0.0
    %2564 = vmatpush1.msra.mxu0 0.0
    %2565 = vmatprep.subr.mxu0 0.0
    %2566 = vmatpush1.msra.mxu0 0.0
    %2567 = vmatprep.subr.mxu0 0.0
    %2568 = vmatpush1.msra.mxu0 0.0
    %2569 = vmatprep.subr.mxu0 0.0
    %2570 = vmatpush1.msra.mxu0 0.0
    %2571 = vmatprep.mubr.f32.mxu0 0.0
    %2572 = vmatmul.mubr.f32.gmra.mrb[0].mxu0 %v2499
    %v2573 = vpop.f32.mrb[0].mxu0
    %v2574 = vadd.f32 %v2497, %v2573
    %v2575 = vpop.f32.mrb[0].mxu0
    %2576 = vmatprep.mubr.f32.mxu0 0.0
    %2577 = vmatmul.mubr.f32.gmra.mrb[0].mxu0 %v2502
    %v2578 = vpop.f32.mrb[0].mxu0
    %v2579 = vadd.f32 %v2497, %v2578
    %v2580 = vpop.f32.mrb[0].mxu0
    %2581 = vdwg.mxu0
    %v2582 = vld [vmem:[#allocation2 + $0x180] sm:$0xf]
    %v2583 = vld [vmem:[#allocation2 + $0x188] sm:$0x1]
    %v2584 = vlaneseq
    %v2585 = vshrl.u32 %v2584, 7
    %v2586 = vsub.s32 0, %v2585
    %v2587 = vrot.slane %v2583, %v2586
    %v2589 = vsel %vm47, %v1844, 0
    %v2592 = vsel %vm47, %v1845, 0
    %v2595 = vsel %vm54, %v2582, 0
    %2597 = vmatprep.subr.mxu0 0.0
    %2598 = vmatpush1.msra.mxu0 %v2595
    %2599 = vmatprep.subr.mxu0 0.0
    %2600 = vmatpush1.msra.mxu0 0.0
    %2601 = vmatprep.subr.mxu0 0.0
    %2602 = vmatpush1.msra.mxu0 0.0
    %2603 = vmatprep.subr.mxu0 0.0
    %2604 = vmatpush1.msra.mxu0 0.0
    %2605 = vmatprep.subr.mxu0 0.0
    %2606 = vmatpush1.msra.mxu0 0.0
    %2607 = vmatprep.subr.mxu0 0.0
    %2608 = vmatpush1.msra.mxu0 0.0
    %2609 = vmatprep.subr.mxu0 0.0
    %2610 = vmatpush1.msra.mxu0 0.0
    %2611 = vmatprep.subr.mxu0 0.0
    %2612 = vmatpush1.msra.mxu0 0.0
    %2613 = vmatprep.subr.mxu0 0.0
    %2614 = vmatpush1.msra.mxu0 0.0
    %2615 = vmatprep.subr.mxu0 0.0
    %2616 = vmatpush1.msra.mxu0 0.0
    %2617 = vmatprep.subr.mxu0 0.0
    %2618 = vmatpush1.msra.mxu0 0.0
    %2619 = vmatprep.subr.mxu0 0.0
    %2620 = vmatpush1.msra.mxu0 0.0
    %2621 = vmatprep.subr.mxu0 0.0
    %2622 = vmatpush1.msra.mxu0 0.0
    %2623 = vmatprep.subr.mxu0 0.0
    %2624 = vmatpush1.msra.mxu0 0.0
    %2625 = vmatprep.subr.mxu0 0.0
    %2626 = vmatpush1.msra.mxu0 0.0
    %2627 = vmatprep.subr.mxu0 0.0
    %2628 = vmatpush1.msra.mxu0 0.0
    %2629 = vmatprep.subr.mxu0 0.0
    %2630 = vmatpush1.msra.mxu0 0.0
    %2631 = vmatprep.subr.mxu0 0.0
    %2632 = vmatpush1.msra.mxu0 0.0
    %2633 = vmatprep.subr.mxu0 0.0
    %2634 = vmatpush1.msra.mxu0 0.0
    %2635 = vmatprep.subr.mxu0 0.0
    %2636 = vmatpush1.msra.mxu0 0.0
    %2637 = vmatprep.subr.mxu0 0.0
    %2638 = vmatpush1.msra.mxu0 0.0
    %2639 = vmatprep.subr.mxu0 0.0
    %2640 = vmatpush1.msra.mxu0 0.0
    %2641 = vmatprep.subr.mxu0 0.0
    %2642 = vmatpush1.msra.mxu0 0.0
    %2643 = vmatprep.subr.mxu0 0.0
    %2644 = vmatpush1.msra.mxu0 0.0
    %2645 = vmatprep.subr.mxu0 0.0
    %2646 = vmatpush1.msra.mxu0 0.0
    %2647 = vmatprep.subr.mxu0 0.0
    %2648 = vmatpush1.msra.mxu0 0.0
    %2649 = vmatprep.subr.mxu0 0.0
    %2650 = vmatpush1.msra.mxu0 0.0
    %2651 = vmatprep.subr.mxu0 0.0
    %2652 = vmatpush1.msra.mxu0 0.0
    %2653 = vmatprep.subr.mxu0 0.0
    %2654 = vmatpush1.msra.mxu0 0.0
    %2655 = vmatprep.subr.mxu0 0.0
    %2656 = vmatpush1.msra.mxu0 0.0
    %2657 = vmatprep.subr.mxu0 0.0
    %2658 = vmatpush1.msra.mxu0 0.0
    %2659 = vmatprep.subr.mxu0 0.0
    %2660 = vmatpush1.msra.mxu0 0.0
    %2661 = vmatprep.mubr.f32.mxu0 0.0
    %2662 = vmatmul.mubr.f32.gmra.mrb[0].mxu0 %v2589
    %v2663 = vpop.f32.mrb[0].mxu0
    %v2664 = vadd.f32 %v2587, %v2663
    %v2665 = vpop.f32.mrb[0].mxu0
    %2666 = vmatprep.mubr.f32.mxu0 0.0
    %2667 = vmatmul.mubr.f32.gmra.mrb[0].mxu0 %v2592
    %v2668 = vpop.f32.mrb[0].mxu0
    %v2669 = vadd.f32 %v2587, %v2668
    %v2670 = vpop.f32.mrb[0].mxu0
    %2671 = vdwg.mxu0
    %v2672 = vld [vmem:[#allocation2 + $0x190] sm:$0xf]
    %v2673 = vld [vmem:[#allocation2 + $0x198] sm:$0x1]
    %v2674 = vlaneseq
    %v2675 = vshrl.u32 %v2674, 7
    %v2676 = vsub.s32 0, %v2675
    %v2677 = vrot.slane %v2673, %v2676
    %v2679 = vsel %vm54, %v2672, 0
    %2681 = vmatprep.subr.mxu0 0.0
    %2682 = vmatpush1.msra.mxu0 %v2679
    %2683 = vmatprep.subr.mxu0 0.0
    %2684 = vmatpush1.msra.mxu0 0.0
    %2685 = vmatprep.subr.mxu0 0.0
    %2686 = vmatpush1.msra.mxu0 0.0
    %2687 = vmatprep.subr.mxu0 0.0
    %2688 = vmatpush1.msra.mxu0 0.0
    %2689 = vmatprep.subr.mxu0 0.0
    %2690 = vmatpush1.msra.mxu0 0.0
    %2691 = vmatprep.subr.mxu0 0.0
    %2692 = vmatpush1.msra.mxu0 0.0
    %2693 = vmatprep.subr.mxu0 0.0
    %2694 = vmatpush1.msra.mxu0 0.0
    %2695 = vmatprep.subr.mxu0 0.0
    %2696 = vmatpush1.msra.mxu0 0.0
    %2697 = vmatprep.subr.mxu0 0.0
    %2698 = vmatpush1.msra.mxu0 0.0
    %2699 = vmatprep.subr.mxu0 0.0
    %2700 = vmatpush1.msra.mxu0 0.0
    %2701 = vmatprep.subr.mxu0 0.0
    %2702 = vmatpush1.msra.mxu0 0.0
    %2703 = vmatprep.subr.mxu0 0.0
    %2704 = vmatpush1.msra.mxu0 0.0
    %2705 = vmatprep.subr.mxu0 0.0
    %2706 = vmatpush1.msra.mxu0 0.0
    %2707 = vmatprep.subr.mxu0 0.0
    %2708 = vmatpush1.msra.mxu0 0.0
    %2709 = vmatprep.subr.mxu0 0.0
    %2710 = vmatpush1.msra.mxu0 0.0
    %2711 = vmatprep.subr.mxu0 0.0
    %2712 = vmatpush1.msra.mxu0 0.0
    %2713 = vmatprep.subr.mxu0 0.0
    %2714 = vmatpush1.msra.mxu0 0.0
    %2715 = vmatprep.subr.mxu0 0.0
    %2716 = vmatpush1.msra.mxu0 0.0
    %2717 = vmatprep.subr.mxu0 0.0
    %2718 = vmatpush1.msra.mxu0 0.0
    %2719 = vmatprep.subr.mxu0 0.0
    %2720 = vmatpush1.msra.mxu0 0.0
    %2721 = vmatprep.subr.mxu0 0.0
    %2722 = vmatpush1.msra.mxu0 0.0
    %2723 = vmatprep.subr.mxu0 0.0
    %2724 = vmatpush1.msra.mxu0 0.0
    %2725 = vmatprep.subr.mxu0 0.0
    %2726 = vmatpush1.msra.mxu0 0.0
    %2727 = vmatprep.subr.mxu0 0.0
    %2728 = vmatpush1.msra.mxu0 0.0
    %2729 = vmatprep.subr.mxu0 0.0
    %2730 = vmatpush1.msra.mxu0 0.0
    %2731 = vmatprep.subr.mxu0 0.0
    %2732 = vmatpush1.msra.mxu0 0.0
    %2733 = vmatprep.subr.mxu0 0.0
    %2734 = vmatpush1.msra.mxu0 0.0
    %2735 = vmatprep.subr.mxu0 0.0
    %2736 = vmatpush1.msra.mxu0 0.0
    %2737 = vmatprep.subr.mxu0 0.0
    %2738 = vmatpush1.msra.mxu0 0.0
    %2739 = vmatprep.subr.mxu0 0.0
    %2740 = vmatpush1.msra.mxu0 0.0
    %2741 = vmatprep.subr.mxu0 0.0
    %2742 = vmatpush1.msra.mxu0 0.0
    %2743 = vmatprep.subr.mxu0 0.0
    %2744 = vmatpush1.msra.mxu0 0.0
    %2745 = vmatprep.mubr.f32.mxu0 0.0
    %2746 = vmatmul.mubr.f32.gmra.mrb[0].mxu0 %v2589
    %v2747 = vpop.f32.mrb[0].mxu0
    %v2748 = vadd.f32 %v2677, %v2747
    %v2749 = vpop.f32.mrb[0].mxu0
    %2750 = vmatprep.mubr.f32.mxu0 0.0
    %2751 = vmatmul.mubr.f32.gmra.mrb[0].mxu0 %v2592
    %v2752 = vpop.f32.mrb[0].mxu0
    %v2753 = vadd.f32 %v2677, %v2752
    %v2754 = vpop.f32.mrb[0].mxu0
    %2755 = vdwg.mxu0
    %v2756 = vmul.f32 %v2574, %v304
    %v2757 = vmul.f32 %v2579, %v304
    %v2758 = vmul.f32 %v2574, %v310
    %v2759 = vmul.f32 %v2579, %v310
    %v2761 = vsel %vm47, %v2756, 0
    %v2764 = vsel %vm47, %v2757, 0
    %v2767 = vsel %vm47, %v2758, 0
    %v2770 = vsel %vm47, %v2759, 0
    %v2773 = vsel %vm47, %v2664, 0
    %v2776 = vsel %vm47, %v2669, 0
    %2778 = vmatprep.subr.mxu0 0.0
    %2779 = vmatpush1.xpose.msra.mxu0 %v2773
    %2780 = vmatprep.subr.mxu0 0.0
    %2781 = vmatpush1.xpose.msra.mxu0 %v2776
    %2782 = vmatprep.subr.mxu0 0.0
    %2783 = vmatpush1.xpose.msra.mxu0 0.0
    %2784 = vmatprep.subr.mxu0 0.0
    %2785 = vmatpush1.xpose.msra.mxu0 0.0
    %2786 = vmatprep.subr.mxu0 0.0
    %2787 = vmatpush1.xpose.msra.mxu0 0.0
    %2788 = vmatprep.subr.mxu0 0.0
    %2789 = vmatpush1.xpose.msra.mxu0 0.0
    %2790 = vmatprep.subr.mxu0 0.0
    %2791 = vmatpush1.xpose.msra.mxu0 0.0
    %2792 = vmatprep.subr.mxu0 0.0
    %2793 = vmatpush1.xpose.msra.mxu0 0.0
    %2794 = vmatprep.subr.mxu0 0.0
    %2795 = vmatpush1.xpose.msra.mxu0 0.0
    %2796 = vmatprep.subr.mxu0 0.0
    %2797 = vmatpush1.xpose.msra.mxu0 0.0
    %2798 = vmatprep.subr.mxu0 0.0
    %2799 = vmatpush1.xpose.msra.mxu0 0.0
    %2800 = vmatprep.subr.mxu0 0.0
    %2801 = vmatpush1.xpose.msra.mxu0 0.0
    %2802 = vmatprep.subr.mxu0 0.0
    %2803 = vmatpush1.xpose.msra.mxu0 0.0
    %2804 = vmatprep.subr.mxu0 0.0
    %2805 = vmatpush1.xpose.msra.mxu0 0.0
    %2806 = vmatprep.subr.mxu0 0.0
    %2807 = vmatpush1.xpose.msra.mxu0 0.0
    %2808 = vmatprep.subr.mxu0 0.0
    %2809 = vmatpush1.xpose.msra.mxu0 0.0
    %2810 = vmatprep.subr.mxu0 0.0
    %2811 = vmatpush1.xpose.msra.mxu0 0.0
    %2812 = vmatprep.subr.mxu0 0.0
    %2813 = vmatpush1.xpose.msra.mxu0 0.0
    %2814 = vmatprep.subr.mxu0 0.0
    %2815 = vmatpush1.xpose.msra.mxu0 0.0
    %2816 = vmatprep.subr.mxu0 0.0
    %2817 = vmatpush1.xpose.msra.mxu0 0.0
    %2818 = vmatprep.subr.mxu0 0.0
    %2819 = vmatpush1.xpose.msra.mxu0 0.0
    %2820 = vmatprep.subr.mxu0 0.0
    %2821 = vmatpush1.xpose.msra.mxu0 0.0
    %2822 = vmatprep.subr.mxu0 0.0
    %2823 = vmatpush1.xpose.msra.mxu0 0.0
    %2824 = vmatprep.subr.mxu0 0.0
    %2825 = vmatpush1.xpose.msra.mxu0 0.0
    %2826 = vmatprep.subr.mxu0 0.0
    %2827 = vmatpush1.xpose.msra.mxu0 0.0
    %2828 = vmatprep.subr.mxu0 0.0
    %2829 = vmatpush1.xpose.msra.mxu0 0.0
    %2830 = vmatprep.subr.mxu0 0.0
    %2831 = vmatpush1.xpose.msra.mxu0 0.0
    %2832 = vmatprep.subr.mxu0 0.0
    %2833 = vmatpush1.xpose.msra.mxu0 0.0
    %2834 = vmatprep.subr.mxu0 0.0
    %2835 = vmatpush1.xpose.msra.mxu0 0.0
    %2836 = vmatprep.subr.mxu0 0.0
    %2837 = vmatpush1.xpose.msra.mxu0 0.0
    %2838 = vmatprep.subr.mxu0 0.0
    %2839 = vmatpush1.xpose.msra.mxu0 0.0
    %2840 = vmatprep.subr.mxu0 0.0
    %2841 = vmatpush1.xpose.msra.mxu0 0.0
    %2842 = vmatprep.mubr.f32.mxu0 0.0
    %2843 = vmatmul.mubr.f32.gmra.mrb[0].mxu0 %v2761
    %v2844 = vpop.f32.mrb[0].mxu0
    %v2845 = vadd.f32 0.0, %v2844
    %v2846 = vpop.f32.mrb[0].mxu0
    %2847 = vmatprep.mubr.f32.mxu0 0.0
    %2848 = vmatmul.mubr.f32.gmra.mrb[0].mxu0 %v2764
    %v2849 = vpop.f32.mrb[0].mxu0
    %v2850 = vadd.f32 0.0, %v2849
    %v2851 = vpop.f32.mrb[0].mxu0
    %2852 = vmatprep.mubr.f32.mxu0 0.0
    %2853 = vmatmul.mubr.f32.gmra.mrb[0].mxu0 %v2767
    %v2854 = vpop.f32.mrb[0].mxu0
    %v2855 = vadd.f32 0.0, %v2854
    %v2856 = vpop.f32.mrb[0].mxu0
    %2857 = vmatprep.mubr.f32.mxu0 0.0
    %2858 = vmatmul.mubr.f32.gmra.mrb[0].mxu0 %v2770
    %v2859 = vpop.f32.mrb[0].mxu0
    %v2860 = vadd.f32 0.0, %v2859
    %v2861 = vpop.f32.mrb[0].mxu0
    %2862 = vdwg.mxu0
    %v2863 = vmul.f32 %v2845, 0.70710677
    %v2864 = vmul.f32 %v2850, 0.70710677
    %v2865 = vmul.f32 %v2855, 0.70710677
    %v2866 = vmul.f32 %v2860, 0.70710677
    %v2867 = vadd.f32 %v2863, %v32
    %v2868 = vadd.f32 %v2864, %v33
    %v2869 = vadd.f32 %v2865, %v34
    %v2870 = vadd.f32 %v2866, %v35
    %v2871 = vsel %vm424, %v2867, -inf
    %2872 = vmax.xlane.f32.xlu0 %v2871
    %v2873 = vpop.xlane.xlu0 %2872
    %v2874 = vsel %vm424, %v2868, -inf
    %2875 = vmax.xlane.f32.xlu0 %v2874
    %v2876 = vpop.xlane.xlu0 %2875
    %v2877 = vsel %vm424, %v2869, -inf
    %2878 = vmax.xlane.f32.xlu0 %v2877
    %v2879 = vpop.xlane.xlu0 %2878
    %v2880 = vsel %vm424, %v2870, -inf
    %2881 = vmax.xlane.f32.xlu0 %v2880
    %v2882 = vpop.xlane.xlu0 %2881
    %v2883 = vsub.f32 %v2867, %v2873
    %v2884 = vsub.f32 %v2868, %v2876
    %v2885 = vsub.f32 %v2869, %v2879
    %v2886 = vsub.f32 %v2870, %v2882
    %v2887 = vmul.f32 %v2883, 1.442695
    %v2888 = vpow.pop %v2887
    %v2889 = vmul.f32 %v2884, 1.442695
    %v2890 = vpow.pop %v2889
    %v2891 = vmul.f32 %v2885, 1.442695
    %v2892 = vpow.pop %v2891
    %v2893 = vmul.f32 %v2886, 1.442695
    %v2894 = vpow.pop %v2893
    %v2895 = vsel %vm424, %v2888, 0.0
    %2896 = vadd.xlane.f32.xlu0 %v2895
    %v2897 = vpop.xlane.xlu0 %2896
    %v2898 = vsel %vm424, %v2890, 0.0
    %2899 = vadd.xlane.f32.xlu0 %v2898
    %v2900 = vpop.xlane.xlu0 %2899
    %v2901 = vsel %vm424, %v2892, 0.0
    %2902 = vadd.xlane.f32.xlu0 %v2901
    %v2903 = vpop.xlane.xlu0 %2902
    %v2904 = vsel %vm424, %v2894, 0.0
    %2905 = vadd.xlane.f32.xlu0 %v2904
    %v2906 = vpop.xlane.xlu0 %2905
    %v2907 = vrcp.pop %v2897
    %v2908 = vrcp.pop %v2900
    %v2909 = vrcp.pop %v2903
    %v2910 = vrcp.pop %v2906
    %v2911 = vmul.f32 %v2888, %v2907
    %v2912 = vmul.f32 %v2890, %v2908
    %v2913 = vmul.f32 %v2892, %v2909
    %v2914 = vmul.f32 %v2894, %v2910
    %v2916 = vsel %vm424, %v2911, 0
    %v2919 = vsel %vm424, %v2912, 0
    %v2922 = vsel %vm424, %v2913, 0
    %v2925 = vsel %vm424, %v2914, 0
    %2927 = vmatprep.subr.mxu0 0.0
    %2928 = vmatpush1.msra.mxu0 %v2748
    %2929 = vmatprep.subr.mxu0 0.0
    %2930 = vmatpush1.msra.mxu0 %v2753
    %2931 = vmatprep.subr.mxu0 0.0
    %2932 = vmatpush1.msra.mxu0 0.0
    %2933 = vmatprep.subr.mxu0 0.0
    %2934 = vmatpush1.msra.mxu0 0.0
    %2935 = vmatprep.subr.mxu0 0.0
    %2936 = vmatpush1.msra.mxu0 0.0
    %2937 = vmatprep.subr.mxu0 0.0
    %2938 = vmatpush1.msra.mxu0 0.0
    %2939 = vmatprep.subr.mxu0 0.0
    %2940 = vmatpush1.msra.mxu0 0.0
    %2941 = vmatprep.subr.mxu0 0.0
    %2942 = vmatpush1.msra.mxu0 0.0
    %2943 = vmatprep.subr.mxu0 0.0
    %2944 = vmatpush1.msra.mxu0 0.0
    %2945 = vmatprep.subr.mxu0 0.0
    %2946 = vmatpush1.msra.mxu0 0.0
    %2947 = vmatprep.subr.mxu0 0.0
    %2948 = vmatpush1.msra.mxu0 0.0
    %2949 = vmatprep.subr.mxu0 0.0
    %2950 = vmatpush1.msra.mxu0 0.0
    %2951 = vmatprep.subr.mxu0 0.0
    %2952 = vmatpush1.msra.mxu0 0.0
    %2953 = vmatprep.subr.mxu0 0.0
    %2954 = vmatpush1.msra.mxu0 0.0
    %2955 = vmatprep.subr.mxu0 0.0
    %2956 = vmatpush1.msra.mxu0 0.0
    %2957 = vmatprep.subr.mxu0 0.0
    %2958 = vmatpush1.msra.mxu0 0.0
    %2959 = vmatprep.subr.mxu0 0.0
    %2960 = vmatpush1.msra.mxu0 0.0
    %2961 = vmatprep.subr.mxu0 0.0
    %2962 = vmatpush1.msra.mxu0 0.0
    %2963 = vmatprep.subr.mxu0 0.0
    %2964 = vmatpush1.msra.mxu0 0.0
    %2965 = vmatprep.subr.mxu0 0.0
    %2966 = vmatpush1.msra.mxu0 0.0
    %2967 = vmatprep.subr.mxu0 0.0
    %2968 = vmatpush1.msra.mxu0 0.0
    %2969 = vmatprep.subr.mxu0 0.0
    %2970 = vmatpush1.msra.mxu0 0.0
    %2971 = vmatprep.subr.mxu0 0.0
    %2972 = vmatpush1.msra.mxu0 0.0
    %2973 = vmatprep.subr.mxu0 0.0
    %2974 = vmatpush1.msra.mxu0 0.0
    %2975 = vmatprep.subr.mxu0 0.0
    %2976 = vmatpush1.msra.mxu0 0.0
    %2977 = vmatprep.subr.mxu0 0.0
    %2978 = vmatpush1.msra.mxu0 0.0
    %2979 = vmatprep.subr.mxu0 0.0
    %2980 = vmatpush1.msra.mxu0 0.0
    %2981 = vmatprep.subr.mxu0 0.0
    %2982 = vmatpush1.msra.mxu0 0.0
    %2983 = vmatprep.subr.mxu0 0.0
    %2984 = vmatpush1.msra.mxu0 0.0
    %2985 = vmatprep.subr.mxu0 0.0
    %2986 = vmatpush1.msra.mxu0 0.0
    %2987 = vmatprep.subr.mxu0 0.0
    %2988 = vmatpush1.msra.mxu0 0.0
    %2989 = vmatprep.subr.mxu0 0.0
    %2990 = vmatpush1.msra.mxu0 0.0
    %2991 = vmatprep.mubr.f32.mxu0 0.0
    %2992 = vmatmul.mubr.f32.gmra.mrb[0].mxu0 %v2916
    %v2993 = vpop.f32.mrb[0].mxu0
    %v2994 = vadd.f32 0.0, %v2993
    %v2995 = vpop.f32.mrb[0].mxu0
    %2996 = vmatprep.mubr.f32.mxu0 0.0
    %2997 = vmatmul.mubr.f32.gmra.mrb[0].mxu0 %v2919
    %v2998 = vpop.f32.mrb[0].mxu0
    %v2999 = vadd.f32 0.0, %v2998
    %v3000 = vpop.f32.mrb[0].mxu0
    %3001 = vmatprep.mubr.f32.mxu0 0.0
    %3002 = vmatmul.mubr.f32.gmra.mrb[0].mxu0 %v2922
    %v3003 = vpop.f32.mrb[0].mxu0
    %v3004 = vadd.f32 0.0, %v3003
    %v3005 = vpop.f32.mrb[0].mxu0
    %3006 = vmatprep.mubr.f32.mxu0 0.0
    %3007 = vmatmul.mubr.f32.gmra.mrb[0].mxu0 %v2925
    %v3008 = vpop.f32.mrb[0].mxu0
    %v3009 = vadd.f32 0.0, %v3008
    %v3010 = vpop.f32.mrb[0].mxu0
    %3011 = vdwg.mxu0
    %v3012 = vmul.f32 %v2994, %v304
    %v3013 = vmul.f32 %v2999, %v304
    %v3014 = vmul.f32 %v3004, %v310
    %v3015 = vmul.f32 %v3009, %v310
    %v3016 = vadd.f32 %v3012, %v3014
    %v3017 = vadd.f32 %v3013, %v3015
    %v3018 = vld [vmem:[#allocation2 + $0x1a0] sm:$0xf]
    %v3019 = vld [vmem:[#allocation2 + $0x1a8] sm:$0x1]
    %v3020 = vlaneseq
    %v3021 = vshrl.u32 %v3020, 7
    %v3022 = vsub.s32 0, %v3021
    %v3023 = vrot.slane %v3019, %v3022
    %v3025 = vsel %vm47, %v3016, 0
    %v3028 = vsel %vm47, %v3017, 0
    %v3031 = vsel %vm54, %v3018, 0
    %3033 = vmatprep.subr.mxu0 0.0
    %3034 = vmatpush1.msra.mxu0 %v3031
    %3035 = vmatprep.subr.mxu0 0.0
    %3036 = vmatpush1.msra.mxu0 0.0
    %3037 = vmatprep.subr.mxu0 0.0
    %3038 = vmatpush1.msra.mxu0 0.0
    %3039 = vmatprep.subr.mxu0 0.0
    %3040 = vmatpush1.msra.mxu0 0.0
    %3041 = vmatprep.subr.mxu0 0.0
    %3042 = vmatpush1.msra.mxu0 0.0
    %3043 = vmatprep.subr.mxu0 0.0
    %3044 = vmatpush1.msra.mxu0 0.0
    %3045 = vmatprep.subr.mxu0 0.0
    %3046 = vmatpush1.msra.mxu0 0.0
    %3047 = vmatprep.subr.mxu0 0.0
    %3048 = vmatpush1.msra.mxu0 0.0
    %3049 = vmatprep.subr.mxu0 0.0
    %3050 = vmatpush1.msra.mxu0 0.0
    %3051 = vmatprep.subr.mxu0 0.0
    %3052 = vmatpush1.msra.mxu0 0.0
    %3053 = vmatprep.subr.mxu0 0.0
    %3054 = vmatpush1.msra.mxu0 0.0
    %3055 = vmatprep.subr.mxu0 0.0
    %3056 = vmatpush1.msra.mxu0 0.0
    %3057 = vmatprep.subr.mxu0 0.0
    %3058 = vmatpush1.msra.mxu0 0.0
    %3059 = vmatprep.subr.mxu0 0.0
    %3060 = vmatpush1.msra.mxu0 0.0
    %3061 = vmatprep.subr.mxu0 0.0
    %3062 = vmatpush1.msra.mxu0 0.0
    %3063 = vmatprep.subr.mxu0 0.0
    %3064 = vmatpush1.msra.mxu0 0.0
    %3065 = vmatprep.subr.mxu0 0.0
    %3066 = vmatpush1.msra.mxu0 0.0
    %3067 = vmatprep.subr.mxu0 0.0
    %3068 = vmatpush1.msra.mxu0 0.0
    %3069 = vmatprep.subr.mxu0 0.0
    %3070 = vmatpush1.msra.mxu0 0.0
    %3071 = vmatprep.subr.mxu0 0.0
    %3072 = vmatpush1.msra.mxu0 0.0
    %3073 = vmatprep.subr.mxu0 0.0
    %3074 = vmatpush1.msra.mxu0 0.0
    %3075 = vmatprep.subr.mxu0 0.0
    %3076 = vmatpush1.msra.mxu0 0.0
    %3077 = vmatprep.subr.mxu0 0.0
    %3078 = vmatpush1.msra.mxu0 0.0
    %3079 = vmatprep.subr.mxu0 0.0
    %3080 = vmatpush1.msra.mxu0 0.0
    %3081 = vmatprep.subr.mxu0 0.0
    %3082 = vmatpush1.msra.mxu0 0.0
    %3083 = vmatprep.subr.mxu0 0.0
    %3084 = vmatpush1.msra.mxu0 0.0
    %3085 = vmatprep.subr.mxu0 0.0
    %3086 = vmatpush1.msra.mxu0 0.0
    %3087 = vmatprep.subr.mxu0 0.0
    %3088 = vmatpush1.msra.mxu0 0.0
    %3089 = vmatprep.subr.mxu0 0.0
    %3090 = vmatpush1.msra.mxu0 0.0
    %3091 = vmatprep.subr.mxu0 0.0
    %3092 = vmatpush1.msra.mxu0 0.0
    %3093 = vmatprep.subr.mxu0 0.0
    %3094 = vmatpush1.msra.mxu0 0.0
    %3095 = vmatprep.subr.mxu0 0.0
    %3096 = vmatpush1.msra.mxu0 0.0
    %3097 = vmatprep.mubr.f32.mxu0 0.0
    %3098 = vmatmul.mubr.f32.gmra.mrb[0].mxu0 %v3025
    %v3099 = vpop.f32.mrb[0].mxu0
    %v3100 = vadd.f32 %v3023, %v3099
    %v3101 = vpop.f32.mrb[0].mxu0
    %3102 = vmatprep.mubr.f32.mxu0 0.0
    %3103 = vmatmul.mubr.f32.gmra.mrb[0].mxu0 %v3028
    %v3104 = vpop.f32.mrb[0].mxu0
    %v3105 = vadd.f32 %v3023, %v3104
    %v3106 = vpop.f32.mrb[0].mxu0
    %3107 = vdwg.mxu0
    %v3108 = vadd.f32 %v2490, %v3100
    %v3109 = vadd.f32 %v2491, %v3105
    %v3110 = vsel %vm47, %v3108, 0.0
    %3111 = vadd.xlane.f32.xlu0 %v3110
    %v3112 = vpop.xlane.xlu0 %3111
    %v3113 = vsel %vm47, %v3109, 0.0
    %3114 = vadd.xlane.f32.xlu0 %v3113
    %v3115 = vpop.xlane.xlu0 %3114
    %v3116 = vmul.f32 %v3112, %v670
    %v3117 = vmul.f32 %v3115, %v670
    %v3118 = vsub.f32 %v3108, %v3116
    %v3119 = vsub.f32 %v3109, %v3117
    %v3120 = vmul.f32 %v3118, %v3118
    %v3121 = vmul.f32 %v3119, %v3119
    %v3122 = vsel %vm47, %v3120, 0.0
    %3123 = vadd.xlane.f32.xlu0 %v3122
    %v3124 = vpop.xlane.xlu0 %3123
    %v3125 = vsel %vm47, %v3121, 0.0
    %3126 = vadd.xlane.f32.xlu0 %v3125
    %v3127 = vpop.xlane.xlu0 %3126
    %v3128 = vmul.f32 %v3124, %v670
    %v3129 = vmul.f32 %v3127, %v670
    %v3130 = vadd.f32 %v3128, 1e-05
    %v3131 = vadd.f32 %v3129, 1e-05
    %v3132 = vrsqrt.pop %v3130
    %v3133 = vrsqrt.pop %v3131
    %v3134 = vmul.f32 %v3118, %v3132
    %v3135 = vmul.f32 %v3119, %v3133
    %v3136 = vld [vmem:[#allocation2 + $0x1f8] sm:$0x1]
    %v3137 = vlaneseq
    %v3138 = vshrl.u32 %v3137, 7
    %v3139 = vsub.s32 0, %v3138
    %v3140 = vrot.slane %v3136, %v3139
    %v3141 = vmul.f32 %v3134, %v3140
    %v3142 = vmul.f32 %v3135, %v3140
    %v3143 = vld [vmem:[#allocation2 + $0x200] sm:$0x1]
    %v3144 = vlaneseq
    %v3145 = vshrl.u32 %v3144, 7
    %v3146 = vsub.s32 0, %v3145
    %v3147 = vrot.slane %v3143, %v3146
    %v3148 = vadd.f32 %v3141, %v3147
    %v3149 = vadd.f32 %v3142, %v3147
    %v3150 = vld [vmem:[#allocation2 + $0x1b0] sm:$0xf]
    %v3151 = vld [vmem:[#allocation2 + $0x1b8] sm:$0x1]
    %v3152 = vlaneseq
    %v3153 = vshrl.u32 %v3152, 7
    %v3154 = vsub.s32 0, %v3153
    %v3155 = vrot.slane %v3151, %v3154
    %v3157 = vsel %vm47, %v3148, 0
    %v3160 = vsel %vm47, %v3149, 0
    %v3163 = vsel %vm54, %v3150, 0
    %3165 = vmatprep.subr.mxu0 0.0
    %3166 = vmatpush1.msra.mxu0 %v3163
    %3167 = vmatprep.subr.mxu0 0.0
    %3168 = vmatpush1.msra.mxu0 0.0
    %3169 = vmatprep.subr.mxu0 0.0
    %3170 = vmatpush1.msra.mxu0 0.0
    %3171 = vmatprep.subr.mxu0 0.0
    %3172 = vmatpush1.msra.mxu0 0.0
    %3173 = vmatprep.subr.mxu0 0.0
    %3174 = vmatpush1.msra.mxu0 0.0
    %3175 = vmatprep.subr.mxu0 0.0
    %3176 = vmatpush1.msra.mxu0 0.0
    %3177 = vmatprep.subr.mxu0 0.0
    %3178 = vmatpush1.msra.mxu0 0.0
    %3179 = vmatprep.subr.mxu0 0.0
    %3180 = vmatpush1.msra.mxu0 0.0
    %3181 = vmatprep.subr.mxu0 0.0
    %3182 = vmatpush1.msra.mxu0 0.0
    %3183 = vmatprep.subr.mxu0 0.0
    %3184 = vmatpush1.msra.mxu0 0.0
    %3185 = vmatprep.subr.mxu0 0.0
    %3186 = vmatpush1.msra.mxu0 0.0
    %3187 = vmatprep.subr.mxu0 0.0
    %3188 = vmatpush1.msra.mxu0 0.0
    %3189 = vmatprep.subr.mxu0 0.0
    %3190 = vmatpush1.msra.mxu0 0.0
    %3191 = vmatprep.subr.mxu0 0.0
    %3192 = vmatpush1.msra.mxu0 0.0
    %3193 = vmatprep.subr.mxu0 0.0
    %3194 = vmatpush1.msra.mxu0 0.0
    %3195 = vmatprep.subr.mxu0 0.0
    %3196 = vmatpush1.msra.mxu0 0.0
    %3197 = vmatprep.subr.mxu0 0.0
    %3198 = vmatpush1.msra.mxu0 0.0
    %3199 = vmatprep.subr.mxu0 0.0
    %3200 = vmatpush1.msra.mxu0 0.0
    %3201 = vmatprep.subr.mxu0 0.0
    %3202 = vmatpush1.msra.mxu0 0.0
    %3203 = vmatprep.subr.mxu0 0.0
    %3204 = vmatpush1.msra.mxu0 0.0
    %3205 = vmatprep.subr.mxu0 0.0
    %3206 = vmatpush1.msra.mxu0 0.0
    %3207 = vmatprep.subr.mxu0 0.0
    %3208 = vmatpush1.msra.mxu0 0.0
    %3209 = vmatprep.subr.mxu0 0.0
    %3210 = vmatpush1.msra.mxu0 0.0
    %3211 = vmatprep.subr.mxu0 0.0
    %3212 = vmatpush1.msra.mxu0 0.0
    %3213 = vmatprep.subr.mxu0 0.0
    %3214 = vmatpush1.msra.mxu0 0.0
    %3215 = vmatprep.subr.mxu0 0.0
    %3216 = vmatpush1.msra.mxu0 0.0
    %3217 = vmatprep.subr.mxu0 0.0
    %3218 = vmatpush1.msra.mxu0 0.0
    %3219 = vmatprep.subr.mxu0 0.0
    %3220 = vmatpush1.msra.mxu0 0.0
    %3221 = vmatprep.subr.mxu0 0.0
    %3222 = vmatpush1.msra.mxu0 0.0
    %3223 = vmatprep.subr.mxu0 0.0
    %3224 = vmatpush1.msra.mxu0 0.0
    %3225 = vmatprep.subr.mxu0 0.0
    %3226 = vmatpush1.msra.mxu0 0.0
    %3227 = vmatprep.subr.mxu0 0.0
    %3228 = vmatpush1.msra.mxu0 0.0
    %3229 = vmatprep.mubr.f32.mxu0 0.0
    %3230 = vmatmul.mubr.f32.gmra.mrb[0].mxu0 %v3157
    %v3231 = vpop.f32.mrb[0].mxu0
    %v3232 = vadd.f32 %v3155, %v3231
    %v3233 = vpop.f32.mrb[0].mxu0
    %3234 = vmatprep.mubr.f32.mxu0 0.0
    %3235 = vmatmul.mubr.f32.gmra.mrb[0].mxu0 %v3160
    %v3236 = vpop.f32.mrb[0].mxu0
    %v3237 = vadd.f32 %v3155, %v3236
    %v3238 = vpop.f32.mrb[0].mxu0
    %3239 = vdwg.mxu0
    %v3240 = vmax.f32 %v3232, 0.0
    %v3241 = vmax.f32 %v3237, 0.0
    %v3242 = vld [vmem:[#allocation2 + $0x1c0] sm:$0xff]
    %v3243 = vld [vmem:[#allocation2 + $0x1c8] sm:$0xff]
    %v3244 = vld [vmem:[#allocation2 + $0x1d0] sm:$0xff]
    %v3245 = vld [vmem:[#allocation2 + $0x1d8] sm:$0xff]
    %v3246 = vld [vmem:[#allocation2 + $0x1e0] sm:$0x1]
    %v3247 = vlaneseq
    %v3248 = vshrl.u32 %v3247, 7
    %v3249 = vsub.s32 0, %v3248
    %v3250 = vrot.slane %v3246, %v3249
    %v3252 = vsel %vm806, %v3240, 0
    %v3255 = vsel %vm806, %v3241, 0
    %3257 = vmatprep.subr.mxu0 0.0
    %3258 = vmatpush1.msra.mxu0 %v3242
    %3259 = vmatprep.subr.mxu0 0.0
    %3260 = vmatpush1.msra.mxu0 %v3243
    %3261 = vmatprep.subr.mxu0 0.0
    %3262 = vmatpush1.msra.mxu0 %v3244
    %3263 = vmatprep.subr.mxu0 0.0
    %3264 = vmatpush1.msra.mxu0 %v3245
    %3265 = vmatprep.subr.mxu0 0.0
    %3266 = vmatpush1.msra.mxu0 0.0
    %3267 = vmatprep.subr.mxu0 0.0
    %3268 = vmatpush1.msra.mxu0 0.0
    %3269 = vmatprep.subr.mxu0 0.0
    %3270 = vmatpush1.msra.mxu0 0.0
    %3271 = vmatprep.subr.mxu0 0.0
    %3272 = vmatpush1.msra.mxu0 0.0
    %3273 = vmatprep.subr.mxu0 0.0
    %3274 = vmatpush1.msra.mxu0 0.0
    %3275 = vmatprep.subr.mxu0 0.0
    %3276 = vmatpush1.msra.mxu0 0.0
    %3277 = vmatprep.subr.mxu0 0.0
    %3278 = vmatpush1.msra.mxu0 0.0
    %3279 = vmatprep.subr.mxu0 0.0
    %3280 = vmatpush1.msra.mxu0 0.0
    %3281 = vmatprep.subr.mxu0 0.0
    %3282 = vmatpush1.msra.mxu0 0.0
    %3283 = vmatprep.subr.mxu0 0.0
    %3284 = vmatpush1.msra.mxu0 0.0
    %3285 = vmatprep.subr.mxu0 0.0
    %3286 = vmatpush1.msra.mxu0 0.0
    %3287 = vmatprep.subr.mxu0 0.0
    %3288 = vmatpush1.msra.mxu0 0.0
    %3289 = vmatprep.subr.mxu0 0.0
    %3290 = vmatpush1.msra.mxu0 0.0
    %3291 = vmatprep.subr.mxu0 0.0
    %3292 = vmatpush1.msra.mxu0 0.0
    %3293 = vmatprep.subr.mxu0 0.0
    %3294 = vmatpush1.msra.mxu0 0.0
    %3295 = vmatprep.subr.mxu0 0.0
    %3296 = vmatpush1.msra.mxu0 0.0
    %3297 = vmatprep.subr.mxu0 0.0
    %3298 = vmatpush1.msra.mxu0 0.0
    %3299 = vmatprep.subr.mxu0 0.0
    %3300 = vmatpush1.msra.mxu0 0.0
    %3301 = vmatprep.subr.mxu0 0.0
    %3302 = vmatpush1.msra.mxu0 0.0
    %3303 = vmatprep.subr.mxu0 0.0
    %3304 = vmatpush1.msra.mxu0 0.0
    %3305 = vmatprep.subr.mxu0 0.0
    %3306 = vmatpush1.msra.mxu0 0.0
    %3307 = vmatprep.subr.mxu0 0.0
    %3308 = vmatpush1.msra.mxu0 0.0
    %3309 = vmatprep.subr.mxu0 0.0
    %3310 = vmatpush1.msra.mxu0 0.0
    %3311 = vmatprep.subr.mxu0 0.0
    %3312 = vmatpush1.msra.mxu0 0.0
    %3313 = vmatprep.subr.mxu0 0.0
    %3314 = vmatpush1.msra.mxu0 0.0
    %3315 = vmatprep.subr.mxu0 0.0
    %3316 = vmatpush1.msra.mxu0 0.0
    %3317 = vmatprep.subr.mxu0 0.0
    %3318 = vmatpush1.msra.mxu0 0.0
    %3319 = vmatprep.subr.mxu0 0.0
    %3320 = vmatpush1.msra.mxu0 0.0
    %3321 = vmatprep.mubr.f32.mxu0 0.0
    %3322 = vmatmul.mubr.f32.gmra.mrb[0].mxu0 %v3252
    %v3323 = vpop.f32.mrb[0].mxu0
    %v3324 = vadd.f32 %v3250, %v3323
    %v3325 = vpop.f32.mrb[0].mxu0
    %3326 = vmatprep.mubr.f32.mxu0 0.0
    %3327 = vmatmul.mubr.f32.gmra.mrb[0].mxu0 %v3255
    %v3328 = vpop.f32.mrb[0].mxu0
    %v3329 = vadd.f32 %v3250, %v3328
    %v3330 = vpop.f32.mrb[0].mxu0
    %3331 = vdwg.mxu0
    %v3332 = vadd.f32 %v3148, %v3324
    %v3333 = vadd.f32 %v3149, %v3329
    %v3334 = vsel %vm47, %v3332, 0.0
    %3335 = vadd.xlane.f32.xlu0 %v3334
    %v3336 = vpop.xlane.xlu0 %3335
    %v3337 = vsel %vm47, %v3333, 0.0
    %3338 = vadd.xlane.f32.xlu0 %v3337
    %v3339 = vpop.xlane.xlu0 %3338
    %v3340 = vmul.f32 %v3336, %v670
    %v3341 = vmul.f32 %v3339, %v670
    %v3342 = vsub.f32 %v3332, %v3340
    %v3343 = vsub.f32 %v3333, %v3341
    %v3344 = vmul.f32 %v3342, %v3342
    %v3345 = vmul.f32 %v3343, %v3343
    %v3346 = vsel %vm47, %v3344, 0.0
    %3347 = vadd.xlane.f32.xlu0 %v3346
    %v3348 = vpop.xlane.xlu0 %3347
    %v3349 = vsel %vm47, %v3345, 0.0
    %3350 = vadd.xlane.f32.xlu0 %v3349
    %v3351 = vpop.xlane.xlu0 %3350
    %v3352 = vmul.f32 %v3348, %v670
    %v3353 = vmul.f32 %v3351, %v670
    %v3354 = vadd.f32 %v3352, 1e-05
    %v3355 = vadd.f32 %v3353, 1e-05
    %v3356 = vrsqrt.pop %v3354
    %v3357 = vrsqrt.pop %v3355
    %v3358 = vmul.f32 %v3342, %v3356
    %v3359 = vmul.f32 %v3343, %v3357
    %v3360 = vld [vmem:[#allocation2 + $0x208] sm:$0x1]
    %v3361 = vlaneseq
    %v3362 = vshrl.u32 %v3361, 7
    %v3363 = vsub.s32 0, %v3362
    %v3364 = vrot.slane %v3360, %v3363
    %v3365 = vmul.f32 %v3358, %v3364
    %v3366 = vmul.f32 %v3359, %v3364
    %v3367 = vld [vmem:[#allocation2 + $0x210] sm:$0x1]
    %v3368 = vlaneseq
    %v3369 = vshrl.u32 %v3368, 7
    %v3370 = vsub.s32 0, %v3369
    %v3371 = vrot.slane %v3367, %v3370
    %v3372 = vadd.f32 %v3365, %v3371
    %v3373 = vadd.f32 %v3366, %v3371
    %v3374 = vld [vmem:[#allocation2 + $0x218] sm:$0xf]
    %v3375 = vld [vmem:[#allocation2 + $0x220] sm:$0x1]
    %v3376 = vlaneseq
    %v3377 = vshrl.u32 %v3376, 7
    %v3378 = vsub.s32 0, %v3377
    %v3379 = vrot.slane %v3375, %v3378
    %v3381 = vsel %vm47, %v3372, 0
    %v3384 = vsel %vm47, %v3373, 0
    %v3387 = vsel %vm54, %v3374, 0
    %3389 = vmatprep.subr.mxu0 0.0
    %3390 = vmatpush1.msra.mxu0 %v3387
    %3391 = vmatprep.subr.mxu0 0.0
    %3392 = vmatpush1.msra.mxu0 0.0
    %3393 = vmatprep.subr.mxu0 0.0
    %3394 = vmatpush1.msra.mxu0 0.0
    %3395 = vmatprep.subr.mxu0 0.0
    %3396 = vmatpush1.msra.mxu0 0.0
    %3397 = vmatprep.subr.mxu0 0.0
    %3398 = vmatpush1.msra.mxu0 0.0
    %3399 = vmatprep.subr.mxu0 0.0
    %3400 = vmatpush1.msra.mxu0 0.0
    %3401 = vmatprep.subr.mxu0 0.0
    %3402 = vmatpush1.msra.mxu0 0.0
    %3403 = vmatprep.subr.mxu0 0.0
    %3404 = vmatpush1.msra.mxu0 0.0
    %3405 = vmatprep.subr.mxu0 0.0
    %3406 = vmatpush1.msra.mxu0 0.0
    %3407 = vmatprep.subr.mxu0 0.0
    %3408 = vmatpush1.msra.mxu0 0.0
    %3409 = vmatprep.subr.mxu0 0.0
    %3410 = vmatpush1.msra.mxu0 0.0
    %3411 = vmatprep.subr.mxu0 0.0
    %3412 = vmatpush1.msra.mxu0 0.0
    %3413 = vmatprep.subr.mxu0 0.0
    %3414 = vmatpush1.msra.mxu0 0.0
    %3415 = vmatprep.subr.mxu0 0.0
    %3416 = vmatpush1.msra.mxu0 0.0
    %3417 = vmatprep.subr.mxu0 0.0
    %3418 = vmatpush1.msra.mxu0 0.0
    %3419 = vmatprep.subr.mxu0 0.0
    %3420 = vmatpush1.msra.mxu0 0.0
    %3421 = vmatprep.subr.mxu0 0.0
    %3422 = vmatpush1.msra.mxu0 0.0
    %3423 = vmatprep.subr.mxu0 0.0
    %3424 = vmatpush1.msra.mxu0 0.0
    %3425 = vmatprep.subr.mxu0 0.0
    %3426 = vmatpush1.msra.mxu0 0.0
    %3427 = vmatprep.subr.mxu0 0.0
    %3428 = vmatpush1.msra.mxu0 0.0
    %3429 = vmatprep.subr.mxu0 0.0
    %3430 = vmatpush1.msra.mxu0 0.0
    %3431 = vmatprep.subr.mxu0 0.0
    %3432 = vmatpush1.msra.mxu0 0.0
    %3433 = vmatprep.subr.mxu0 0.0
    %3434 = vmatpush1.msra.mxu0 0.0
    %3435 = vmatprep.subr.mxu0 0.0
    %3436 = vmatpush1.msra.mxu0 0.0
    %3437 = vmatprep.subr.mxu0 0.0
    %3438 = vmatpush1.msra.mxu0 0.0
    %3439 = vmatprep.subr.mxu0 0.0
    %3440 = vmatpush1.msra.mxu0 0.0
    %3441 = vmatprep.subr.mxu0 0.0
    %3442 = vmatpush1.msra.mxu0 0.0
    %3443 = vmatprep.subr.mxu0 0.0
    %3444 = vmatpush1.msra.mxu0 0.0
    %3445 = vmatprep.subr.mxu0 0.0
    %3446 = vmatpush1.msra.mxu0 0.0
    %3447 = vmatprep.subr.mxu0 0.0
    %3448 = vmatpush1.msra.mxu0 0.0
    %3449 = vmatprep.subr.mxu0 0.0
    %3450 = vmatpush1.msra.mxu0 0.0
    %3451 = vmatprep.subr.mxu0 0.0
    %3452 = vmatpush1.msra.mxu0 0.0
    %3453 = vmatprep.mubr.f32.mxu0 0.0
    %3454 = vmatmul.mubr.f32.gmra.mrb[0].mxu0 %v3381
    %v3455 = vpop.f32.mrb[0].mxu0
    %v3456 = vadd.f32 %v3379, %v3455
    %v3457 = vpop.f32.mrb[0].mxu0
    %3458 = vmatprep.mubr.f32.mxu0 0.0
    %3459 = vmatmul.mubr.f32.gmra.mrb[0].mxu0 %v3384
    %v3460 = vpop.f32.mrb[0].mxu0
    %v3461 = vadd.f32 %v3379, %v3460
    %v3462 = vpop.f32.mrb[0].mxu0
    %3463 = vdwg.mxu0
    %v3464 = vld [vmem:[#allocation2 + $0x228] sm:$0xf]
    %v3465 = vld [vmem:[#allocation2 + $0x230] sm:$0x1]
    %v3466 = vlaneseq
    %v3467 = vshrl.u32 %v3466, 7
    %v3468 = vsub.s32 0, %v3467
    %v3469 = vrot.slane %v3465, %v3468
    %v3471 = vsel %vm54, %v3464, 0
    %3473 = vmatprep.subr.mxu0 0.0
    %3474 = vmatpush1.msra.mxu0 %v3471
    %3475 = vmatprep.subr.mxu0 0.0
    %3476 = vmatpush1.msra.mxu0 0.0
    %3477 = vmatprep.subr.mxu0 0.0
    %3478 = vmatpush1.msra.mxu0 0.0
    %3479 = vmatprep.subr.mxu0 0.0
    %3480 = vmatpush1.msra.mxu0 0.0
    %3481 = vmatprep.subr.mxu0 0.0
    %3482 = vmatpush1.msra.mxu0 0.0
    %3483 = vmatprep.subr.mxu0 0.0
    %3484 = vmatpush1.msra.mxu0 0.0
    %3485 = vmatprep.subr.mxu0 0.0
    %3486 = vmatpush1.msra.mxu0 0.0
    %3487 = vmatprep.subr.mxu0 0.0
    %3488 = vmatpush1.msra.mxu0 0.0
    %3489 = vmatprep.subr.mxu0 0.0
    %3490 = vmatpush1.msra.mxu0 0.0
    %3491 = vmatprep.subr.mxu0 0.0
    %3492 = vmatpush1.msra.mxu0 0.0
    %3493 = vmatprep.subr.mxu0 0.0
    %3494 = vmatpush1.msra.mxu0 0.0
    %3495 = vmatprep.subr.mxu0 0.0
    %3496 = vmatpush1.msra.mxu0 0.0
    %3497 = vmatprep.subr.mxu0 0.0
    %3498 = vmatpush1.msra.mxu0 0.0
    %3499 = vmatprep.subr.mxu0 0.0
    %3500 = vmatpush1.msra.mxu0 0.0
    %3501 = vmatprep.subr.mxu0 0.0
    %3502 = vmatpush1.msra.mxu0 0.0
    %3503 = vmatprep.subr.mxu0 0.0
    %3504 = vmatpush1.msra.mxu0 0.0
    %3505 = vmatprep.subr.mxu0 0.0
    %3506 = vmatpush1.msra.mxu0 0.0
    %3507 = vmatprep.subr.mxu0 0.0
    %3508 = vmatpush1.msra.mxu0 0.0
    %3509 = vmatprep.subr.mxu0 0.0
    %3510 = vmatpush1.msra.mxu0 0.0
    %3511 = vmatprep.subr.mxu0 0.0
    %3512 = vmatpush1.msra.mxu0 0.0
    %3513 = vmatprep.subr.mxu0 0.0
    %3514 = vmatpush1.msra.mxu0 0.0
    %3515 = vmatprep.subr.mxu0 0.0
    %3516 = vmatpush1.msra.mxu0 0.0
    %3517 = vmatprep.subr.mxu0 0.0
    %3518 = vmatpush1.msra.mxu0 0.0
    %3519 = vmatprep.subr.mxu0 0.0
    %3520 = vmatpush1.msra.mxu0 0.0
    %3521 = vmatprep.subr.mxu0 0.0
    %3522 = vmatpush1.msra.mxu0 0.0
    %3523 = vmatprep.subr.mxu0 0.0
    %3524 = vmatpush1.msra.mxu0 0.0
    %3525 = vmatprep.subr.mxu0 0.0
    %3526 = vmatpush1.msra.mxu0 0.0
    %3527 = vmatprep.subr.mxu0 0.0
    %3528 = vmatpush1.msra.mxu0 0.0
    %3529 = vmatprep.subr.mxu0 0.0
    %3530 = vmatpush1.msra.mxu0 0.0
    %3531 = vmatprep.subr.mxu0 0.0
    %3532 = vmatpush1.msra.mxu0 0.0
    %3533 = vmatprep.subr.mxu0 0.0
    %3534 = vmatpush1.msra.mxu0 0.0
    %3535 = vmatprep.subr.mxu0 0.0
    %3536 = vmatpush1.msra.mxu0 0.0
    %3537 = vmatprep.mubr.f32.mxu0 0.0
    %3538 = vmatmul.mubr.f32.gmra.mrb[0].mxu0 %v3381
    %v3539 = vpop.f32.mrb[0].mxu0
    %v3540 = vadd.f32 %v3469, %v3539
    %v3541 = vpop.f32.mrb[0].mxu0
    %3542 = vmatprep.mubr.f32.mxu0 0.0
    %3543 = vmatmul.mubr.f32.gmra.mrb[0].mxu0 %v3384
    %v3544 = vpop.f32.mrb[0].mxu0
    %v3545 = vadd.f32 %v3469, %v3544
    %v3546 = vpop.f32.mrb[0].mxu0
    %3547 = vdwg.mxu0
    %v3548 = vld [vmem:[#allocation2 + $0x238] sm:$0xf]
    %v3549 = vld [vmem:[#allocation2 + $0x240] sm:$0x1]
    %v3550 = vlaneseq
    %v3551 = vshrl.u32 %v3550, 7
    %v3552 = vsub.s32 0, %v3551
    %v3553 = vrot.slane %v3549, %v3552
    %v3555 = vsel %vm54, %v3548, 0
    %3557 = vmatprep.subr.mxu0 0.0
    %3558 = vmatpush1.msra.mxu0 %v3555
    %3559 = vmatprep.subr.mxu0 0.0
    %3560 = vmatpush1.msra.mxu0 0.0
    %3561 = vmatprep.subr.mxu0 0.0
    %3562 = vmatpush1.msra.mxu0 0.0
    %3563 = vmatprep.subr.mxu0 0.0
    %3564 = vmatpush1.msra.mxu0 0.0
    %3565 = vmatprep.subr.mxu0 0.0
    %3566 = vmatpush1.msra.mxu0 0.0
    %3567 = vmatprep.subr.mxu0 0.0
    %3568 = vmatpush1.msra.mxu0 0.0
    %3569 = vmatprep.subr.mxu0 0.0
    %3570 = vmatpush1.msra.mxu0 0.0
    %3571 = vmatprep.subr.mxu0 0.0
    %3572 = vmatpush1.msra.mxu0 0.0
    %3573 = vmatprep.subr.mxu0 0.0
    %3574 = vmatpush1.msra.mxu0 0.0
    %3575 = vmatprep.subr.mxu0 0.0
    %3576 = vmatpush1.msra.mxu0 0.0
    %3577 = vmatprep.subr.mxu0 0.0
    %3578 = vmatpush1.msra.mxu0 0.0
    %3579 = vmatprep.subr.mxu0 0.0
    %3580 = vmatpush1.msra.mxu0 0.0
    %3581 = vmatprep.subr.mxu0 0.0
    %3582 = vmatpush1.msra.mxu0 0.0
    %3583 = vmatprep.subr.mxu0 0.0
    %3584 = vmatpush1.msra.mxu0 0.0
    %3585 = vmatprep.subr.mxu0 0.0
    %3586 = vmatpush1.msra.mxu0 0.0
    %3587 = vmatprep.subr.mxu0 0.0
    %3588 = vmatpush1.msra.mxu0 0.0
    %3589 = vmatprep.subr.mxu0 0.0
    %3590 = vmatpush1.msra.mxu0 0.0
    %3591 = vmatprep.subr.mxu0 0.0
    %3592 = vmatpush1.msra.mxu0 0.0
    %3593 = vmatprep.subr.mxu0 0.0
    %3594 = vmatpush1.msra.mxu0 0.0
    %3595 = vmatprep.subr.mxu0 0.0
    %3596 = vmatpush1.msra.mxu0 0.0
    %3597 = vmatprep.subr.mxu0 0.0
    %3598 = vmatpush1.msra.mxu0 0.0
    %3599 = vmatprep.subr.mxu0 0.0
    %3600 = vmatpush1.msra.mxu0 0.0
    %3601 = vmatprep.subr.mxu0 0.0
    %3602 = vmatpush1.msra.mxu0 0.0
    %3603 = vmatprep.subr.mxu0 0.0
    %3604 = vmatpush1.msra.mxu0 0.0
    %3605 = vmatprep.subr.mxu0 0.0
    %3606 = vmatpush1.msra.mxu0 0.0
    %3607 = vmatprep.subr.mxu0 0.0
    %3608 = vmatpush1.msra.mxu0 0.0
    %3609 = vmatprep.subr.mxu0 0.0
    %3610 = vmatpush1.msra.mxu0 0.0
    %3611 = vmatprep.subr.mxu0 0.0
    %3612 = vmatpush1.msra.mxu0 0.0
    %3613 = vmatprep.subr.mxu0 0.0
    %3614 = vmatpush1.msra.mxu0 0.0
    %3615 = vmatprep.subr.mxu0 0.0
    %3616 = vmatpush1.msra.mxu0 0.0
    %3617 = vmatprep.subr.mxu0 0.0
    %3618 = vmatpush1.msra.mxu0 0.0
    %3619 = vmatprep.subr.mxu0 0.0
    %3620 = vmatpush1.msra.mxu0 0.0
    %3621 = vmatprep.mubr.f32.mxu0 0.0
    %3622 = vmatmul.mubr.f32.gmra.mrb[0].mxu0 %v3381
    %v3623 = vpop.f32.mrb[0].mxu0
    %v3624 = vadd.f32 %v3553, %v3623
    %v3625 = vpop.f32.mrb[0].mxu0
    %3626 = vmatprep.mubr.f32.mxu0 0.0
    %3627 = vmatmul.mubr.f32.gmra.mrb[0].mxu0 %v3384
    %v3628 = vpop.f32.mrb[0].mxu0
    %v3629 = vadd.f32 %v3553, %v3628
    %v3630 = vpop.f32.mrb[0].mxu0
    %3631 = vdwg.mxu0
    %v3632 = vmul.f32 %v3456, %v304
    %v3633 = vmul.f32 %v3461, %v304
    %v3634 = vmul.f32 %v3456, %v310
    %v3635 = vmul.f32 %v3461, %v310
    %v3637 = vsel %vm47, %v3632, 0
    %v3640 = vsel %vm47, %v3633, 0
    %v3643 = vsel %vm47, %v3634, 0
    %v3646 = vsel %vm47, %v3635, 0
    %v3649 = vsel %vm47, %v3540, 0
    %v3652 = vsel %vm47, %v3545, 0
    %3654 = vmatprep.subr.mxu0 0.0
    %3655 = vmatpush1.xpose.msra.mxu0 %v3649
    %3656 = vmatprep.subr.mxu0 0.0
    %3657 = vmatpush1.xpose.msra.mxu0 %v3652
    %3658 = vmatprep.subr.mxu0 0.0
    %3659 = vmatpush1.xpose.msra.mxu0 0.0
    %3660 = vmatprep.subr.mxu0 0.0
    %3661 = vmatpush1.xpose.msra.mxu0 0.0
    %3662 = vmatprep.subr.mxu0 0.0
    %3663 = vmatpush1.xpose.msra.mxu0 0.0
    %3664 = vmatprep.subr.mxu0 0.0
    %3665 = vmatpush1.xpose.msra.mxu0 0.0
    %3666 = vmatprep.subr.mxu0 0.0
    %3667 = vmatpush1.xpose.msra.mxu0 0.0
    %3668 = vmatprep.subr.mxu0 0.0
    %3669 = vmatpush1.xpose.msra.mxu0 0.0
    %3670 = vmatprep.subr.mxu0 0.0
    %3671 = vmatpush1.xpose.msra.mxu0 0.0
    %3672 = vmatprep.subr.mxu0 0.0
    %3673 = vmatpush1.xpose.msra.mxu0 0.0
    %3674 = vmatprep.subr.mxu0 0.0
    %3675 = vmatpush1.xpose.msra.mxu0 0.0
    %3676 = vmatprep.subr.mxu0 0.0
    %3677 = vmatpush1.xpose.msra.mxu0 0.0
    %3678 = vmatprep.subr.mxu0 0.0
    %3679 = vmatpush1.xpose.msra.mxu0 0.0
    %3680 = vmatprep.subr.mxu0 0.0
    %3681 = vmatpush1.xpose.msra.mxu0 0.0
    %3682 = vmatprep.subr.mxu0 0.0
    %3683 = vmatpush1.xpose.msra.mxu0 0.0
    %3684 = vmatprep.subr.mxu0 0.0
    %3685 = vmatpush1.xpose.msra.mxu0 0.0
    %3686 = vmatprep.subr.mxu0 0.0
    %3687 = vmatpush1.xpose.msra.mxu0 0.0
    %3688 = vmatprep.subr.mxu0 0.0
    %3689 = vmatpush1.xpose.msra.mxu0 0.0
    %3690 = vmatprep.subr.mxu0 0.0
    %3691 = vmatpush1.xpose.msra.mxu0 0.0
    %3692 = vmatprep.subr.mxu0 0.0
    %3693 = vmatpush1.xpose.msra.mxu0 0.0
    %3694 = vmatprep.subr.mxu0 0.0
    %3695 = vmatpush1.xpose.msra.mxu0 0.0
    %3696 = vmatprep.subr.mxu0 0.0
    %3697 = vmatpush1.xpose.msra.mxu0 0.0
    %3698 = vmatprep.subr.mxu0 0.0
    %3699 = vmatpush1.xpose.msra.mxu0 0.0
    %3700 = vmatprep.subr.mxu0 0.0
    %3701 = vmatpush1.xpose.msra.mxu0 0.0
    %3702 = vmatprep.subr.mxu0 0.0
    %3703 = vmatpush1.xpose.msra.mxu0 0.0
    %3704 = vmatprep.subr.mxu0 0.0
    %3705 = vmatpush1.xpose.msra.mxu0 0.0
    %3706 = vmatprep.subr.mxu0 0.0
    %3707 = vmatpush1.xpose.msra.mxu0 0.0
    %3708 = vmatprep.subr.mxu0 0.0
    %3709 = vmatpush1.xpose.msra.mxu0 0.0
    %3710 = vmatprep.subr.mxu0 0.0
    %3711 = vmatpush1.xpose.msra.mxu0 0.0
    %3712 = vmatprep.subr.mxu0 0.0
    %3713 = vmatpush1.xpose.msra.mxu0 0.0
    %3714 = vmatprep.subr.mxu0 0.0
    %3715 = vmatpush1.xpose.msra.mxu0 0.0
    %3716 = vmatprep.subr.mxu0 0.0
    %3717 = vmatpush1.xpose.msra.mxu0 0.0
    %3718 = vmatprep.mubr.f32.mxu0 0.0
    %3719 = vmatmul.mubr.f32.gmra.mrb[0].mxu0 %v3637
    %v3720 = vpop.f32.mrb[0].mxu0
    %v3721 = vadd.f32 0.0, %v3720
    %v3722 = vpop.f32.mrb[0].mxu0
    %3723 = vmatprep.mubr.f32.mxu0 0.0
    %3724 = vmatmul.mubr.f32.gmra.mrb[0].mxu0 %v3640
    %v3725 = vpop.f32.mrb[0].mxu0
    %v3726 = vadd.f32 0.0, %v3725
    %v3727 = vpop.f32.mrb[0].mxu0
    %3728 = vmatprep.mubr.f32.mxu0 0.0
    %3729 = vmatmul.mubr.f32.gmra.mrb[0].mxu0 %v3643
    %v3730 = vpop.f32.mrb[0].mxu0
    %v3731 = vadd.f32 0.0, %v3730
    %v3732 = vpop.f32.mrb[0].mxu0
    %3733 = vmatprep.mubr.f32.mxu0 0.0
    %3734 = vmatmul.mubr.f32.gmra.mrb[0].mxu0 %v3646
    %v3735 = vpop.f32.mrb[0].mxu0
    %v3736 = vadd.f32 0.0, %v3735
    %v3737 = vpop.f32.mrb[0].mxu0
    %3738 = vdwg.mxu0
    %v3739 = vmul.f32 %v3721, 0.70710677
    %v3740 = vmul.f32 %v3726, 0.70710677
    %v3741 = vmul.f32 %v3731, 0.70710677
    %v3742 = vmul.f32 %v3736, 0.70710677
    %v3743 = vadd.f32 %v3739, %v28
    %v3744 = vadd.f32 %v3740, %v29
    %v3745 = vadd.f32 %v3741, %v30
    %v3746 = vadd.f32 %v3742, %v31
    %v3747 = vsel %vm424, %v3743, -inf
    %3748 = vmax.xlane.f32.xlu0 %v3747
    %v3749 = vpop.xlane.xlu0 %3748
    %v3750 = vsel %vm424, %v3744, -inf
    %3751 = vmax.xlane.f32.xlu0 %v3750
    %v3752 = vpop.xlane.xlu0 %3751
    %v3753 = vsel %vm424, %v3745, -inf
    %3754 = vmax.xlane.f32.xlu0 %v3753
    %v3755 = vpop.xlane.xlu0 %3754
    %v3756 = vsel %vm424, %v3746, -inf
    %3757 = vmax.xlane.f32.xlu0 %v3756
    %v3758 = vpop.xlane.xlu0 %3757
    %v3759 = vsub.f32 %v3743, %v3749
    %v3760 = vsub.f32 %v3744, %v3752
    %v3761 = vsub.f32 %v3745, %v3755
    %v3762 = vsub.f32 %v3746, %v3758
    %v3763 = vmul.f32 %v3759, 1.442695
    %v3764 = vpow.pop %v3763
    %v3765 = vmul.f32 %v3760, 1.442695
    %v3766 = vpow.pop %v3765
    %v3767 = vmul.f32 %v3761, 1.442695
    %v3768 = vpow.pop %v3767
    %v3769 = vmul.f32 %v3762, 1.442695
    %v3770 = vpow.pop %v3769
    %v3771 = vsel %vm424, %v3764, 0.0
    %3772 = vadd.xlane.f32.xlu0 %v3771
    %v3773 = vpop.xlane.xlu0 %3772
    %v3774 = vsel %vm424, %v3766, 0.0
    %3775 = vadd.xlane.f32.xlu0 %v3774
    %v3776 = vpop.xlane.xlu0 %3775
    %v3777 = vsel %vm424, %v3768, 0.0
    %3778 = vadd.xlane.f32.xlu0 %v3777
    %v3779 = vpop.xlane.xlu0 %3778
    %v3780 = vsel %vm424, %v3770, 0.0
    %3781 = vadd.xlane.f32.xlu0 %v3780
    %v3782 = vpop.xlane.xlu0 %3781
    %v3783 = vrcp.pop %v3773
    %v3784 = vrcp.pop %v3776
    %v3785 = vrcp.pop %v3779
    %v3786 = vrcp.pop %v3782
    %v3787 = vmul.f32 %v3764, %v3783
    %v3788 = vmul.f32 %v3766, %v3784
    %v3789 = vmul.f32 %v3768, %v3785
    %v3790 = vmul.f32 %v3770, %v3786
    %v3792 = vsel %vm424, %v3787, 0
    %v3795 = vsel %vm424, %v3788, 0
    %v3798 = vsel %vm424, %v3789, 0
    %v3801 = vsel %vm424, %v3790, 0
    %3803 = vmatprep.subr.mxu0 0.0
    %3804 = vmatpush1.msra.mxu0 %v3624
    %3805 = vmatprep.subr.mxu0 0.0
    %3806 = vmatpush1.msra.mxu0 %v3629
    %3807 = vmatprep.subr.mxu0 0.0
    %3808 = vmatpush1.msra.mxu0 0.0
    %3809 = vmatprep.subr.mxu0 0.0
    %3810 = vmatpush1.msra.mxu0 0.0
    %3811 = vmatprep.subr.mxu0 0.0
    %3812 = vmatpush1.msra.mxu0 0.0
    %3813 = vmatprep.subr.mxu0 0.0
    %3814 = vmatpush1.msra.mxu0 0.0
    %3815 = vmatprep.subr.mxu0 0.0
    %3816 = vmatpush1.msra.mxu0 0.0
    %3817 = vmatprep.subr.mxu0 0.0
    %3818 = vmatpush1.msra.mxu0 0.0
    %3819 = vmatprep.subr.mxu0 0.0
    %3820 = vmatpush1.msra.mxu0 0.0
    %3821 = vmatprep.subr.mxu0 0.0
    %3822 = vmatpush1.msra.mxu0 0.0
    %3823 = vmatprep.subr.mxu0 0.0
    %3824 = vmatpush1.msra.mxu0 0.0
    %3825 = vmatprep.subr.mxu0 0.0
    %3826 = vmatpush1.msra.mxu0 0.0
    %3827 = vmatprep.subr.mxu0 0.0
    %3828 = vmatpush1.msra.mxu0 0.0
    %3829 = vmatprep.subr.mxu0 0.0
    %3830 = vmatpush1.msra.mxu0 0.0
    %3831 = vmatprep.subr.mxu0 0.0
    %3832 = vmatpush1.msra.mxu0 0.0
    %3833 = vmatprep.subr.mxu0 0.0
    %3834 = vmatpush1.msra.mxu0 0.0
    %3835 = vmatprep.subr.mxu0 0.0
    %3836 = vmatpush1.msra.mxu0 0.0
    %3837 = vmatprep.subr.mxu0 0.0
    %3838 = vmatpush1.msra.mxu0 0.0
    %3839 = vmatprep.subr.mxu0 0.0
    %3840 = vmatpush1.msra.mxu0 0.0
    %3841 = vmatprep.subr.mxu0 0.0
    %3842 = vmatpush1.msra.mxu0 0.0
    %3843 = vmatprep.subr.mxu0 0.0
    %3844 = vmatpush1.msra.mxu0 0.0
    %3845 = vmatprep.subr.mxu0 0.0
    %3846 = vmatpush1.msra.mxu0 0.0
    %3847 = vmatprep.subr.mxu0 0.0
    %3848 = vmatpush1.msra.mxu0 0.0
    %3849 = vmatprep.subr.mxu0 0.0
    %3850 = vmatpush1.msra.mxu0 0.0
    %3851 = vmatprep.subr.mxu0 0.0
    %3852 = vmatpush1.msra.mxu0 0.0
    %3853 = vmatprep.subr.mxu0 0.0
    %3854 = vmatpush1.msra.mxu0 0.0
    %3855 = vmatprep.subr.mxu0 0.0
    %3856 = vmatpush1.msra.mxu0 0.0
    %3857 = vmatprep.subr.mxu0 0.0
    %3858 = vmatpush1.msra.mxu0 0.0
    %3859 = vmatprep.subr.mxu0 0.0
    %3860 = vmatpush1.msra.mxu0 0.0
    %3861 = vmatprep.subr.mxu0 0.0
    %3862 = vmatpush1.msra.mxu0 0.0
    %3863 = vmatprep.subr.mxu0 0.0
    %3864 = vmatpush1.msra.mxu0 0.0
    %3865 = vmatprep.subr.mxu0 0.0
    %3866 = vmatpush1.msra.mxu0 0.0
    %3867 = vmatprep.mubr.f32.mxu0 0.0
    %3868 = vmatmul.mubr.f32.gmra.mrb[0].mxu0 %v3792
    %v3869 = vpop.f32.mrb[0].mxu0
    %v3870 = vadd.f32 0.0, %v3869
    %v3871 = vpop.f32.mrb[0].mxu0
    %3872 = vmatprep.mubr.f32.mxu0 0.0
    %3873 = vmatmul.mubr.f32.gmra.mrb[0].mxu0 %v3795
    %v3874 = vpop.f32.mrb[0].mxu0
    %v3875 = vadd.f32 0.0, %v3874
    %v3876 = vpop.f32.mrb[0].mxu0
    %3877 = vmatprep.mubr.f32.mxu0 0.0
    %3878 = vmatmul.mubr.f32.gmra.mrb[0].mxu0 %v3798
    %v3879 = vpop.f32.mrb[0].mxu0
    %v3880 = vadd.f32 0.0, %v3879
    %v3881 = vpop.f32.mrb[0].mxu0
    %3882 = vmatprep.mubr.f32.mxu0 0.0
    %3883 = vmatmul.mubr.f32.gmra.mrb[0].mxu0 %v3801
    %v3884 = vpop.f32.mrb[0].mxu0
    %v3885 = vadd.f32 0.0, %v3884
    %v3886 = vpop.f32.mrb[0].mxu0
    %3887 = vdwg.mxu0
    %v3888 = vmul.f32 %v3870, %v304
    %v3889 = vmul.f32 %v3875, %v304
    %v3890 = vmul.f32 %v3880, %v310
    %v3891 = vmul.f32 %v3885, %v310
    %v3892 = vadd.f32 %v3888, %v3890
    %v3893 = vadd.f32 %v3889, %v3891
    %v3894 = vld [vmem:[#allocation2 + $0x248] sm:$0xf]
    %v3895 = vld [vmem:[#allocation2 + $0x250] sm:$0x1]
    %v3896 = vlaneseq
    %v3897 = vshrl.u32 %v3896, 7
    %v3898 = vsub.s32 0, %v3897
    %v3899 = vrot.slane %v3895, %v3898
    %v3901 = vsel %vm47, %v3892, 0
    %v3904 = vsel %vm47, %v3893, 0
    %v3907 = vsel %vm54, %v3894, 0
    %3909 = vmatprep.subr.mxu0 0.0
    %3910 = vmatpush1.msra.mxu0 %v3907
    %3911 = vmatprep.subr.mxu0 0.0
    %3912 = vmatpush1.msra.mxu0 0.0
    %3913 = vmatprep.subr.mxu0 0.0
    %3914 = vmatpush1.msra.mxu0 0.0
    %3915 = vmatprep.subr.mxu0 0.0
    %3916 = vmatpush1.msra.mxu0 0.0
    %3917 = vmatprep.subr.mxu0 0.0
    %3918 = vmatpush1.msra.mxu0 0.0
    %3919 = vmatprep.subr.mxu0 0.0
    %3920 = vmatpush1.msra.mxu0 0.0
    %3921 = vmatprep.subr.mxu0 0.0
    %3922 = vmatpush1.msra.mxu0 0.0
    %3923 = vmatprep.subr.mxu0 0.0
    %3924 = vmatpush1.msra.mxu0 0.0
    %3925 = vmatprep.subr.mxu0 0.0
    %3926 = vmatpush1.msra.mxu0 0.0
    %3927 = vmatprep.subr.mxu0 0.0
    %3928 = vmatpush1.msra.mxu0 0.0
    %3929 = vmatprep.subr.mxu0 0.0
    %3930 = vmatpush1.msra.mxu0 0.0
    %3931 = vmatprep.subr.mxu0 0.0
    %3932 = vmatpush1.msra.mxu0 0.0
    %3933 = vmatprep.subr.mxu0 0.0
    %3934 = vmatpush1.msra.mxu0 0.0
    %3935 = vmatprep.subr.mxu0 0.0
    %3936 = vmatpush1.msra.mxu0 0.0
    %3937 = vmatprep.subr.mxu0 0.0
    %3938 = vmatpush1.msra.mxu0 0.0
    %3939 = vmatprep.subr.mxu0 0.0
    %3940 = vmatpush1.msra.mxu0 0.0
    %3941 = vmatprep.subr.mxu0 0.0
    %3942 = vmatpush1.msra.mxu0 0.0
    %3943 = vmatprep.subr.mxu0 0.0
    %3944 = vmatpush1.msra.mxu0 0.0
    %3945 = vmatprep.subr.mxu0 0.0
    %3946 = vmatpush1.msra.mxu0 0.0
    %3947 = vmatprep.subr.mxu0 0.0
    %3948 = vmatpush1.msra.mxu0 0.0
    %3949 = vmatprep.subr.mxu0 0.0
    %3950 = vmatpush1.msra.mxu0 0.0
    %3951 = vmatprep.subr.mxu0 0.0
    %3952 = vmatpush1.msra.mxu0 0.0
    %3953 = vmatprep.subr.mxu0 0.0
    %3954 = vmatpush1.msra.mxu0 0.0
    %3955 = vmatprep.subr.mxu0 0.0
    %3956 = vmatpush1.msra.mxu0 0.0
    %3957 = vmatprep.subr.mxu0 0.0
    %3958 = vmatpush1.msra.mxu0 0.0
    %3959 = vmatprep.subr.mxu0 0.0
    %3960 = vmatpush1.msra.mxu0 0.0
    %3961 = vmatprep.subr.mxu0 0.0
    %3962 = vmatpush1.msra.mxu0 0.0
    %3963 = vmatprep.subr.mxu0 0.0
    %3964 = vmatpush1.msra.mxu0 0.0
    %3965 = vmatprep.subr.mxu0 0.0
    %3966 = vmatpush1.msra.mxu0 0.0
    %3967 = vmatprep.subr.mxu0 0.0
    %3968 = vmatpush1.msra.mxu0 0.0
    %3969 = vmatprep.subr.mxu0 0.0
    %3970 = vmatpush1.msra.mxu0 0.0
    %3971 = vmatprep.subr.mxu0 0.0
    %3972 = vmatpush1.msra.mxu0 0.0
    %3973 = vmatprep.mubr.f32.mxu0 0.0
    %3974 = vmatmul.mubr.f32.gmra.mrb[0].mxu0 %v3901
    %v3975 = vpop.f32.mrb[0].mxu0
    %v3976 = vadd.f32 %v3899, %v3975
    %v3977 = vpop.f32.mrb[0].mxu0
    %3978 = vmatprep.mubr.f32.mxu0 0.0
    %3979 = vmatmul.mubr.f32.gmra.mrb[0].mxu0 %v3904
    %v3980 = vpop.f32.mrb[0].mxu0
    %v3981 = vadd.f32 %v3899, %v3980
    %v3982 = vpop.f32.mrb[0].mxu0
    %3983 = vdwg.mxu0
    %v3984 = vadd.f32 %v3372, %v3976
    %v3985 = vadd.f32 %v3373, %v3981
    %v3986 = vsel %vm47, %v3984, 0.0
    %3987 = vadd.xlane.f32.xlu0 %v3986
    %v3988 = vpop.xlane.xlu0 %3987
    %v3989 = vsel %vm47, %v3985, 0.0
    %3990 = vadd.xlane.f32.xlu0 %v3989
    %v3991 = vpop.xlane.xlu0 %3990
    %v3992 = vmul.f32 %v3988, %v670
    %v3993 = vmul.f32 %v3991, %v670
    %v3994 = vsub.f32 %v3984, %v3992
    %v3995 = vsub.f32 %v3985, %v3993
    %v3996 = vmul.f32 %v3994, %v3994
    %v3997 = vmul.f32 %v3995, %v3995
    %v3998 = vsel %vm47, %v3996, 0.0
    %3999 = vadd.xlane.f32.xlu0 %v3998
    %v4000 = vpop.xlane.xlu0 %3999
    %v4001 = vsel %vm47, %v3997, 0.0
    %4002 = vadd.xlane.f32.xlu0 %v4001
    %v4003 = vpop.xlane.xlu0 %4002
    %v4004 = vmul.f32 %v4000, %v670
    %v4005 = vmul.f32 %v4003, %v670
    %v4006 = vadd.f32 %v4004, 1e-05
    %v4007 = vadd.f32 %v4005, 1e-05
    %v4008 = vrsqrt.pop %v4006
    %v4009 = vrsqrt.pop %v4007
    %v4010 = vmul.f32 %v3994, %v4008
    %v4011 = vmul.f32 %v3995, %v4009
    %v4012 = vld [vmem:[#allocation2 + $0x2d0] sm:$0x1]
    %v4013 = vlaneseq
    %v4014 = vshrl.u32 %v4013, 7
    %v4015 = vsub.s32 0, %v4014
    %v4016 = vrot.slane %v4012, %v4015
    %v4017 = vmul.f32 %v4010, %v4016
    %v4018 = vmul.f32 %v4011, %v4016
    %v4019 = vld [vmem:[#allocation2 + $0x2d8] sm:$0x1]
    %v4020 = vlaneseq
    %v4021 = vshrl.u32 %v4020, 7
    %v4022 = vsub.s32 0, %v4021
    %v4023 = vrot.slane %v4019, %v4022
    %v4024 = vadd.f32 %v4017, %v4023
    %v4025 = vadd.f32 %v4018, %v4023
    %v4026 = vld [vmem:[#allocation2 + $0x258] sm:$0xf]
    %v4027 = vld [vmem:[#allocation2 + $0x260] sm:$0x1]
    %v4028 = vlaneseq
    %v4029 = vshrl.u32 %v4028, 7
    %v4030 = vsub.s32 0, %v4029
    %v4031 = vrot.slane %v4027, %v4030
    %v4033 = vsel %vm47, %v4024, 0
    %v4036 = vsel %vm47, %v4025, 0
    %v4039 = vsel %vm54, %v4026, 0
    %4041 = vmatprep.subr.mxu0 0.0
    %4042 = vmatpush1.msra.mxu0 %v4039
    %4043 = vmatprep.subr.mxu0 0.0
    %4044 = vmatpush1.msra.mxu0 0.0
    %4045 = vmatprep.subr.mxu0 0.0
    %4046 = vmatpush1.msra.mxu0 0.0
    %4047 = vmatprep.subr.mxu0 0.0
    %4048 = vmatpush1.msra.mxu0 0.0
    %4049 = vmatprep.subr.mxu0 0.0
    %4050 = vmatpush1.msra.mxu0 0.0
    %4051 = vmatprep.subr.mxu0 0.0
    %4052 = vmatpush1.msra.mxu0 0.0
    %4053 = vmatprep.subr.mxu0 0.0
    %4054 = vmatpush1.msra.mxu0 0.0
    %4055 = vmatprep.subr.mxu0 0.0
    %4056 = vmatpush1.msra.mxu0 0.0
    %4057 = vmatprep.subr.mxu0 0.0
    %4058 = vmatpush1.msra.mxu0 0.0
    %4059 = vmatprep.subr.mxu0 0.0
    %4060 = vmatpush1.msra.mxu0 0.0
    %4061 = vmatprep.subr.mxu0 0.0
    %4062 = vmatpush1.msra.mxu0 0.0
    %4063 = vmatprep.subr.mxu0 0.0
    %4064 = vmatpush1.msra.mxu0 0.0
    %4065 = vmatprep.subr.mxu0 0.0
    %4066 = vmatpush1.msra.mxu0 0.0
    %4067 = vmatprep.subr.mxu0 0.0
    %4068 = vmatpush1.msra.mxu0 0.0
    %4069 = vmatprep.subr.mxu0 0.0
    %4070 = vmatpush1.msra.mxu0 0.0
    %4071 = vmatprep.subr.mxu0 0.0
    %4072 = vmatpush1.msra.mxu0 0.0
    %4073 = vmatprep.subr.mxu0 0.0
    %4074 = vmatpush1.msra.mxu0 0.0
    %4075 = vmatprep.subr.mxu0 0.0
    %4076 = vmatpush1.msra.mxu0 0.0
    %4077 = vmatprep.subr.mxu0 0.0
    %4078 = vmatpush1.msra.mxu0 0.0
    %4079 = vmatprep.subr.mxu0 0.0
    %4080 = vmatpush1.msra.mxu0 0.0
    %4081 = vmatprep.subr.mxu0 0.0
    %4082 = vmatpush1.msra.mxu0 0.0
    %4083 = vmatprep.subr.mxu0 0.0
    %4084 = vmatpush1.msra.mxu0 0.0
    %4085 = vmatprep.subr.mxu0 0.0
    %4086 = vmatpush1.msra.mxu0 0.0
    %4087 = vmatprep.subr.mxu0 0.0
    %4088 = vmatpush1.msra.mxu0 0.0
    %4089 = vmatprep.subr.mxu0 0.0
    %4090 = vmatpush1.msra.mxu0 0.0
    %4091 = vmatprep.subr.mxu0 0.0
    %4092 = vmatpush1.msra.mxu0 0.0
    %4093 = vmatprep.subr.mxu0 0.0
    %4094 = vmatpush1.msra.mxu0 0.0
    %4095 = vmatprep.subr.mxu0 0.0
    %4096 = vmatpush1.msra.mxu0 0.0
    %4097 = vmatprep.subr.mxu0 0.0
    %4098 = vmatpush1.msra.mxu0 0.0
    %4099 = vmatprep.subr.mxu0 0.0
    %4100 = vmatpush1.msra.mxu0 0.0
    %4101 = vmatprep.subr.mxu0 0.0
    %4102 = vmatpush1.msra.mxu0 0.0
    %4103 = vmatprep.subr.mxu0 0.0
    %4104 = vmatpush1.msra.mxu0 0.0
    %4105 = vmatprep.mubr.f32.mxu0 0.0
    %4106 = vmatmul.mubr.f32.gmra.mrb[0].mxu0 %v4033
    %v4107 = vpop.f32.mrb[0].mxu0
    %v4108 = vadd.f32 %v4031, %v4107
    %v4109 = vpop.f32.mrb[0].mxu0
    %4110 = vmatprep.mubr.f32.mxu0 0.0
    %4111 = vmatmul.mubr.f32.gmra.mrb[0].mxu0 %v4036
    %v4112 = vpop.f32.mrb[0].mxu0
    %v4113 = vadd.f32 %v4031, %v4112
    %v4114 = vpop.f32.mrb[0].mxu0
    %4115 = vdwg.mxu0
    %v4116 = vld [vmem:[#allocation2 + $0x268] sm:$0xf]
    %v4117 = vld [vmem:[#allocation2 + $0x270] sm:$0x1]
    %v4118 = vlaneseq
    %v4119 = vshrl.u32 %v4118, 7
    %v4120 = vsub.s32 0, %v4119
    %v4121 = vrot.slane %v4117, %v4120
    %v4123 = vsel %vm54, %v4116, 0
    %4125 = vmatprep.subr.mxu0 0.0
    %4126 = vmatpush1.msra.mxu0 %v4123
    %4127 = vmatprep.subr.mxu0 0.0
    %4128 = vmatpush1.msra.mxu0 0.0
    %4129 = vmatprep.subr.mxu0 0.0
    %4130 = vmatpush1.msra.mxu0 0.0
    %4131 = vmatprep.subr.mxu0 0.0
    %4132 = vmatpush1.msra.mxu0 0.0
    %4133 = vmatprep.subr.mxu0 0.0
    %4134 = vmatpush1.msra.mxu0 0.0
    %4135 = vmatprep.subr.mxu0 0.0
    %4136 = vmatpush1.msra.mxu0 0.0
    %4137 = vmatprep.subr.mxu0 0.0
    %4138 = vmatpush1.msra.mxu0 0.0
    %4139 = vmatprep.subr.mxu0 0.0
    %4140 = vmatpush1.msra.mxu0 0.0
    %4141 = vmatprep.subr.mxu0 0.0
    %4142 = vmatpush1.msra.mxu0 0.0
    %4143 = vmatprep.subr.mxu0 0.0
    %4144 = vmatpush1.msra.mxu0 0.0
    %4145 = vmatprep.subr.mxu0 0.0
    %4146 = vmatpush1.msra.mxu0 0.0
    %4147 = vmatprep.subr.mxu0 0.0
    %4148 = vmatpush1.msra.mxu0 0.0
    %4149 = vmatprep.subr.mxu0 0.0
    %4150 = vmatpush1.msra.mxu0 0.0
    %4151 = vmatprep.subr.mxu0 0.0
    %4152 = vmatpush1.msra.mxu0 0.0
    %4153 = vmatprep.subr.mxu0 0.0
    %4154 = vmatpush1.msra.mxu0 0.0
    %4155 = vmatprep.subr.mxu0 0.0
    %4156 = vmatpush1.msra.mxu0 0.0
    %4157 = vmatprep.subr.mxu0 0.0
    %4158 = vmatpush1.msra.mxu0 0.0
    %4159 = vmatprep.subr.mxu0 0.0
    %4160 = vmatpush1.msra.mxu0 0.0
    %4161 = vmatprep.subr.mxu0 0.0
    %4162 = vmatpush1.msra.mxu0 0.0
    %4163 = vmatprep.subr.mxu0 0.0
    %4164 = vmatpush1.msra.mxu0 0.0
    %4165 = vmatprep.subr.mxu0 0.0
    %4166 = vmatpush1.msra.mxu0 0.0
    %4167 = vmatprep.subr.mxu0 0.0
    %4168 = vmatpush1.msra.mxu0 0.0
    %4169 = vmatprep.subr.mxu0 0.0
    %4170 = vmatpush1.msra.mxu0 0.0
    %4171 = vmatprep.subr.mxu0 0.0
    %4172 = vmatpush1.msra.mxu0 0.0
    %4173 = vmatprep.subr.mxu0 0.0
    %4174 = vmatpush1.msra.mxu0 0.0
    %4175 = vmatprep.subr.mxu0 0.0
    %4176 = vmatpush1.msra.mxu0 0.0
    %4177 = vmatprep.subr.mxu0 0.0
    %4178 = vmatpush1.msra.mxu0 0.0
    %4179 = vmatprep.subr.mxu0 0.0
    %4180 = vmatpush1.msra.mxu0 0.0
    %4181 = vmatprep.subr.mxu0 0.0
    %4182 = vmatpush1.msra.mxu0 0.0
    %4183 = vmatprep.subr.mxu0 0.0
    %4184 = vmatpush1.msra.mxu0 0.0
    %4185 = vmatprep.subr.mxu0 0.0
    %4186 = vmatpush1.msra.mxu0 0.0
    %4187 = vmatprep.subr.mxu0 0.0
    %4188 = vmatpush1.msra.mxu0 0.0
    %4189 = vmatprep.mubr.f32.mxu0 0.0
    %4190 = vmatmul.mubr.f32.gmra.mrb[0].mxu0 %v2589
    %v4191 = vpop.f32.mrb[0].mxu0
    %v4192 = vadd.f32 %v4121, %v4191
    %v4193 = vpop.f32.mrb[0].mxu0
    %4194 = vmatprep.mubr.f32.mxu0 0.0
    %4195 = vmatmul.mubr.f32.gmra.mrb[0].mxu0 %v2592
    %v4196 = vpop.f32.mrb[0].mxu0
    %v4197 = vadd.f32 %v4121, %v4196
    %v4198 = vpop.f32.mrb[0].mxu0
    %4199 = vdwg.mxu0
    %v4200 = vld [vmem:[#allocation2 + $0x278] sm:$0xf]
    %v4201 = vld [vmem:[#allocation2 + $0x280] sm:$0x1]
    %v4202 = vlaneseq
    %v4203 = vshrl.u32 %v4202, 7
    %v4204 = vsub.s32 0, %v4203
    %v4205 = vrot.slane %v4201, %v4204
    %v4207 = vsel %vm54, %v4200, 0
    %4209 = vmatprep.subr.mxu0 0.0
    %4210 = vmatpush1.msra.mxu0 %v4207
    %4211 = vmatprep.subr.mxu0 0.0
    %4212 = vmatpush1.msra.mxu0 0.0
    %4213 = vmatprep.subr.mxu0 0.0
    %4214 = vmatpush1.msra.mxu0 0.0
    %4215 = vmatprep.subr.mxu0 0.0
    %4216 = vmatpush1.msra.mxu0 0.0
    %4217 = vmatprep.subr.mxu0 0.0
    %4218 = vmatpush1.msra.mxu0 0.0
    %4219 = vmatprep.subr.mxu0 0.0
    %4220 = vmatpush1.msra.mxu0 0.0
    %4221 = vmatprep.subr.mxu0 0.0
    %4222 = vmatpush1.msra.mxu0 0.0
    %4223 = vmatprep.subr.mxu0 0.0
    %4224 = vmatpush1.msra.mxu0 0.0
    %4225 = vmatprep.subr.mxu0 0.0
    %4226 = vmatpush1.msra.mxu0 0.0
    %4227 = vmatprep.subr.mxu0 0.0
    %4228 = vmatpush1.msra.mxu0 0.0
    %4229 = vmatprep.subr.mxu0 0.0
    %4230 = vmatpush1.msra.mxu0 0.0
    %4231 = vmatprep.subr.mxu0 0.0
    %4232 = vmatpush1.msra.mxu0 0.0
    %4233 = vmatprep.subr.mxu0 0.0
    %4234 = vmatpush1.msra.mxu0 0.0
    %4235 = vmatprep.subr.mxu0 0.0
    %4236 = vmatpush1.msra.mxu0 0.0
    %4237 = vmatprep.subr.mxu0 0.0
    %4238 = vmatpush1.msra.mxu0 0.0
    %4239 = vmatprep.subr.mxu0 0.0
    %4240 = vmatpush1.msra.mxu0 0.0
    %4241 = vmatprep.subr.mxu0 0.0
    %4242 = vmatpush1.msra.mxu0 0.0
    %4243 = vmatprep.subr.mxu0 0.0
    %4244 = vmatpush1.msra.mxu0 0.0
    %4245 = vmatprep.subr.mxu0 0.0
    %4246 = vmatpush1.msra.mxu0 0.0
    %4247 = vmatprep.subr.mxu0 0.0
    %4248 = vmatpush1.msra.mxu0 0.0
    %4249 = vmatprep.subr.mxu0 0.0
    %4250 = vmatpush1.msra.mxu0 0.0
    %4251 = vmatprep.subr.mxu0 0.0
    %4252 = vmatpush1.msra.mxu0 0.0
    %4253 = vmatprep.subr.mxu0 0.0
    %4254 = vmatpush1.msra.mxu0 0.0
    %4255 = vmatprep.subr.mxu0 0.0
    %4256 = vmatpush1.msra.mxu0 0.0
    %4257 = vmatprep.subr.mxu0 0.0
    %4258 = vmatpush1.msra.mxu0 0.0
    %4259 = vmatprep.subr.mxu0 0.0
    %4260 = vmatpush1.msra.mxu0 0.0
    %4261 = vmatprep.subr.mxu0 0.0
    %4262 = vmatpush1.msra.mxu0 0.0
    %4263 = vmatprep.subr.mxu0 0.0
    %4264 = vmatpush1.msra.mxu0 0.0
    %4265 = vmatprep.subr.mxu0 0.0
    %4266 = vmatpush1.msra.mxu0 0.0
    %4267 = vmatprep.subr.mxu0 0.0
    %4268 = vmatpush1.msra.mxu0 0.0
    %4269 = vmatprep.subr.mxu0 0.0
    %4270 = vmatpush1.msra.mxu0 0.0
    %4271 = vmatprep.subr.mxu0 0.0
    %4272 = vmatpush1.msra.mxu0 0.0
    %4273 = vmatprep.mubr.f32.mxu0 0.0
    %4274 = vmatmul.mubr.f32.gmra.mrb[0].mxu0 %v2589
    %v4275 = vpop.f32.mrb[0].mxu0
    %v4276 = vadd.f32 %v4205, %v4275
    %v4277 = vpop.f32.mrb[0].mxu0
    %4278 = vmatprep.mubr.f32.mxu0 0.0
    %4279 = vmatmul.mubr.f32.gmra.mrb[0].mxu0 %v2592
    %v4280 = vpop.f32.mrb[0].mxu0
    %v4281 = vadd.f32 %v4205, %v4280
    %v4282 = vpop.f32.mrb[0].mxu0
    %4283 = vdwg.mxu0
    %v4284 = vmul.f32 %v4108, %v304
    %v4285 = vmul.f32 %v4113, %v304
    %v4286 = vmul.f32 %v4108, %v310
    %v4287 = vmul.f32 %v4113, %v310
    %v4289 = vsel %vm47, %v4284, 0
    %v4292 = vsel %vm47, %v4285, 0
    %v4295 = vsel %vm47, %v4286, 0
    %v4298 = vsel %vm47, %v4287, 0
    %v4301 = vsel %vm47, %v4192, 0
    %v4304 = vsel %vm47, %v4197, 0
    %4306 = vmatprep.subr.mxu0 0.0
    %4307 = vmatpush1.xpose.msra.mxu0 %v4301
    %4308 = vmatprep.subr.mxu0 0.0
    %4309 = vmatpush1.xpose.msra.mxu0 %v4304
    %4310 = vmatprep.subr.mxu0 0.0
    %4311 = vmatpush1.xpose.msra.mxu0 0.0
    %4312 = vmatprep.subr.mxu0 0.0
    %4313 = vmatpush1.xpose.msra.mxu0 0.0
    %4314 = vmatprep.subr.mxu0 0.0
    %4315 = vmatpush1.xpose.msra.mxu0 0.0
    %4316 = vmatprep.subr.mxu0 0.0
    %4317 = vmatpush1.xpose.msra.mxu0 0.0
    %4318 = vmatprep.subr.mxu0 0.0
    %4319 = vmatpush1.xpose.msra.mxu0 0.0
    %4320 = vmatprep.subr.mxu0 0.0
    %4321 = vmatpush1.xpose.msra.mxu0 0.0
    %4322 = vmatprep.subr.mxu0 0.0
    %4323 = vmatpush1.xpose.msra.mxu0 0.0
    %4324 = vmatprep.subr.mxu0 0.0
    %4325 = vmatpush1.xpose.msra.mxu0 0.0
    %4326 = vmatprep.subr.mxu0 0.0
    %4327 = vmatpush1.xpose.msra.mxu0 0.0
    %4328 = vmatprep.subr.mxu0 0.0
    %4329 = vmatpush1.xpose.msra.mxu0 0.0
    %4330 = vmatprep.subr.mxu0 0.0
    %4331 = vmatpush1.xpose.msra.mxu0 0.0
    %4332 = vmatprep.subr.mxu0 0.0
    %4333 = vmatpush1.xpose.msra.mxu0 0.0
    %4334 = vmatprep.subr.mxu0 0.0
    %4335 = vmatpush1.xpose.msra.mxu0 0.0
    %4336 = vmatprep.subr.mxu0 0.0
    %4337 = vmatpush1.xpose.msra.mxu0 0.0
    %4338 = vmatprep.subr.mxu0 0.0
    %4339 = vmatpush1.xpose.msra.mxu0 0.0
    %4340 = vmatprep.subr.mxu0 0.0
    %4341 = vmatpush1.xpose.msra.mxu0 0.0
    %4342 = vmatprep.subr.mxu0 0.0
    %4343 = vmatpush1.xpose.msra.mxu0 0.0
    %4344 = vmatprep.subr.mxu0 0.0
    %4345 = vmatpush1.xpose.msra.mxu0 0.0
    %4346 = vmatprep.subr.mxu0 0.0
    %4347 = vmatpush1.xpose.msra.mxu0 0.0
    %4348 = vmatprep.subr.mxu0 0.0
    %4349 = vmatpush1.xpose.msra.mxu0 0.0
    %4350 = vmatprep.subr.mxu0 0.0
    %4351 = vmatpush1.xpose.msra.mxu0 0.0
    %4352 = vmatprep.subr.mxu0 0.0
    %4353 = vmatpush1.xpose.msra.mxu0 0.0
    %4354 = vmatprep.subr.mxu0 0.0
    %4355 = vmatpush1.xpose.msra.mxu0 0.0
    %4356 = vmatprep.subr.mxu0 0.0
    %4357 = vmatpush1.xpose.msra.mxu0 0.0
    %4358 = vmatprep.subr.mxu0 0.0
    %4359 = vmatpush1.xpose.msra.mxu0 0.0
    %4360 = vmatprep.subr.mxu0 0.0
    %4361 = vmatpush1.xpose.msra.mxu0 0.0
    %4362 = vmatprep.subr.mxu0 0.0
    %4363 = vmatpush1.xpose.msra.mxu0 0.0
    %4364 = vmatprep.subr.mxu0 0.0
    %4365 = vmatpush1.xpose.msra.mxu0 0.0
    %4366 = vmatprep.subr.mxu0 0.0
    %4367 = vmatpush1.xpose.msra.mxu0 0.0
    %4368 = vmatprep.subr.mxu0 0.0
    %4369 = vmatpush1.xpose.msra.mxu0 0.0
    %4370 = vmatprep.mubr.f32.mxu0 0.0
    %4371 = vmatmul.mubr.f32.gmra.mrb[0].mxu0 %v4289
    %v4372 = vpop.f32.mrb[0].mxu0
    %v4373 = vadd.f32 0.0, %v4372
    %v4374 = vpop.f32.mrb[0].mxu0
    %4375 = vmatprep.mubr.f32.mxu0 0.0
    %4376 = vmatmul.mubr.f32.gmra.mrb[0].mxu0 %v4292
    %v4377 = vpop.f32.mrb[0].mxu0
    %v4378 = vadd.f32 0.0, %v4377
    %v4379 = vpop.f32.mrb[0].mxu0
    %4380 = vmatprep.mubr.f32.mxu0 0.0
    %4381 = vmatmul.mubr.f32.gmra.mrb[0].mxu0 %v4295
    %v4382 = vpop.f32.mrb[0].mxu0
    %v4383 = vadd.f32 0.0, %v4382
    %v4384 = vpop.f32.mrb[0].mxu0
    %4385 = vmatprep.mubr.f32.mxu0 0.0
    %4386 = vmatmul.mubr.f32.gmra.mrb[0].mxu0 %v4298
    %v4387 = vpop.f32.mrb[0].mxu0
    %v4388 = vadd.f32 0.0, %v4387
    %v4389 = vpop.f32.mrb[0].mxu0
    %4390 = vdwg.mxu0
    %v4391 = vmul.f32 %v4373, 0.70710677
    %v4392 = vmul.f32 %v4378, 0.70710677
    %v4393 = vmul.f32 %v4383, 0.70710677
    %v4394 = vmul.f32 %v4388, 0.70710677
    %v4395 = vadd.f32 %v4391, %v32
    %v4396 = vadd.f32 %v4392, %v33
    %v4397 = vadd.f32 %v4393, %v34
    %v4398 = vadd.f32 %v4394, %v35
    %v4399 = vsel %vm424, %v4395, -inf
    %4400 = vmax.xlane.f32.xlu0 %v4399
    %v4401 = vpop.xlane.xlu0 %4400
    %v4402 = vsel %vm424, %v4396, -inf
    %4403 = vmax.xlane.f32.xlu0 %v4402
    %v4404 = vpop.xlane.xlu0 %4403
    %v4405 = vsel %vm424, %v4397, -inf
    %4406 = vmax.xlane.f32.xlu0 %v4405
    %v4407 = vpop.xlane.xlu0 %4406
    %v4408 = vsel %vm424, %v4398, -inf
    %4409 = vmax.xlane.f32.xlu0 %v4408
    %v4410 = vpop.xlane.xlu0 %4409
    %v4411 = vsub.f32 %v4395, %v4401
    %v4412 = vsub.f32 %v4396, %v4404
    %v4413 = vsub.f32 %v4397, %v4407
    %v4414 = vsub.f32 %v4398, %v4410
    %v4415 = vmul.f32 %v4411, 1.442695
    %v4416 = vpow.pop %v4415
    %v4417 = vmul.f32 %v4412, 1.442695
    %v4418 = vpow.pop %v4417
    %v4419 = vmul.f32 %v4413, 1.442695
    %v4420 = vpow.pop %v4419
    %v4421 = vmul.f32 %v4414, 1.442695
    %v4422 = vpow.pop %v4421
    %v4423 = vsel %vm424, %v4416, 0.0
    %4424 = vadd.xlane.f32.xlu0 %v4423
    %v4425 = vpop.xlane.xlu0 %4424
    %v4426 = vsel %vm424, %v4418, 0.0
    %4427 = vadd.xlane.f32.xlu0 %v4426
    %v4428 = vpop.xlane.xlu0 %4427
    %v4429 = vsel %vm424, %v4420, 0.0
    %4430 = vadd.xlane.f32.xlu0 %v4429
    %v4431 = vpop.xlane.xlu0 %4430
    %v4432 = vsel %vm424, %v4422, 0.0
    %4433 = vadd.xlane.f32.xlu0 %v4432
    %v4434 = vpop.xlane.xlu0 %4433
    %v4435 = vrcp.pop %v4425
    %v4436 = vrcp.pop %v4428
    %v4437 = vrcp.pop %v4431
    %v4438 = vrcp.pop %v4434
    %v4439 = vmul.f32 %v4416, %v4435
    %v4440 = vmul.f32 %v4418, %v4436
    %v4441 = vmul.f32 %v4420, %v4437
    %v4442 = vmul.f32 %v4422, %v4438
    %v4444 = vsel %vm424, %v4439, 0
    %v4447 = vsel %vm424, %v4440, 0
    %v4450 = vsel %vm424, %v4441, 0
    %v4453 = vsel %vm424, %v4442, 0
    %4455 = vmatprep.subr.mxu0 0.0
    %4456 = vmatpush1.msra.mxu0 %v4276
    %4457 = vmatprep.subr.mxu0 0.0
    %4458 = vmatpush1.msra.mxu0 %v4281
    %4459 = vmatprep.subr.mxu0 0.0
    %4460 = vmatpush1.msra.mxu0 0.0
    %4461 = vmatprep.subr.mxu0 0.0
    %4462 = vmatpush1.msra.mxu0 0.0
    %4463 = vmatprep.subr.mxu0 0.0
    %4464 = vmatpush1.msra.mxu0 0.0
    %4465 = vmatprep.subr.mxu0 0.0
    %4466 = vmatpush1.msra.mxu0 0.0
    %4467 = vmatprep.subr.mxu0 0.0
    %4468 = vmatpush1.msra.mxu0 0.0
    %4469 = vmatprep.subr.mxu0 0.0
    %4470 = vmatpush1.msra.mxu0 0.0
    %4471 = vmatprep.subr.mxu0 0.0
    %4472 = vmatpush1.msra.mxu0 0.0
    %4473 = vmatprep.subr.mxu0 0.0
    %4474 = vmatpush1.msra.mxu0 0.0
    %4475 = vmatprep.subr.mxu0 0.0
    %4476 = vmatpush1.msra.mxu0 0.0
    %4477 = vmatprep.subr.mxu0 0.0
    %4478 = vmatpush1.msra.mxu0 0.0
    %4479 = vmatprep.subr.mxu0 0.0
    %4480 = vmatpush1.msra.mxu0 0.0
    %4481 = vmatprep.subr.mxu0 0.0
    %4482 = vmatpush1.msra.mxu0 0.0
    %4483 = vmatprep.subr.mxu0 0.0
    %4484 = vmatpush1.msra.mxu0 0.0
    %4485 = vmatprep.subr.mxu0 0.0
    %4486 = vmatpush1.msra.mxu0 0.0
    %4487 = vmatprep.subr.mxu0 0.0
    %4488 = vmatpush1.msra.mxu0 0.0
    %4489 = vmatprep.subr.mxu0 0.0
    %4490 = vmatpush1.msra.mxu0 0.0
    %4491 = vmatprep.subr.mxu0 0.0
    %4492 = vmatpush1.msra.mxu0 0.0
    %4493 = vmatprep.subr.mxu0 0.0
    %4494 = vmatpush1.msra.mxu0 0.0
    %4495 = vmatprep.subr.mxu0 0.0
    %4496 = vmatpush1.msra.mxu0 0.0
    %4497 = vmatprep.subr.mxu0 0.0
    %4498 = vmatpush1.msra.mxu0 0.0
    %4499 = vmatprep.subr.mxu0 0.0
    %4500 = vmatpush1.msra.mxu0 0.0
    %4501 = vmatprep.subr.mxu0 0.0
    %4502 = vmatpush1.msra.mxu0 0.0
    %4503 = vmatprep.subr.mxu0 0.0
    %4504 = vmatpush1.msra.mxu0 0.0
    %4505 = vmatprep.subr.mxu0 0.0
    %4506 = vmatpush1.msra.mxu0 0.0
    %4507 = vmatprep.subr.mxu0 0.0
    %4508 = vmatpush1.msra.mxu0 0.0
    %4509 = vmatprep.subr.mxu0 0.0
    %4510 = vmatpush1.msra.mxu0 0.0
    %4511 = vmatprep.subr.mxu0 0.0
    %4512 = vmatpush1.msra.mxu0 0.0
    %4513 = vmatprep.subr.mxu0 0.0
    %4514 = vmatpush1.msra.mxu0 0.0
    %4515 = vmatprep.subr.mxu0 0.0
    %4516 = vmatpush1.msra.mxu0 0.0
    %4517 = vmatprep.subr.mxu0 0.0
    %4518 = vmatpush1.msra.mxu0 0.0
    %4519 = vmatprep.mubr.f32.mxu0 0.0
    %4520 = vmatmul.mubr.f32.gmra.mrb[0].mxu0 %v4444
    %v4521 = vpop.f32.mrb[0].mxu0
    %v4522 = vadd.f32 0.0, %v4521
    %v4523 = vpop.f32.mrb[0].mxu0
    %4524 = vmatprep.mubr.f32.mxu0 0.0
    %4525 = vmatmul.mubr.f32.gmra.mrb[0].mxu0 %v4447
    %v4526 = vpop.f32.mrb[0].mxu0
    %v4527 = vadd.f32 0.0, %v4526
    %v4528 = vpop.f32.mrb[0].mxu0
    %4529 = vmatprep.mubr.f32.mxu0 0.0
    %4530 = vmatmul.mubr.f32.gmra.mrb[0].mxu0 %v4450
    %v4531 = vpop.f32.mrb[0].mxu0
    %v4532 = vadd.f32 0.0, %v4531
    %v4533 = vpop.f32.mrb[0].mxu0
    %4534 = vmatprep.mubr.f32.mxu0 0.0
    %4535 = vmatmul.mubr.f32.gmra.mrb[0].mxu0 %v4453
    %v4536 = vpop.f32.mrb[0].mxu0
    %v4537 = vadd.f32 0.0, %v4536
    %v4538 = vpop.f32.mrb[0].mxu0
    %4539 = vdwg.mxu0
    %v4540 = vmul.f32 %v4522, %v304
    %v4541 = vmul.f32 %v4527, %v304
    %v4542 = vmul.f32 %v4532, %v310
    %v4543 = vmul.f32 %v4537, %v310
    %v4544 = vadd.f32 %v4540, %v4542
    %v4545 = vadd.f32 %v4541, %v4543
    %v4546 = vld [vmem:[#allocation2 + $0x288] sm:$0xf]
    %v4547 = vld [vmem:[#allocation2 + $0x290] sm:$0x1]
    %v4548 = vlaneseq
    %v4549 = vshrl.u32 %v4548, 7
    %v4550 = vsub.s32 0, %v4549
    %v4551 = vrot.slane %v4547, %v4550
    %v4553 = vsel %vm47, %v4544, 0
    %v4556 = vsel %vm47, %v4545, 0
    %v4559 = vsel %vm54, %v4546, 0
    %4561 = vmatprep.subr.mxu0 0.0
    %4562 = vmatpush1.msra.mxu0 %v4559
    %4563 = vmatprep.subr.mxu0 0.0
    %4564 = vmatpush1.msra.mxu0 0.0
    %4565 = vmatprep.subr.mxu0 0.0
    %4566 = vmatpush1.msra.mxu0 0.0
    %4567 = vmatprep.subr.mxu0 0.0
    %4568 = vmatpush1.msra.mxu0 0.0
    %4569 = vmatprep.subr.mxu0 0.0
    %4570 = vmatpush1.msra.mxu0 0.0
    %4571 = vmatprep.subr.mxu0 0.0
    %4572 = vmatpush1.msra.mxu0 0.0
    %4573 = vmatprep.subr.mxu0 0.0
    %4574 = vmatpush1.msra.mxu0 0.0
    %4575 = vmatprep.subr.mxu0 0.0
    %4576 = vmatpush1.msra.mxu0 0.0
    %4577 = vmatprep.subr.mxu0 0.0
    %4578 = vmatpush1.msra.mxu0 0.0
    %4579 = vmatprep.subr.mxu0 0.0
    %4580 = vmatpush1.msra.mxu0 0.0
    %4581 = vmatprep.subr.mxu0 0.0
    %4582 = vmatpush1.msra.mxu0 0.0
    %4583 = vmatprep.subr.mxu0 0.0
    %4584 = vmatpush1.msra.mxu0 0.0
    %4585 = vmatprep.subr.mxu0 0.0
    %4586 = vmatpush1.msra.mxu0 0.0
    %4587 = vmatprep.subr.mxu0 0.0
    %4588 = vmatpush1.msra.mxu0 0.0
    %4589 = vmatprep.subr.mxu0 0.0
    %4590 = vmatpush1.msra.mxu0 0.0
    %4591 = vmatprep.subr.mxu0 0.0
    %4592 = vmatpush1.msra.mxu0 0.0
    %4593 = vmatprep.subr.mxu0 0.0
    %4594 = vmatpush1.msra.mxu0 0.0
    %4595 = vmatprep.subr.mxu0 0.0
    %4596 = vmatpush1.msra.mxu0 0.0
    %4597 = vmatprep.subr.mxu0 0.0
    %4598 = vmatpush1.msra.mxu0 0.0
    %4599 = vmatprep.subr.mxu0 0.0
    %4600 = vmatpush1.msra.mxu0 0.0
    %4601 = vmatprep.subr.mxu0 0.0
    %4602 = vmatpush1.msra.mxu0 0.0
    %4603 = vmatprep.subr.mxu0 0.0
    %4604 = vmatpush1.msra.mxu0 0.0
    %4605 = vmatprep.subr.mxu0 0.0
    %4606 = vmatpush1.msra.mxu0 0.0
    %4607 = vmatprep.subr.mxu0 0.0
    %4608 = vmatpush1.msra.mxu0 0.0
    %4609 = vmatprep.subr.mxu0 0.0
    %4610 = vmatpush1.msra.mxu0 0.0
    %4611 = vmatprep.subr.mxu0 0.0
    %4612 = vmatpush1.msra.mxu0 0.0
    %4613 = vmatprep.subr.mxu0 0.0
    %4614 = vmatpush1.msra.mxu0 0.0
    %4615 = vmatprep.subr.mxu0 0.0
    %4616 = vmatpush1.msra.mxu0 0.0
    %4617 = vmatprep.subr.mxu0 0.0
    %4618 = vmatpush1.msra.mxu0 0.0
    %4619 = vmatprep.subr.mxu0 0.0
    %4620 = vmatpush1.msra.mxu0 0.0
    %4621 = vmatprep.subr.mxu0 0.0
    %4622 = vmatpush1.msra.mxu0 0.0
    %4623 = vmatprep.subr.mxu0 0.0
    %4624 = vmatpush1.msra.mxu0 0.0
    %4625 = vmatprep.mubr.f32.mxu0 0.0
    %4626 = vmatmul.mubr.f32.gmra.mrb[0].mxu0 %v4553
    %v4627 = vpop.f32.mrb[0].mxu0
    %v4628 = vadd.f32 %v4551, %v4627
    %v4629 = vpop.f32.mrb[0].mxu0
    %4630 = vmatprep.mubr.f32.mxu0 0.0
    %4631 = vmatmul.mubr.f32.gmra.mrb[0].mxu0 %v4556
    %v4632 = vpop.f32.mrb[0].mxu0
    %v4633 = vadd.f32 %v4551, %v4632
    %v4634 = vpop.f32.mrb[0].mxu0
    %4635 = vdwg.mxu0
    %v4636 = vadd.f32 %v4024, %v4628
    %v4637 = vadd.f32 %v4025, %v4633
    %v4638 = vsel %vm47, %v4636, 0.0
    %4639 = vadd.xlane.f32.xlu0 %v4638
    %v4640 = vpop.xlane.xlu0 %4639
    %v4641 = vsel %vm47, %v4637, 0.0
    %4642 = vadd.xlane.f32.xlu0 %v4641
    %v4643 = vpop.xlane.xlu0 %4642
    %v4644 = vmul.f32 %v4640, %v670
    %v4645 = vmul.f32 %v4643, %v670
    %v4646 = vsub.f32 %v4636, %v4644
    %v4647 = vsub.f32 %v4637, %v4645
    %v4648 = vmul.f32 %v4646, %v4646
    %v4649 = vmul.f32 %v4647, %v4647
    %v4650 = vsel %vm47, %v4648, 0.0
    %4651 = vadd.xlane.f32.xlu0 %v4650
    %v4652 = vpop.xlane.xlu0 %4651
    %v4653 = vsel %vm47, %v4649, 0.0
    %4654 = vadd.xlane.f32.xlu0 %v4653
    %v4655 = vpop.xlane.xlu0 %4654
    %v4656 = vmul.f32 %v4652, %v670
    %v4657 = vmul.f32 %v4655, %v670
    %v4658 = vadd.f32 %v4656, 1e-05
    %v4659 = vadd.f32 %v4657, 1e-05
    %v4660 = vrsqrt.pop %v4658
    %v4661 = vrsqrt.pop %v4659
    %v4662 = vmul.f32 %v4646, %v4660
    %v4663 = vmul.f32 %v4647, %v4661
    %v4664 = vld [vmem:[#allocation2 + $0x2e0] sm:$0x1]
    %v4665 = vlaneseq
    %v4666 = vshrl.u32 %v4665, 7
    %v4667 = vsub.s32 0, %v4666
    %v4668 = vrot.slane %v4664, %v4667
    %v4669 = vmul.f32 %v4662, %v4668
    %v4670 = vmul.f32 %v4663, %v4668
    %v4671 = vld [vmem:[#allocation2 + $0x2e8] sm:$0x1]
    %v4672 = vlaneseq
    %v4673 = vshrl.u32 %v4672, 7
    %v4674 = vsub.s32 0, %v4673
    %v4675 = vrot.slane %v4671, %v4674
    %v4676 = vadd.f32 %v4669, %v4675
    %v4677 = vadd.f32 %v4670, %v4675
    %v4678 = vld [vmem:[#allocation2 + $0x298] sm:$0xf]
    %v4679 = vld [vmem:[#allocation2 + $0x2a0] sm:$0x1]
    %v4680 = vlaneseq
    %v4681 = vshrl.u32 %v4680, 7
    %v4682 = vsub.s32 0, %v4681
    %v4683 = vrot.slane %v4679, %v4682
    %v4685 = vsel %vm47, %v4676, 0
    %v4688 = vsel %vm47, %v4677, 0
    %v4691 = vsel %vm54, %v4678, 0
    %4693 = vmatprep.subr.mxu0 0.0
    %4694 = vmatpush1.msra.mxu0 %v4691
    %4695 = vmatprep.subr.mxu0 0.0
    %4696 = vmatpush1.msra.mxu0 0.0
    %4697 = vmatprep.subr.mxu0 0.0
    %4698 = vmatpush1.msra.mxu0 0.0
    %4699 = vmatprep.subr.mxu0 0.0
    %4700 = vmatpush1.msra.mxu0 0.0
    %4701 = vmatprep.subr.mxu0 0.0
    %4702 = vmatpush1.msra.mxu0 0.0
    %4703 = vmatprep.subr.mxu0 0.0
    %4704 = vmatpush1.msra.mxu0 0.0
    %4705 = vmatprep.subr.mxu0 0.0
    %4706 = vmatpush1.msra.mxu0 0.0
    %4707 = vmatprep.subr.mxu0 0.0
    %4708 = vmatpush1.msra.mxu0 0.0
    %4709 = vmatprep.subr.mxu0 0.0
    %4710 = vmatpush1.msra.mxu0 0.0
    %4711 = vmatprep.subr.mxu0 0.0
    %4712 = vmatpush1.msra.mxu0 0.0
    %4713 = vmatprep.subr.mxu0 0.0
    %4714 = vmatpush1.msra.mxu0 0.0
    %4715 = vmatprep.subr.mxu0 0.0
    %4716 = vmatpush1.msra.mxu0 0.0
    %4717 = vmatprep.subr.mxu0 0.0
    %4718 = vmatpush1.msra.mxu0 0.0
    %4719 = vmatprep.subr.mxu0 0.0
    %4720 = vmatpush1.msra.mxu0 0.0
    %4721 = vmatprep.subr.mxu0 0.0
    %4722 = vmatpush1.msra.mxu0 0.0
    %4723 = vmatprep.subr.mxu0 0.0
    %4724 = vmatpush1.msra.mxu0 0.0
    %4725 = vmatprep.subr.mxu0 0.0
    %4726 = vmatpush1.msra.mxu0 0.0
    %4727 = vmatprep.subr.mxu0 0.0
    %4728 = vmatpush1.msra.mxu0 0.0
    %4729 = vmatprep.subr.mxu0 0.0
    %4730 = vmatpush1.msra.mxu0 0.0
    %4731 = vmatprep.subr.mxu0 0.0
    %4732 = vmatpush1.msra.mxu0 0.0
    %4733 = vmatprep.subr.mxu0 0.0
    %4734 = vmatpush1.msra.mxu0 0.0
    %4735 = vmatprep.subr.mxu0 0.0
    %4736 = vmatpush1.msra.mxu0 0.0
    %4737 = vmatprep.subr.mxu0 0.0
    %4738 = vmatpush1.msra.mxu0 0.0
    %4739 = vmatprep.subr.mxu0 0.0
    %4740 = vmatpush1.msra.mxu0 0.0
    %4741 = vmatprep.subr.mxu0 0.0
    %4742 = vmatpush1.msra.mxu0 0.0
    %4743 = vmatprep.subr.mxu0 0.0
    %4744 = vmatpush1.msra.mxu0 0.0
    %4745 = vmatprep.subr.mxu0 0.0
    %4746 = vmatpush1.msra.mxu0 0.0
    %4747 = vmatprep.subr.mxu0 0.0
    %4748 = vmatpush1.msra.mxu0 0.0
    %4749 = vmatprep.subr.mxu0 0.0
    %4750 = vmatpush1.msra.mxu0 0.0
    %4751 = vmatprep.subr.mxu0 0.0
    %4752 = vmatpush1.msra.mxu0 0.0
    %4753 = vmatprep.subr.mxu0 0.0
    %4754 = vmatpush1.msra.mxu0 0.0
    %4755 = vmatprep.subr.mxu0 0.0
    %4756 = vmatpush1.msra.mxu0 0.0
    %4757 = vmatprep.mubr.f32.mxu0 0.0
    %4758 = vmatmul.mubr.f32.gmra.mrb[0].mxu0 %v4685
    %v4759 = vpop.f32.mrb[0].mxu0
    %v4760 = vadd.f32 %v4683, %v4759
    %v4761 = vpop.f32.mrb[0].mxu0
    %4762 = vmatprep.mubr.f32.mxu0 0.0
    %4763 = vmatmul.mubr.f32.gmra.mrb[0].mxu0 %v4688
    %v4764 = vpop.f32.mrb[0].mxu0
    %v4765 = vadd.f32 %v4683, %v4764
    %v4766 = vpop.f32.mrb[0].mxu0
    %4767 = vdwg.mxu0
    %v4768 = vmax.f32 %v4760, 0.0
    %v4769 = vmax.f32 %v4765, 0.0
    %v4770 = vld [vmem:[#allocation2 + $0x2a8] sm:$0xff]
    %v4771 = vld [vmem:[#allocation2 + $0x2b0] sm:$0xff]
    %v4772 = vld [vmem:[#allocation2 + $0x2b8] sm:$0xff]
    %v4773 = vld [vmem:[#allocation2 + $0x2c0] sm:$0xff]
    %v4774 = vld [vmem:[#allocation2 + $0x2c8] sm:$0x1]
    %v4775 = vlaneseq
    %v4776 = vshrl.u32 %v4775, 7
    %v4777 = vsub.s32 0, %v4776
    %v4778 = vrot.slane %v4774, %v4777
    %v4780 = vsel %vm806, %v4768, 0
    %v4783 = vsel %vm806, %v4769, 0
    %4785 = vmatprep.subr.mxu0 0.0
    %4786 = vmatpush1.msra.mxu0 %v4770
    %4787 = vmatprep.subr.mxu0 0.0
    %4788 = vmatpush1.msra.mxu0 %v4771
    %4789 = vmatprep.subr.mxu0 0.0
    %4790 = vmatpush1.msra.mxu0 %v4772
    %4791 = vmatprep.subr.mxu0 0.0
    %4792 = vmatpush1.msra.mxu0 %v4773
    %4793 = vmatprep.subr.mxu0 0.0
    %4794 = vmatpush1.msra.mxu0 0.0
    %4795 = vmatprep.subr.mxu0 0.0
    %4796 = vmatpush1.msra.mxu0 0.0
    %4797 = vmatprep.subr.mxu0 0.0
    %4798 = vmatpush1.msra.mxu0 0.0
    %4799 = vmatprep.subr.mxu0 0.0
    %4800 = vmatpush1.msra.mxu0 0.0
    %4801 = vmatprep.subr.mxu0 0.0
    %4802 = vmatpush1.msra.mxu0 0.0
    %4803 = vmatprep.subr.mxu0 0.0
    %4804 = vmatpush1.msra.mxu0 0.0
    %4805 = vmatprep.subr.mxu0 0.0
    %4806 = vmatpush1.msra.mxu0 0.0
    %4807 = vmatprep.subr.mxu0 0.0
    %4808 = vmatpush1.msra.mxu0 0.0
    %4809 = vmatprep.subr.mxu0 0.0
    %4810 = vmatpush1.msra.mxu0 0.0
    %4811 = vmatprep.subr.mxu0 0.0
    %4812 = vmatpush1.msra.mxu0 0.0
    %4813 = vmatprep.subr.mxu0 0.0
    %4814 = vmatpush1.msra.mxu0 0.0
    %4815 = vmatprep.subr.mxu0 0.0
    %4816 = vmatpush1.msra.mxu0 0.0
    %4817 = vmatprep.subr.mxu0 0.0
    %4818 = vmatpush1.msra.mxu0 0.0
    %4819 = vmatprep.subr.mxu0 0.0
    %4820 = vmatpush1.msra.mxu0 0.0
    %4821 = vmatprep.subr.mxu0 0.0
    %4822 = vmatpush1.msra.mxu0 0.0
    %4823 = vmatprep.subr.mxu0 0.0
    %4824 = vmatpush1.msra.mxu0 0.0
    %4825 = vmatprep.subr.mxu0 0.0
    %4826 = vmatpush1.msra.mxu0 0.0
    %4827 = vmatprep.subr.mxu0 0.0
    %4828 = vmatpush1.msra.mxu0 0.0
    %4829 = vmatprep.subr.mxu0 0.0
    %4830 = vmatpush1.msra.mxu0 0.0
    %4831 = vmatprep.subr.mxu0 0.0
    %4832 = vmatpush1.msra.mxu0 0.0
    %4833 = vmatprep.subr.mxu0 0.0
    %4834 = vmatpush1.msra.mxu0 0.0
    %4835 = vmatprep.subr.mxu0 0.0
    %4836 = vmatpush1.msra.mxu0 0.0
    %4837 = vmatprep.subr.mxu0 0.0
    %4838 = vmatpush1.msra.mxu0 0.0
    %4839 = vmatprep.subr.mxu0 0.0
    %4840 = vmatpush1.msra.mxu0 0.0
    %4841 = vmatprep.subr.mxu0 0.0
    %4842 = vmatpush1.msra.mxu0 0.0
    %4843 = vmatprep.subr.mxu0 0.0
    %4844 = vmatpush1.msra.mxu0 0.0
    %4845 = vmatprep.subr.mxu0 0.0
    %4846 = vmatpush1.msra.mxu0 0.0
    %4847 = vmatprep.subr.mxu0 0.0
    %4848 = vmatpush1.msra.mxu0 0.0
    %4849 = vmatprep.mubr.f32.mxu0 0.0
    %4850 = vmatmul.mubr.f32.gmra.mrb[0].mxu0 %v4780
    %v4851 = vpop.f32.mrb[0].mxu0
    %v4852 = vpop.f32.mrb[0].mxu0
    %4853 = vmatprep.mubr.f32.mxu0 0.0
    %4854 = vmatmul.mubr.f32.gmra.mrb[0].mxu0 %v4783
    %v4855 = vpop.f32.mrb[0].mxu0
    %v4856 = vadd.f32 %v4778, %v4855
    %v4857 = vpop.f32.mrb[0].mxu0
    %4858 = vdwg.mxu0
    %v4859 = vadd.f32 %v4677, %v4856
    %v4860 = vsel %vm47, %v4859, 0.0
    %4861 = vadd.xlane.f32.xlu0 %v4860
    %v4862 = vpop.xlane.xlu0 %4861
    %v4863 = vmul.f32 %v4862, %v670
    %v4864 = vsub.f32 %v4859, %v4863
    %v4865 = vmul.f32 %v4864, %v4864
    %v4866 = vsel %vm47, %v4865, 0.0
    %4867 = vadd.xlane.f32.xlu0 %v4866
    %v4868 = vpop.xlane.xlu0 %4867
    %v4869 = vmul.f32 %v4868, %v670
    %v4870 = vadd.f32 %v4869, 1e-05
    %v4871 = vrsqrt.pop %v4870
    %v4872 = vmul.f32 %v4864, %v4871
    %v4873 = vld [vmem:[#allocation2 + $0x2f0] sm:$0x1]
    %v4874 = vlaneseq
    %v4875 = vshrl.u32 %v4874, 7
    %v4876 = vsub.s32 0, %v4875
    %v4877 = vrot.slane %v4873, %v4876
    %v4878 = vmul.f32 %v4872, %v4877
    %v4879 = vld [vmem:[#allocation2 + $0x2f8] sm:$0x1]
    %v4880 = vlaneseq
    %v4881 = vshrl.u32 %v4880, 7
    %v4882 = vsub.s32 0, %v4881
    %v4883 = vrot.slane %v4879, %v4882
    %v4884 = vadd.f32 %v4878, %v4883
    %vm4885 = vcmask 31750
    %v4886 = vsel %vm4885, %v4884, 0.0
    %4887 = vadd.xlane.f32.xlu0 %v4886
    %v4888 = vpop.xlane.xlu0 %4887
    %v4889 = vmul.f32 %v4888, %v670
    %v4890 = vsub.f32 %v4884, %v4889
    %v4891 = vmul.f32 %v4890, %v4890
    %v4892 = vsel %vm4885, %v4891, 0.0
    %4893 = vadd.xlane.f32.xlu0 %v4892
    %v4894 = vpop.xlane.xlu0 %4893
    %v4895 = vmul.f32 %v4894, %v670
    %v4896 = vadd.f32 %v4895, 1e-05
    %v4897 = vrsqrt.pop %v4896
    %v4898 = vmul.f32 %v4890, %v4897
    %v4899 = vld [vmem:[#allocation2 + $0x310] sm:$0x1]
    %v4900 = vlaneseq
    %v4901 = vshrl.u32 %v4900, 7
    %v4902 = vsub.s32 0, %v4901
    %v4903 = vrot.slane %v4899, %v4902
    %v4904 = vmul.f32 %v4898, %v4903
    %v4905 = vld [vmem:[#allocation2 + $0x318] sm:$0x1]
    %v4906 = vlaneseq
    %v4907 = vshrl.u32 %v4906, 7
    %v4908 = vsub.s32 0, %v4907
    %v4909 = vrot.slane %v4905, %v4908
    %v4910 = vadd.f32 %v4904, %v4909
    %v4911 = vld [vmem:[#allocation2 + $0x320] sm:$0xf]
    %v4912 = vld [vmem:[#allocation2 + $0x328] sm:$0x1]
    %v4913 = vlaneseq
    %v4914 = vshrl.u32 %v4913, 7
    %v4915 = vsub.s32 0, %v4914
    %v4916 = vrot.slane %v4912, %v4915
    %v4918 = vrot.slane %v4910, 6
    %v4919 = vsel %vm47, %v4918, 0
    %v4922 = vsel %vm54, %v4911, 0
    %4924 = vmatprep.subr.mxu0 0.0
    %4925 = vmatpush1.msra.mxu0 %v4922
    %4926 = vmatprep.subr.mxu0 0.0
    %4927 = vmatpush1.msra.mxu0 0.0
    %4928 = vmatprep.subr.mxu0 0.0
    %4929 = vmatpush1.msra.mxu0 0.0
    %4930 = vmatprep.subr.mxu0 0.0
    %4931 = vmatpush1.msra.mxu0 0.0
    %4932 = vmatprep.subr.mxu0 0.0
    %4933 = vmatpush1.msra.mxu0 0.0
    %4934 = vmatprep.subr.mxu0 0.0
    %4935 = vmatpush1.msra.mxu0 0.0
    %4936 = vmatprep.subr.mxu0 0.0
    %4937 = vmatpush1.msra.mxu0 0.0
    %4938 = vmatprep.subr.mxu0 0.0
    %4939 = vmatpush1.msra.mxu0 0.0
    %4940 = vmatprep.subr.mxu0 0.0
    %4941 = vmatpush1.msra.mxu0 0.0
    %4942 = vmatprep.subr.mxu0 0.0
    %4943 = vmatpush1.msra.mxu0 0.0
    %4944 = vmatprep.subr.mxu0 0.0
    %4945 = vmatpush1.msra.mxu0 0.0
    %4946 = vmatprep.subr.mxu0 0.0
    %4947 = vmatpush1.msra.mxu0 0.0
    %4948 = vmatprep.subr.mxu0 0.0
    %4949 = vmatpush1.msra.mxu0 0.0
    %4950 = vmatprep.subr.mxu0 0.0
    %4951 = vmatpush1.msra.mxu0 0.0
    %4952 = vmatprep.subr.mxu0 0.0
    %4953 = vmatpush1.msra.mxu0 0.0
    %4954 = vmatprep.subr.mxu0 0.0
    %4955 = vmatpush1.msra.mxu0 0.0
    %4956 = vmatprep.subr.mxu0 0.0
    %4957 = vmatpush1.msra.mxu0 0.0
    %4958 = vmatprep.subr.mxu0 0.0
    %4959 = vmatpush1.msra.mxu0 0.0
    %4960 = vmatprep.subr.mxu0 0.0
    %4961 = vmatpush1.msra.mxu0 0.0
    %4962 = vmatprep.subr.mxu0 0.0
    %4963 = vmatpush1.msra.mxu0 0.0
    %4964 = vmatprep.subr.mxu0 0.0
    %4965 = vmatpush1.msra.mxu0 0.0
    %4966 = vmatprep.subr.mxu0 0.0
    %4967 = vmatpush1.msra.mxu0 0.0
    %4968 = vmatprep.subr.mxu0 0.0
    %4969 = vmatpush1.msra.mxu0 0.0
    %4970 = vmatprep.subr.mxu0 0.0
    %4971 = vmatpush1.msra.mxu0 0.0
    %4972 = vmatprep.subr.mxu0 0.0
    %4973 = vmatpush1.msra.mxu0 0.0
    %4974 = vmatprep.subr.mxu0 0.0
    %4975 = vmatpush1.msra.mxu0 0.0
    %4976 = vmatprep.subr.mxu0 0.0
    %4977 = vmatpush1.msra.mxu0 0.0
    %4978 = vmatprep.subr.mxu0 0.0
    %4979 = vmatpush1.msra.mxu0 0.0
    %4980 = vmatprep.subr.mxu0 0.0
    %4981 = vmatpush1.msra.mxu0 0.0
    %4982 = vmatprep.subr.mxu0 0.0
    %4983 = vmatpush1.msra.mxu0 0.0
    %4984 = vmatprep.subr.mxu0 0.0
    %4985 = vmatpush1.msra.mxu0 0.0
    %4986 = vmatprep.subr.mxu0 0.0
    %4987 = vmatpush1.msra.mxu0 0.0
    %4988 = vmatprep.mubr.f32.mxu0 0.0
    %4989 = vmatmul.mubr.f32.gmra.mrb[0].mxu0 %v4919
    %v4990 = vpop.f32.mrb[0].mxu0
    %v4991 = vadd.f32 %v4916, %v4990
    %v4992 = vpop.f32.mrb[0].mxu0
    %4993 = vdwg.mxu0
    %vm4994 = vcmask 9216
    %v4995 = vsel %vm4994, %v4991, -inf
    %v4996 = vrot.slane %v4995, 4
    %v4997 = vmax.f32 %v4995, %v4996
    %v4998 = vrot.slane %v4997, 2
    %v4999 = vmax.f32 %v4997, %v4998
    %v5000 = vrot.slane %v4999, 1
    %v5001 = vmax.f32 %v4999, %v5000
    %v5002 = vsub.f32 %v4991, %v5001
    %v5003 = vmul.f32 %v5002, 1.442695
    %v5004 = vpow.pop %v5003
    %v5005 = vsel %vm4994, %v5004, 0.0
    %v5006 = vrot.slane %v5005, 4
    %v5007 = vadd.f32 %v5005, %v5006
    %v5008 = vrot.slane %v5007, 2
    %v5009 = vadd.f32 %v5007, %v5008
    %v5010 = vrot.slane %v5009, 1
    %v5011 = vadd.f32 %v5009, %v5010
    %v5012 = vlog2.pop %v5011
    %v5013 = vmul.f32 %v5012, 0.6931472
    %v5014 = vadd.f32 %v5001, %v5013
    %v5015 = vsub.f32 %v4991, %v5014
    %5016 = vst.msk [vmem:[#allocation5] sm:$0x3] %vm4994, %v5015
    // Predicated region
    $region14: #{transformer_classifier.1} parent=1 // pred_check
      _
    $region15: #{transformer_classifier.1} parent=1 // pred_check_branch
      %5018 = sbr.rel (0) target = $region17
    $region16: #{transformer_classifier.1} parent=1 // pred_region
      %s5020 = ssub.s32 32, 32
      %5021 = vsyncadd [#allocation4], %s5020
      %s5023 = sshll.u32 [#allocation5], 4
      %s5024 = int_to_ptr.vmem [resolvable:$true] %s5023
      %5026 = dma.vmem_to_hbm [thread:$0]  %s5024, 32, %s2, [#allocation4]
    $region17: #{transformer_classifier.1} parent=1 // pred_fallthru
      _
    // Predicated region
    $region18: #{transformer_classifier.1} parent=1 // pred_check
      _
    $region19: #{transformer_classifier.1} parent=1 // pred_check_branch
      %5028 = sbr.rel (0) target = $region21
    $region20: #{transformer_classifier.1} parent=1 // pred_region
      %5029 = dma.done [#allocation4], 32
    $region21: #{transformer_classifier.1} parent=1 // pred_fallthru
      _
    %5030 = vsyncpa [#allocation3], 1
    %5031 = vsyncpa [#allocation4], 1

</llo_original>
